<compile_context>
chip_gen: v7x
topology: tpu7x:2x2x1
jax: 0.10.0
libtpu: 0.0.40
codegen_flags: <defaults>
</compile_context>

<pallas_src>
import jax
import jax.numpy as jnp
from jax.experimental import pallas as pl
from jax.experimental.pallas import tpu as pltpu

LEAK = 0.2
LN_EPS = 1e-5
BN_EPS = 1e-5


def _leaky(x):
    # LeakyReLU(0.2):  max(x, 0.2*x)  (single VALU max)
    return jnp.maximum(x, LEAK * x)


def _mm(a, b):
    return jnp.dot(a, b, preferred_element_type=jnp.float32)


def _build_fused_kernel(Bp, S, latent_dim, H, n_coarse, n_fine):
    Hf = H // 2
    SBp = S * Bp
    K1, P1 = 5, 2   # conv1
    K2, P2 = 3, 1   # conv2
    K3, P3 = 3, 1   # conv3 (head)

    def kernel(*refs):
        it = iter(refs)
        emb_ref = next(it)        # (Bp, H)   gathered label embedding
        z_ref = next(it)          # (Bp, latent_dim)
        npw_ref = next(it)
        npb_ref = next(it)
        npg_ref = next(it)
        npbeta_ref = next(it)
        coarse_w = [(next(it), next(it), next(it)) for _ in range(n_coarse)]
        fine_w = [(next(it), next(it), next(it)) for _ in range(n_fine)]
        c1w_ref = next(it)
        c1b_ref = next(it)
        c1s_ref = next(it)
        c1t_ref = next(it)
        c2w_ref = next(it)
        c2b_ref = next(it)
        c2s_ref = next(it)
        c2t_ref = next(it)
        c3w_ref = next(it)
        c3b_ref = next(it)
        out_ref = next(it)
        cpad_ref = next(it)    # ((S + 2*P1) * Bp, H)   coarse conv-input slab
        fpad_ref = next(it)    # ((S + 2*P1) * Bp, Hf)  fine conv-input slab
        y1pad_ref = next(it)   # ((S + 2*P2) * Bp, H)   conv1 output slab
        y2pad_ref = next(it)   # ((S + 2*P3) * Bp, Hf)  conv2 output slab

        emb = emb_ref[...]                                             # (Bp, H)

        # ---- noise processor: Linear + LayerNorm + LeakyReLU ---------------
        y = (_mm(z_ref[...], npw_ref[0:latent_dim, :])
             + _mm(emb, npw_ref[latent_dim:latent_dim + H, :])
             + npb_ref[...])
        mu = jnp.mean(y, axis=-1, keepdims=True)
        var = jnp.mean((y - mu) ** 2, axis=-1, keepdims=True)
        h0 = _leaky((y - mu) * jax.lax.rsqrt(var + LN_EPS) * npg_ref[...]
                    + npbeta_ref[...])                                 # (Bp, H)

        # ---- LSTM stacks (eval mode; h0=c0=0; PyTorch gate order [i,f,g,o]) -
        def lstm_step(gates, c, hid):
            sg = jax.nn.sigmoid(gates)          # one EUP pass over full 4*hid
            th = jnp.tanh(gates)                # one EUP pass over full 4*hid
            c_new = sg[:, hid:2 * hid] * c + sg[:, 0:hid] * th[:, 2 * hid:3 * hid]
            h_new = sg[:, 3 * hid:4 * hid] * jnp.tanh(c_new)
            return h_new, c_new

        def make_layer_job(layer_refs, li, prev_stacked, hid):
            wih_ref, whh_ref, b_ref = layer_refs[li]
            whh = whh_ref[...]                  # hoisted out of the time loop
            b = b_ref[...]
            if li == 0:
                # Layer-0 input [h0, emb] is time-constant: project once.
                xw0 = (_mm(h0, wih_ref[0:H, :])
                       + _mm(emb, wih_ref[H:2 * H, :]) + b)            # (Bp, 4*hid)
                get_xw = lambda t, _v=xw0: _v
            else:
                # One full-occupancy matmul on the stacked previous layer.
                xw_all = _mm(prev_stacked, wih_ref[...]) + b           # (SBp, 4*hid)
                get_xw = lambda t, _v=xw_all: _v[t * Bp:(t + 1) * Bp, :]
            return (get_xw, whh, hid)

        prev_c = None
        prev_f = None
        for li in range(max(n_coarse, n_fine)):
            jobs, tags = [], []
            if li < n_coarse:
                jobs.append(make_layer_job(coarse_w, li, prev_c, H))
                tags.append('c')
            if li < n_fine:
                jobs.append(make_layer_job(fine_w, li, prev_f, Hf))
                tags.append('f')

            states = [(jnp.zeros((Bp, j[2]), jnp.float32),
                       jnp.zeros((Bp, j[2]), jnp.float32)) for j in jobs]
            outs = [[] for _ in jobs]
            # Interleaved recurrence: both stacks' step-t work is issued
            # back-to-back so their serial MXU->EUP->VPU chains overlap.
            for t in range(S):
                gates = [jobs[i][0](t) + _mm(states[i][0], jobs[i][1])
                         for i in range(len(jobs))]
                for i in range(len(jobs)):
                    h_new, c_new = lstm_step(gates[i], states[i][1], jobs[i][2])
                    states[i] = (h_new, c_new)
                    outs[i].append(h_new)
            for i, tag in enumerate(tags):
                stacked = jnp.concatenate(outs[i], axis=0)             # (SBp, hid)
                if tag == 'c':
                    prev_c = stacked
                else:
                    prev_f = stacked
            # TODO(synk): training-mode dropout(0.1) between layers omitted.

        coarse_stacked = prev_c     # (SBp, H),  rows (t, b)-ordered
        fine_stacked = prev_f       # (SBp, Hf)

        # ---- padded conv-input slabs: one full unmasked store each ---------
        cz = jnp.zeros((P1 * Bp, H), jnp.float32)
        fz = jnp.zeros((P1 * Bp, Hf), jnp.float32)
        cpad_ref[...] = jnp.concatenate([cz, coarse_stacked, cz], axis=0)
        fpad_ref[...] = jnp.concatenate([fz, fine_stacked, fz], axis=0)

        # ---- conv1 (K=5, 'same') + BatchNorm(eval) + LeakyReLU -------------
        # Input channels are [coarse | fine]; the weight is split by input
        # channel so the two slabs never need a lane-dim concatenation.
        c1w = c1w_ref[...]                                             # (K1, H+Hf, H)
        acc1 = c1b_ref[...]
        for k in range(K1):
            acc1 = (acc1
                    + _mm(cpad_ref[k * Bp:k * Bp + SBp, :], c1w[k, 0:H, :])
                    + _mm(fpad_ref[k * Bp:k * Bp + SBp, :], c1w[k, H:H + Hf, :]))
        y1 = _leaky(acc1 * c1s_ref[...] + c1t_ref[...])                # (SBp, H)

        z1 = jnp.zeros((P2 * Bp, H), jnp.float32)
        y1pad_ref[...] = jnp.concatenate([z1, y1, z1], axis=0)

        # ---- conv2 (K=3, 'same') + BatchNorm(eval) + LeakyReLU -------------
        c2w = c2w_ref[...]                                             # (K2, H, Hf)
        acc2 = c2b_ref[...]
        for k in range(K2):
            acc2 = acc2 + _mm(y1pad_ref[k * Bp:k * Bp + SBp, :], c2w[k])
        y2 = _leaky(acc2 * c2s_ref[...] + c2t_ref[...])                # (SBp, Hf)

        z2 = jnp.zeros((P3 * Bp, Hf), jnp.float32)
        y2pad_ref[...] = jnp.concatenate([z2, y2, z2], axis=0)

        # ---- conv3 head (Cout=1): VPU multiply + lane reduce + LeakyReLU ---
        c3w = c3w_ref[...]                                             # (K3, Hf)
        acc3 = y2pad_ref[0:SBp, :] * c3w[0:1, :]
        for k in range(1, K3):
            acc3 = acc3 + y2pad_ref[k * Bp:k * Bp + SBp, :] * c3w[k:k + 1, :]
        y3 = jnp.sum(acc3, axis=-1, keepdims=True) + c3b_ref[...]      # (SBp, 1)
        out_ref[...] = _leaky(y3)

    scratch_shapes = [
        pltpu.VMEM(((S + 2 * P1) * Bp, H), jnp.float32),
        pltpu.VMEM(((S + 2 * P1) * Bp, Hf), jnp.float32),
        pltpu.VMEM(((S + 2 * P2) * Bp, H), jnp.float32),
        pltpu.VMEM(((S + 2 * P3) * Bp, Hf), jnp.float32),
    ]
    return kernel, scratch_shapes


# ------------------------------- parameters --------------------------------
def make_params(key, latent_dim, hidden_dim, num_layers, num_classes):
    H = hidden_dim
    ks = iter(jax.random.split(key, 32))

    def nrm(shape, scale=0.1):
        return scale * jax.random.normal(next(ks), shape, jnp.float32)

    p = {}
    p["emb"] = nrm((num_classes + 1, H))                     # Embedding table
    p["np_w"] = nrm((latent_dim + H, H))                     # Linear (in, out)
    p["np_b"] = nrm((1, H))
    p["np_g"] = jnp.ones((1, H), jnp.float32)                # LayerNorm gamma
    p["np_beta"] = jnp.zeros((1, H), jnp.float32)            # LayerNorm beta

    def lstm_stack(n_layers, in_dim, hid):
        layers, d = [], in_dim
        for _ in range(n_layers):
            layers.append((nrm((d, 4 * hid)),                # w_ih^T
                           nrm((hid, 4 * hid)),              # w_hh^T
                           nrm((1, 4 * hid))))               # b_ih + b_hh
            d = hid
        return layers

    p["lstm_coarse"] = lstm_stack(max(1, num_layers - 1), 2 * H, H)
    p["lstm_fine"] = lstm_stack(num_layers, 2 * H, H // 2)

    def bn_scale_shift(c):
        gamma = jnp.ones((c,), jnp.float32)
        beta = jnp.zeros((c,), jnp.float32)
        rm = jnp.zeros((c,), jnp.float32)
        rv = jnp.ones((c,), jnp.float32)
        scale = gamma * jax.lax.rsqrt(rv + BN_EPS)
        shift = beta - rm * scale
        return scale.reshape(1, c), shift.reshape(1, c)

    c_in = H + H // 2
    p["c1_w"], p["c1_b"] = nrm((5, c_in, H)), nrm((1, H))    # (K, Cin, Cout)
    p["c1_scale"], p["c1_shift"] = bn_scale_shift(H)
    p["c2_w"], p["c2_b"] = nrm((3, H, H // 2)), nrm((1, H // 2))
    p["c2_scale"], p["c2_shift"] = bn_scale_shift(H // 2)
    p["c3_w"] = nrm((3, H // 2))                             # (K, Cin); Cout = 1
    p["c3_b"] = nrm((1, 1))
    return p


# -------------------------------- forward ----------------------------------
def forward(params, z, labels, seq_length):
    B, latent_dim = z.shape
    H = params["emb"].shape[1]
    n_coarse = len(params["lstm_coarse"])
    n_fine = len(params["lstm_fine"])
    S = seq_length

    # Pad batch to the 8-row sublane tile so every slab slice is aligned.
    Bp = max(8, -(-B // 8) * 8)
    pad = Bp - B

    # Embedding gather in the wrapper (no in-kernel one-hot matmul).
    emb = jnp.take(params["emb"], labels, axis=0)            # (B, H)
    emb_p = jnp.pad(emb, ((0, pad), (0, 0)))
    z_p = jnp.pad(z, ((0, pad), (0, 0)))

    inputs = [emb_p, z_p, params["np_w"], params["np_b"],
              params["np_g"], params["np_beta"]]
    for layer in params["lstm_coarse"]:
        inputs.extend(layer)
    for layer in params["lstm_fine"]:
        inputs.extend(layer)
    inputs += [params["c1_w"], params["c1_b"], params["c1_scale"],
               params["c1_shift"],
               params["c2_w"], params["c2_b"], params["c2_scale"],
               params["c2_shift"],
               params["c3_w"], params["c3_b"]]

    kernel, scratch_shapes = _build_fused_kernel(
        Bp, S, latent_dim, H, n_coarse, n_fine)

    out_flat = pl.pallas_call(
        kernel,
        out_shape=jax.ShapeDtypeStruct((S * Bp, 1), jnp.float32),
        scratch_shapes=scratch_shapes,
        compiler_params=pltpu.CompilerParams(
            vmem_limit_bytes=32 * 1024 * 1024),
    )(*inputs)
    # kernel rows are (t, b)-ordered -> (Bp, S, 1) -> drop batch padding
    out = out_flat.reshape(S, Bp, 1).transpose(1, 0, 2)
    return out[:B]


if __name__ == "__main__":
    latent_dim, hidden_dim, num_layers, num_classes, seq_length = 16, 32, 2, 4, 8
    B = 2

    key = jax.random.PRNGKey(0)
    kp, kz, kl = jax.random.split(key, 3)
    params = make_params(kp, latent_dim, hidden_dim, num_layers, num_classes)
    z = jax.random.normal(kz, (B, latent_dim), jnp.float32)
    labels = jax.random.randint(kl, (B,), 0, num_classes + 1, dtype=jnp.int32)

    fwd = jax.jit(forward, static_argnums=(3,))
    out = fwd(params, z, labels, seq_length)
    jax.block_until_ready(out)
    assert out.shape == (B, seq_length, 1) and out.dtype == jnp.float32
    assert bool(jnp.all(jnp.isfinite(out)))
    print("KERNEL_OK")
</pallas_src>

<mosaic_0001>
module attributes {stable_mosaic.version = 11 : i64} {
  func.func @kernel(%arg0: memref<8x32xf32, #tpu.memory_space<vmem>>, %arg1: memref<8x16xf32, #tpu.memory_space<vmem>>, %arg2: memref<48x32xf32, #tpu.memory_space<vmem>>, %arg3: memref<1x32xf32, #tpu.memory_space<vmem>>, %arg4: memref<1x32xf32, #tpu.memory_space<vmem>>, %arg5: memref<1x32xf32, #tpu.memory_space<vmem>>, %arg6: memref<64x128xf32, #tpu.memory_space<vmem>>, %arg7: memref<32x128xf32, #tpu.memory_space<vmem>>, %arg8: memref<1x128xf32, #tpu.memory_space<vmem>>, %arg9: memref<64x64xf32, #tpu.memory_space<vmem>>, %arg10: memref<16x64xf32, #tpu.memory_space<vmem>>, %arg11: memref<1x64xf32, #tpu.memory_space<vmem>>, %arg12: memref<16x64xf32, #tpu.memory_space<vmem>>, %arg13: memref<16x64xf32, #tpu.memory_space<vmem>>, %arg14: memref<1x64xf32, #tpu.memory_space<vmem>>, %arg15: memref<5x48x32xf32, #tpu.memory_space<vmem>>, %arg16: memref<1x32xf32, #tpu.memory_space<vmem>>, %arg17: memref<1x32xf32, #tpu.memory_space<vmem>>, %arg18: memref<1x32xf32, #tpu.memory_space<vmem>>, %arg19: memref<3x32x16xf32, #tpu.memory_space<vmem>>, %arg20: memref<1x16xf32, #tpu.memory_space<vmem>>, %arg21: memref<1x16xf32, #tpu.memory_space<vmem>>, %arg22: memref<1x16xf32, #tpu.memory_space<vmem>>, %arg23: memref<3x16xf32, #tpu.memory_space<vmem>>, %arg24: memref<1x1xf32, #tpu.memory_space<vmem>>, %arg25: memref<64x1xf32, #tpu.memory_space<vmem>>, %arg26: memref<96x32xf32, #tpu.memory_space<vmem>>, %arg27: memref<96x16xf32, #tpu.memory_space<vmem>>, %arg28: memref<80x32xf32, #tpu.memory_space<vmem>>, %arg29: memref<80x16xf32, #tpu.memory_space<vmem>>) attributes {dimension_semantics = [], scalar_prefetch = 0 : i64, scratch_operands = 4 : i64, tpu.core_type = #tpu.core_type<tc>} {
    %c0 = arith.constant 0 : index
    %c0_0 = arith.constant 0 : index
    %0 = vector.load %arg0[%c0, %c0_0] : memref<8x32xf32, #tpu.memory_space<vmem>>, vector<8x32xf32>
    %c0_1 = arith.constant 0 : index
    %c0_2 = arith.constant 0 : index
    %1 = vector.load %arg1[%c0_1, %c0_2] : memref<8x16xf32, #tpu.memory_space<vmem>>, vector<8x16xf32>
    %c0_3 = arith.constant 0 : index
    %c0_4 = arith.constant 0 : index
    %2 = vector.load %arg2[%c0_3, %c0_4] : memref<48x32xf32, #tpu.memory_space<vmem>>, vector<16x32xf32>
    %cst = arith.constant dense<0.000000e+00> : vector<8x32xf32>
    %3 = tpu.matmul %1, %2, %cst {dimension_numbers = #tpu.dot_dimension_numbers<[1], [0], [0], [1], [0, 0, 1, 1], [], []>} : vector<8x16xf32>, vector<16x32xf32>, vector<8x32xf32> -> vector<8x32xf32>
    %c16 = arith.constant 16 : index
    %c0_5 = arith.constant 0 : index
    %4 = vector.load %arg2[%c16, %c0_5] : memref<48x32xf32, #tpu.memory_space<vmem>>, vector<32x32xf32>
    %cst_6 = arith.constant dense<0.000000e+00> : vector<8x32xf32>
    %5 = tpu.matmul %0, %4, %cst_6 {dimension_numbers = #tpu.dot_dimension_numbers<[1], [0], [0], [1], [0, 0, 1, 1], [], []>} : vector<8x32xf32>, vector<32x32xf32>, vector<8x32xf32> -> vector<8x32xf32>
    %6 = arith.addf %3, %5 : vector<8x32xf32>
    %c0_7 = arith.constant 0 : index
    %c0_8 = arith.constant 0 : index
    %7 = vector.load %arg3[%c0_7, %c0_8] : memref<1x32xf32, #tpu.memory_space<vmem>>, vector<1x32xf32>
    %8 = vector.broadcast %7 : vector<1x32xf32> to vector<8x32xf32>
    %9 = arith.addf %6, %8 : vector<8x32xf32>
    %cst_9 = arith.constant dense<0.000000e+00> : vector<8xf32>
    %10 = vector.multi_reduction <add>, %9, %cst_9 [1] : vector<8x32xf32> to vector<8xf32>
    %11 = vector.shape_cast %10 : vector<8xf32> to vector<8x1xf32>
    %cst_10 = arith.constant 3.200000e+01 : f32
    %12 = vector.broadcast %cst_10 : f32 to vector<8x1xf32>
    %13 = arith.divf %11, %12 : vector<8x1xf32>
    %14 = vector.broadcast %13 : vector<8x1xf32> to vector<8x32xf32>
    %15 = arith.subf %9, %14 : vector<8x32xf32>
    %16 = arith.mulf %15, %15 : vector<8x32xf32>
    %cst_11 = arith.constant dense<0.000000e+00> : vector<8xf32>
    %17 = vector.multi_reduction <add>, %16, %cst_11 [1] : vector<8x32xf32> to vector<8xf32>
    %18 = vector.shape_cast %17 : vector<8xf32> to vector<8x1xf32>
    %cst_12 = arith.constant 3.200000e+01 : f32
    %19 = vector.broadcast %cst_12 : f32 to vector<8x1xf32>
    %20 = arith.divf %18, %19 : vector<8x1xf32>
    %21 = vector.broadcast %13 : vector<8x1xf32> to vector<8x32xf32>
    %22 = arith.subf %9, %21 : vector<8x32xf32>
    %cst_13 = arith.constant 9.99999974E-6 : f32
    %23 = vector.broadcast %cst_13 : f32 to vector<8x1xf32>
    %24 = arith.addf %20, %23 : vector<8x1xf32>
    %25 = math.rsqrt %24 : vector<8x1xf32>
    %26 = vector.broadcast %25 : vector<8x1xf32> to vector<8x32xf32>
    %27 = arith.mulf %22, %26 : vector<8x32xf32>
    %c0_14 = arith.constant 0 : index
    %c0_15 = arith.constant 0 : index
    %28 = vector.load %arg4[%c0_14, %c0_15] : memref<1x32xf32, #tpu.memory_space<vmem>>, vector<1x32xf32>
    %29 = vector.broadcast %28 : vector<1x32xf32> to vector<8x32xf32>
    %30 = arith.mulf %27, %29 : vector<8x32xf32>
    %c0_16 = arith.constant 0 : index
    %c0_17 = arith.constant 0 : index
    %31 = vector.load %arg5[%c0_16, %c0_17] : memref<1x32xf32, #tpu.memory_space<vmem>>, vector<1x32xf32>
    %32 = vector.broadcast %31 : vector<1x32xf32> to vector<8x32xf32>
    %33 = arith.addf %30, %32 : vector<8x32xf32>
    %cst_18 = arith.constant 2.000000e-01 : f32
    %34 = vector.broadcast %cst_18 : f32 to vector<8x32xf32>
    %35 = arith.mulf %34, %33 : vector<8x32xf32>
    %36 = arith.maximumf %33, %35 : vector<8x32xf32>
    %c0_19 = arith.constant 0 : index
    %c0_20 = arith.constant 0 : index
    %37 = vector.load %arg7[%c0_19, %c0_20] : memref<32x128xf32, #tpu.memory_space<vmem>>, vector<32x128xf32>
    %c0_21 = arith.constant 0 : index
    %c0_22 = arith.constant 0 : index
    %38 = vector.load %arg8[%c0_21, %c0_22] : memref<1x128xf32, #tpu.memory_space<vmem>>, vector<1x128xf32>
    %c0_23 = arith.constant 0 : index
    %c0_24 = arith.constant 0 : index
    %39 = vector.load %arg6[%c0_23, %c0_24] : memref<64x128xf32, #tpu.memory_space<vmem>>, vector<32x128xf32>
    %cst_25 = arith.constant dense<0.000000e+00> : vector<8x128xf32>
    %40 = tpu.matmul %36, %39, %cst_25 {dimension_numbers = #tpu.dot_dimension_numbers<[1], [0], [0], [1], [0, 0, 1, 1], [], []>} : vector<8x32xf32>, vector<32x128xf32>, vector<8x128xf32> -> vector<8x128xf32>
    %c32 = arith.constant 32 : index
    %c0_26 = arith.constant 0 : index
    %41 = vector.load %arg6[%c32, %c0_26] : memref<64x128xf32, #tpu.memory_space<vmem>>, vector<32x128xf32>
    %cst_27 = arith.constant dense<0.000000e+00> : vector<8x128xf32>
    %42 = tpu.matmul %0, %41, %cst_27 {dimension_numbers = #tpu.dot_dimension_numbers<[1], [0], [0], [1], [0, 0, 1, 1], [], []>} : vector<8x32xf32>, vector<32x128xf32>, vector<8x128xf32> -> vector<8x128xf32>
    %43 = arith.addf %40, %42 : vector<8x128xf32>
    %44 = vector.broadcast %38 : vector<1x128xf32> to vector<8x128xf32>
    %45 = arith.addf %43, %44 : vector<8x128xf32>
    %c0_28 = arith.constant 0 : index
    %c0_29 = arith.constant 0 : index
    %46 = vector.load %arg10[%c0_28, %c0_29] : memref<16x64xf32, #tpu.memory_space<vmem>>, vector<16x64xf32>
    %c0_30 = arith.constant 0 : index
    %c0_31 = arith.constant 0 : index
    %47 = vector.load %arg11[%c0_30, %c0_31] : memref<1x64xf32, #tpu.memory_space<vmem>>, vector<1x64xf32>
    %c0_32 = arith.constant 0 : index
    %c0_33 = arith.constant 0 : index
    %48 = vector.load %arg9[%c0_32, %c0_33] : memref<64x64xf32, #tpu.memory_space<vmem>>, vector<32x64xf32>
    %cst_34 = arith.constant dense<0.000000e+00> : vector<8x64xf32>
    %49 = tpu.matmul %36, %48, %cst_34 {dimension_numbers = #tpu.dot_dimension_numbers<[1], [0], [0], [1], [0, 0, 1, 1], [], []>} : vector<8x32xf32>, vector<32x64xf32>, vector<8x64xf32> -> vector<8x64xf32>
    %c32_35 = arith.constant 32 : index
    %c0_36 = arith.constant 0 : index
    %50 = vector.load %arg9[%c32_35, %c0_36] : memref<64x64xf32, #tpu.memory_space<vmem>>, vector<32x64xf32>
    %cst_37 = arith.constant dense<0.000000e+00> : vector<8x64xf32>
    %51 = tpu.matmul %0, %50, %cst_37 {dimension_numbers = #tpu.dot_dimension_numbers<[1], [0], [0], [1], [0, 0, 1, 1], [], []>} : vector<8x32xf32>, vector<32x64xf32>, vector<8x64xf32> -> vector<8x64xf32>
    %52 = arith.addf %49, %51 : vector<8x64xf32>
    %53 = vector.broadcast %47 : vector<1x64xf32> to vector<8x64xf32>
    %54 = arith.addf %52, %53 : vector<8x64xf32>
    %cst_38 = arith.constant 0.000000e+00 : f32
    %55 = vector.broadcast %cst_38 : f32 to vector<8x32xf32>
    %cst_39 = arith.constant 0.000000e+00 : f32
    %56 = vector.broadcast %cst_39 : f32 to vector<8x32xf32>
    %cst_40 = arith.constant 0.000000e+00 : f32
    %57 = vector.broadcast %cst_40 : f32 to vector<8x16xf32>
    %cst_41 = arith.constant 0.000000e+00 : f32
    %58 = vector.broadcast %cst_41 : f32 to vector<8x16xf32>
    %cst_42 = arith.constant dense<0.000000e+00> : vector<8x128xf32>
    %59 = tpu.matmul %55, %37, %cst_42 {dimension_numbers = #tpu.dot_dimension_numbers<[1], [0], [0], [1], [0, 0, 1, 1], [], []>} : vector<8x32xf32>, vector<32x128xf32>, vector<8x128xf32> -> vector<8x128xf32>
    %60 = arith.addf %45, %59 : vector<8x128xf32>
    %cst_43 = arith.constant dense<0.000000e+00> : vector<8x64xf32>
    %61 = tpu.matmul %57, %46, %cst_43 {dimension_numbers = #tpu.dot_dimension_numbers<[1], [0], [0], [1], [0, 0, 1, 1], [], []>} : vector<8x16xf32>, vector<16x64xf32>, vector<8x64xf32> -> vector<8x64xf32>
    %62 = arith.addf %54, %61 : vector<8x64xf32>
    %63 = arith.negf %60 : vector<8x128xf32>
    %64 = math.exp %63 : vector<8x128xf32>
    %cst_44 = arith.constant 1.000000e+00 : f32
    %65 = vector.broadcast %cst_44 : f32 to vector<8x128xf32>
    %66 = arith.addf %65, %64 : vector<8x128xf32>
    %67 = arith.divf %65, %66 : vector<8x128xf32>
    %68 = math.tanh %60 : vector<8x128xf32>
    %69 = vector.extract_strided_slice %67 {offsets = [0, 32], sizes = [8, 32], strides = [1, 1]} : vector<8x128xf32> to vector<8x32xf32>
    %70 = arith.mulf %69, %56 : vector<8x32xf32>
    %71 = vector.extract_strided_slice %67 {offsets = [0, 0], sizes = [8, 32], strides = [1, 1]} : vector<8x128xf32> to vector<8x32xf32>
    %72 = vector.extract_strided_slice %68 {offsets = [0, 64], sizes = [8, 32], strides = [1, 1]} : vector<8x128xf32> to vector<8x32xf32>
    %73 = arith.mulf %71, %72 : vector<8x32xf32>
    %74 = arith.addf %70, %73 : vector<8x32xf32>
    %75 = vector.extract_strided_slice %67 {offsets = [0, 96], sizes = [8, 32], strides = [1, 1]} : vector<8x128xf32> to vector<8x32xf32>
    %76 = math.tanh %74 : vector<8x32xf32>
    %77 = arith.mulf %75, %76 : vector<8x32xf32>
    %78 = arith.negf %62 : vector<8x64xf32>
    %79 = math.exp %78 : vector<8x64xf32>
    %cst_45 = arith.constant 1.000000e+00 : f32
    %80 = vector.broadcast %cst_45 : f32 to vector<8x64xf32>
    %81 = arith.addf %80, %79 : vector<8x64xf32>
    %82 = arith.divf %80, %81 : vector<8x64xf32>
    %83 = math.tanh %62 : vector<8x64xf32>
    %84 = vector.extract_strided_slice %82 {offsets = [0, 16], sizes = [8, 16], strides = [1, 1]} : vector<8x64xf32> to vector<8x16xf32>
    %85 = arith.mulf %84, %58 : vector<8x16xf32>
    %86 = vector.extract_strided_slice %82 {offsets = [0, 0], sizes = [8, 16], strides = [1, 1]} : vector<8x64xf32> to vector<8x16xf32>
    %87 = vector.extract_strided_slice %83 {offsets = [0, 32], sizes = [8, 16], strides = [1, 1]} : vector<8x64xf32> to vector<8x16xf32>
    %88 = arith.mulf %86, %87 : vector<8x16xf32>
    %89 = arith.addf %85, %88 : vector<8x16xf32>
    %90 = vector.extract_strided_slice %82 {offsets = [0, 48], sizes = [8, 16], strides = [1, 1]} : vector<8x64xf32> to vector<8x16xf32>
    %91 = math.tanh %89 : vector<8x16xf32>
    %92 = arith.mulf %90, %91 : vector<8x16xf32>
    %cst_46 = arith.constant dense<0.000000e+00> : vector<8x128xf32>
    %93 = tpu.matmul %77, %37, %cst_46 {dimension_numbers = #tpu.dot_dimension_numbers<[1], [0], [0], [1], [0, 0, 1, 1], [], []>} : vector<8x32xf32>, vector<32x128xf32>, vector<8x128xf32> -> vector<8x128xf32>
    %94 = arith.addf %45, %93 : vector<8x128xf32>
    %cst_47 = arith.constant dense<0.000000e+00> : vector<8x64xf32>
    %95 = tpu.matmul %92, %46, %cst_47 {dimension_numbers = #tpu.dot_dimension_numbers<[1], [0], [0], [1], [0, 0, 1, 1], [], []>} : vector<8x16xf32>, vector<16x64xf32>, vector<8x64xf32> -> vector<8x64xf32>
    %96 = arith.addf %54, %95 : vector<8x64xf32>
    %97 = arith.negf %94 : vector<8x128xf32>
    %98 = math.exp %97 : vector<8x128xf32>
    %cst_48 = arith.constant 1.000000e+00 : f32
    %99 = vector.broadcast %cst_48 : f32 to vector<8x128xf32>
    %100 = arith.addf %99, %98 : vector<8x128xf32>
    %101 = arith.divf %99, %100 : vector<8x128xf32>
    %102 = math.tanh %94 : vector<8x128xf32>
    %103 = vector.extract_strided_slice %101 {offsets = [0, 32], sizes = [8, 32], strides = [1, 1]} : vector<8x128xf32> to vector<8x32xf32>
    %104 = arith.mulf %103, %74 : vector<8x32xf32>
    %105 = vector.extract_strided_slice %101 {offsets = [0, 0], sizes = [8, 32], strides = [1, 1]} : vector<8x128xf32> to vector<8x32xf32>
    %106 = vector.extract_strided_slice %102 {offsets = [0, 64], sizes = [8, 32], strides = [1, 1]} : vector<8x128xf32> to vector<8x32xf32>
    %107 = arith.mulf %105, %106 : vector<8x32xf32>
    %108 = arith.addf %104, %107 : vector<8x32xf32>
    %109 = vector.extract_strided_slice %101 {offsets = [0, 96], sizes = [8, 32], strides = [1, 1]} : vector<8x128xf32> to vector<8x32xf32>
    %110 = math.tanh %108 : vector<8x32xf32>
    %111 = arith.mulf %109, %110 : vector<8x32xf32>
    %112 = arith.negf %96 : vector<8x64xf32>
    %113 = math.exp %112 : vector<8x64xf32>
    %cst_49 = arith.constant 1.000000e+00 : f32
    %114 = vector.broadcast %cst_49 : f32 to vector<8x64xf32>
    %115 = arith.addf %114, %113 : vector<8x64xf32>
    %116 = arith.divf %114, %115 : vector<8x64xf32>
    %117 = math.tanh %96 : vector<8x64xf32>
    %118 = vector.extract_strided_slice %116 {offsets = [0, 16], sizes = [8, 16], strides = [1, 1]} : vector<8x64xf32> to vector<8x16xf32>
    %119 = arith.mulf %118, %89 : vector<8x16xf32>
    %120 = vector.extract_strided_slice %116 {offsets = [0, 0], sizes = [8, 16], strides = [1, 1]} : vector<8x64xf32> to vector<8x16xf32>
    %121 = vector.extract_strided_slice %117 {offsets = [0, 32], sizes = [8, 16], strides = [1, 1]} : vector<8x64xf32> to vector<8x16xf32>
    %122 = arith.mulf %120, %121 : vector<8x16xf32>
    %123 = arith.addf %119, %122 : vector<8x16xf32>
    %124 = vector.extract_strided_slice %116 {offsets = [0, 48], sizes = [8, 16], strides = [1, 1]} : vector<8x64xf32> to vector<8x16xf32>
    %125 = math.tanh %123 : vector<8x16xf32>
    %126 = arith.mulf %124, %125 : vector<8x16xf32>
    %cst_50 = arith.constant dense<0.000000e+00> : vector<8x128xf32>
    %127 = tpu.matmul %111, %37, %cst_50 {dimension_numbers = #tpu.dot_dimension_numbers<[1], [0], [0], [1], [0, 0, 1, 1], [], []>} : vector<8x32xf32>, vector<32x128xf32>, vector<8x128xf32> -> vector<8x128xf32>
    %128 = arith.addf %45, %127 : vector<8x128xf32>
    %cst_51 = arith.constant dense<0.000000e+00> : vector<8x64xf32>
    %129 = tpu.matmul %126, %46, %cst_51 {dimension_numbers = #tpu.dot_dimension_numbers<[1], [0], [0], [1], [0, 0, 1, 1], [], []>} : vector<8x16xf32>, vector<16x64xf32>, vector<8x64xf32> -> vector<8x64xf32>
    %130 = arith.addf %54, %129 : vector<8x64xf32>
    %131 = arith.negf %128 : vector<8x128xf32>
    %132 = math.exp %131 : vector<8x128xf32>
    %cst_52 = arith.constant 1.000000e+00 : f32
    %133 = vector.broadcast %cst_52 : f32 to vector<8x128xf32>
    %134 = arith.addf %133, %132 : vector<8x128xf32>
    %135 = arith.divf %133, %134 : vector<8x128xf32>
    %136 = math.tanh %128 : vector<8x128xf32>
    %137 = vector.extract_strided_slice %135 {offsets = [0, 32], sizes = [8, 32], strides = [1, 1]} : vector<8x128xf32> to vector<8x32xf32>
    %138 = arith.mulf %137, %108 : vector<8x32xf32>
    %139 = vector.extract_strided_slice %135 {offsets = [0, 0], sizes = [8, 32], strides = [1, 1]} : vector<8x128xf32> to vector<8x32xf32>
    %140 = vector.extract_strided_slice %136 {offsets = [0, 64], sizes = [8, 32], strides = [1, 1]} : vector<8x128xf32> to vector<8x32xf32>
    %141 = arith.mulf %139, %140 : vector<8x32xf32>
    %142 = arith.addf %138, %141 : vector<8x32xf32>
    %143 = vector.extract_strided_slice %135 {offsets = [0, 96], sizes = [8, 32], strides = [1, 1]} : vector<8x128xf32> to vector<8x32xf32>
    %144 = math.tanh %142 : vector<8x32xf32>
    %145 = arith.mulf %143, %144 : vector<8x32xf32>
    %146 = arith.negf %130 : vector<8x64xf32>
    %147 = math.exp %146 : vector<8x64xf32>
    %cst_53 = arith.constant 1.000000e+00 : f32
    %148 = vector.broadcast %cst_53 : f32 to vector<8x64xf32>
    %149 = arith.addf %148, %147 : vector<8x64xf32>
    %150 = arith.divf %148, %149 : vector<8x64xf32>
    %151 = math.tanh %130 : vector<8x64xf32>
    %152 = vector.extract_strided_slice %150 {offsets = [0, 16], sizes = [8, 16], strides = [1, 1]} : vector<8x64xf32> to vector<8x16xf32>
    %153 = arith.mulf %152, %123 : vector<8x16xf32>
    %154 = vector.extract_strided_slice %150 {offsets = [0, 0], sizes = [8, 16], strides = [1, 1]} : vector<8x64xf32> to vector<8x16xf32>
    %155 = vector.extract_strided_slice %151 {offsets = [0, 32], sizes = [8, 16], strides = [1, 1]} : vector<8x64xf32> to vector<8x16xf32>
    %156 = arith.mulf %154, %155 : vector<8x16xf32>
    %157 = arith.addf %153, %156 : vector<8x16xf32>
    %158 = vector.extract_strided_slice %150 {offsets = [0, 48], sizes = [8, 16], strides = [1, 1]} : vector<8x64xf32> to vector<8x16xf32>
    %159 = math.tanh %157 : vector<8x16xf32>
    %160 = arith.mulf %158, %159 : vector<8x16xf32>
    %cst_54 = arith.constant dense<0.000000e+00> : vector<8x128xf32>
    %161 = tpu.matmul %145, %37, %cst_54 {dimension_numbers = #tpu.dot_dimension_numbers<[1], [0], [0], [1], [0, 0, 1, 1], [], []>} : vector<8x32xf32>, vector<32x128xf32>, vector<8x128xf32> -> vector<8x128xf32>
    %162 = arith.addf %45, %161 : vector<8x128xf32>
    %cst_55 = arith.constant dense<0.000000e+00> : vector<8x64xf32>
    %163 = tpu.matmul %160, %46, %cst_55 {dimension_numbers = #tpu.dot_dimension_numbers<[1], [0], [0], [1], [0, 0, 1, 1], [], []>} : vector<8x16xf32>, vector<16x64xf32>, vector<8x64xf32> -> vector<8x64xf32>
    %164 = arith.addf %54, %163 : vector<8x64xf32>
    %165 = arith.negf %162 : vector<8x128xf32>
    %166 = math.exp %165 : vector<8x128xf32>
    %cst_56 = arith.constant 1.000000e+00 : f32
    %167 = vector.broadcast %cst_56 : f32 to vector<8x128xf32>
    %168 = arith.addf %167, %166 : vector<8x128xf32>
    %169 = arith.divf %167, %168 : vector<8x128xf32>
    %170 = math.tanh %162 : vector<8x128xf32>
    %171 = vector.extract_strided_slice %169 {offsets = [0, 32], sizes = [8, 32], strides = [1, 1]} : vector<8x128xf32> to vector<8x32xf32>
    %172 = arith.mulf %171, %142 : vector<8x32xf32>
    %173 = vector.extract_strided_slice %169 {offsets = [0, 0], sizes = [8, 32], strides = [1, 1]} : vector<8x128xf32> to vector<8x32xf32>
    %174 = vector.extract_strided_slice %170 {offsets = [0, 64], sizes = [8, 32], strides = [1, 1]} : vector<8x128xf32> to vector<8x32xf32>
    %175 = arith.mulf %173, %174 : vector<8x32xf32>
    %176 = arith.addf %172, %175 : vector<8x32xf32>
    %177 = vector.extract_strided_slice %169 {offsets = [0, 96], sizes = [8, 32], strides = [1, 1]} : vector<8x128xf32> to vector<8x32xf32>
    %178 = math.tanh %176 : vector<8x32xf32>
    %179 = arith.mulf %177, %178 : vector<8x32xf32>
    %180 = arith.negf %164 : vector<8x64xf32>
    %181 = math.exp %180 : vector<8x64xf32>
    %cst_57 = arith.constant 1.000000e+00 : f32
    %182 = vector.broadcast %cst_57 : f32 to vector<8x64xf32>
    %183 = arith.addf %182, %181 : vector<8x64xf32>
    %184 = arith.divf %182, %183 : vector<8x64xf32>
    %185 = math.tanh %164 : vector<8x64xf32>
    %186 = vector.extract_strided_slice %184 {offsets = [0, 16], sizes = [8, 16], strides = [1, 1]} : vector<8x64xf32> to vector<8x16xf32>
    %187 = arith.mulf %186, %157 : vector<8x16xf32>
    %188 = vector.extract_strided_slice %184 {offsets = [0, 0], sizes = [8, 16], strides = [1, 1]} : vector<8x64xf32> to vector<8x16xf32>
    %189 = vector.extract_strided_slice %185 {offsets = [0, 32], sizes = [8, 16], strides = [1, 1]} : vector<8x64xf32> to vector<8x16xf32>
    %190 = arith.mulf %188, %189 : vector<8x16xf32>
    %191 = arith.addf %187, %190 : vector<8x16xf32>
    %192 = vector.extract_strided_slice %184 {offsets = [0, 48], sizes = [8, 16], strides = [1, 1]} : vector<8x64xf32> to vector<8x16xf32>
    %193 = math.tanh %191 : vector<8x16xf32>
    %194 = arith.mulf %192, %193 : vector<8x16xf32>
    %cst_58 = arith.constant dense<0.000000e+00> : vector<8x128xf32>
    %195 = tpu.matmul %179, %37, %cst_58 {dimension_numbers = #tpu.dot_dimension_numbers<[1], [0], [0], [1], [0, 0, 1, 1], [], []>} : vector<8x32xf32>, vector<32x128xf32>, vector<8x128xf32> -> vector<8x128xf32>
    %196 = arith.addf %45, %195 : vector<8x128xf32>
    %cst_59 = arith.constant dense<0.000000e+00> : vector<8x64xf32>
    %197 = tpu.matmul %194, %46, %cst_59 {dimension_numbers = #tpu.dot_dimension_numbers<[1], [0], [0], [1], [0, 0, 1, 1], [], []>} : vector<8x16xf32>, vector<16x64xf32>, vector<8x64xf32> -> vector<8x64xf32>
    %198 = arith.addf %54, %197 : vector<8x64xf32>
    %199 = arith.negf %196 : vector<8x128xf32>
    %200 = math.exp %199 : vector<8x128xf32>
    %cst_60 = arith.constant 1.000000e+00 : f32
    %201 = vector.broadcast %cst_60 : f32 to vector<8x128xf32>
    %202 = arith.addf %201, %200 : vector<8x128xf32>
    %203 = arith.divf %201, %202 : vector<8x128xf32>
    %204 = math.tanh %196 : vector<8x128xf32>
    %205 = vector.extract_strided_slice %203 {offsets = [0, 32], sizes = [8, 32], strides = [1, 1]} : vector<8x128xf32> to vector<8x32xf32>
    %206 = arith.mulf %205, %176 : vector<8x32xf32>
    %207 = vector.extract_strided_slice %203 {offsets = [0, 0], sizes = [8, 32], strides = [1, 1]} : vector<8x128xf32> to vector<8x32xf32>
    %208 = vector.extract_strided_slice %204 {offsets = [0, 64], sizes = [8, 32], strides = [1, 1]} : vector<8x128xf32> to vector<8x32xf32>
    %209 = arith.mulf %207, %208 : vector<8x32xf32>
    %210 = arith.addf %206, %209 : vector<8x32xf32>
    %211 = vector.extract_strided_slice %203 {offsets = [0, 96], sizes = [8, 32], strides = [1, 1]} : vector<8x128xf32> to vector<8x32xf32>
    %212 = math.tanh %210 : vector<8x32xf32>
    %213 = arith.mulf %211, %212 : vector<8x32xf32>
    %214 = arith.negf %198 : vector<8x64xf32>
    %215 = math.exp %214 : vector<8x64xf32>
    %cst_61 = arith.constant 1.000000e+00 : f32
    %216 = vector.broadcast %cst_61 : f32 to vector<8x64xf32>
    %217 = arith.addf %216, %215 : vector<8x64xf32>
    %218 = arith.divf %216, %217 : vector<8x64xf32>
    %219 = math.tanh %198 : vector<8x64xf32>
    %220 = vector.extract_strided_slice %218 {offsets = [0, 16], sizes = [8, 16], strides = [1, 1]} : vector<8x64xf32> to vector<8x16xf32>
    %221 = arith.mulf %220, %191 : vector<8x16xf32>
    %222 = vector.extract_strided_slice %218 {offsets = [0, 0], sizes = [8, 16], strides = [1, 1]} : vector<8x64xf32> to vector<8x16xf32>
    %223 = vector.extract_strided_slice %219 {offsets = [0, 32], sizes = [8, 16], strides = [1, 1]} : vector<8x64xf32> to vector<8x16xf32>
    %224 = arith.mulf %222, %223 : vector<8x16xf32>
    %225 = arith.addf %221, %224 : vector<8x16xf32>
    %226 = vector.extract_strided_slice %218 {offsets = [0, 48], sizes = [8, 16], strides = [1, 1]} : vector<8x64xf32> to vector<8x16xf32>
    %227 = math.tanh %225 : vector<8x16xf32>
    %228 = arith.mulf %226, %227 : vector<8x16xf32>
    %cst_62 = arith.constant dense<0.000000e+00> : vector<8x128xf32>
    %229 = tpu.matmul %213, %37, %cst_62 {dimension_numbers = #tpu.dot_dimension_numbers<[1], [0], [0], [1], [0, 0, 1, 1], [], []>} : vector<8x32xf32>, vector<32x128xf32>, vector<8x128xf32> -> vector<8x128xf32>
    %230 = arith.addf %45, %229 : vector<8x128xf32>
    %cst_63 = arith.constant dense<0.000000e+00> : vector<8x64xf32>
    %231 = tpu.matmul %228, %46, %cst_63 {dimension_numbers = #tpu.dot_dimension_numbers<[1], [0], [0], [1], [0, 0, 1, 1], [], []>} : vector<8x16xf32>, vector<16x64xf32>, vector<8x64xf32> -> vector<8x64xf32>
    %232 = arith.addf %54, %231 : vector<8x64xf32>
    %233 = arith.negf %230 : vector<8x128xf32>
    %234 = math.exp %233 : vector<8x128xf32>
    %cst_64 = arith.constant 1.000000e+00 : f32
    %235 = vector.broadcast %cst_64 : f32 to vector<8x128xf32>
    %236 = arith.addf %235, %234 : vector<8x128xf32>
    %237 = arith.divf %235, %236 : vector<8x128xf32>
    %238 = math.tanh %230 : vector<8x128xf32>
    %239 = vector.extract_strided_slice %237 {offsets = [0, 32], sizes = [8, 32], strides = [1, 1]} : vector<8x128xf32> to vector<8x32xf32>
    %240 = arith.mulf %239, %210 : vector<8x32xf32>
    %241 = vector.extract_strided_slice %237 {offsets = [0, 0], sizes = [8, 32], strides = [1, 1]} : vector<8x128xf32> to vector<8x32xf32>
    %242 = vector.extract_strided_slice %238 {offsets = [0, 64], sizes = [8, 32], strides = [1, 1]} : vector<8x128xf32> to vector<8x32xf32>
    %243 = arith.mulf %241, %242 : vector<8x32xf32>
    %244 = arith.addf %240, %243 : vector<8x32xf32>
    %245 = vector.extract_strided_slice %237 {offsets = [0, 96], sizes = [8, 32], strides = [1, 1]} : vector<8x128xf32> to vector<8x32xf32>
    %246 = math.tanh %244 : vector<8x32xf32>
    %247 = arith.mulf %245, %246 : vector<8x32xf32>
    %248 = arith.negf %232 : vector<8x64xf32>
    %249 = math.exp %248 : vector<8x64xf32>
    %cst_65 = arith.constant 1.000000e+00 : f32
    %250 = vector.broadcast %cst_65 : f32 to vector<8x64xf32>
    %251 = arith.addf %250, %249 : vector<8x64xf32>
    %252 = arith.divf %250, %251 : vector<8x64xf32>
    %253 = math.tanh %232 : vector<8x64xf32>
    %254 = vector.extract_strided_slice %252 {offsets = [0, 16], sizes = [8, 16], strides = [1, 1]} : vector<8x64xf32> to vector<8x16xf32>
    %255 = arith.mulf %254, %225 : vector<8x16xf32>
    %256 = vector.extract_strided_slice %252 {offsets = [0, 0], sizes = [8, 16], strides = [1, 1]} : vector<8x64xf32> to vector<8x16xf32>
    %257 = vector.extract_strided_slice %253 {offsets = [0, 32], sizes = [8, 16], strides = [1, 1]} : vector<8x64xf32> to vector<8x16xf32>
    %258 = arith.mulf %256, %257 : vector<8x16xf32>
    %259 = arith.addf %255, %258 : vector<8x16xf32>
    %260 = vector.extract_strided_slice %252 {offsets = [0, 48], sizes = [8, 16], strides = [1, 1]} : vector<8x64xf32> to vector<8x16xf32>
    %261 = math.tanh %259 : vector<8x16xf32>
    %262 = arith.mulf %260, %261 : vector<8x16xf32>
    %cst_66 = arith.constant dense<0.000000e+00> : vector<8x128xf32>
    %263 = tpu.matmul %247, %37, %cst_66 {dimension_numbers = #tpu.dot_dimension_numbers<[1], [0], [0], [1], [0, 0, 1, 1], [], []>} : vector<8x32xf32>, vector<32x128xf32>, vector<8x128xf32> -> vector<8x128xf32>
    %264 = arith.addf %45, %263 : vector<8x128xf32>
    %cst_67 = arith.constant dense<0.000000e+00> : vector<8x64xf32>
    %265 = tpu.matmul %262, %46, %cst_67 {dimension_numbers = #tpu.dot_dimension_numbers<[1], [0], [0], [1], [0, 0, 1, 1], [], []>} : vector<8x16xf32>, vector<16x64xf32>, vector<8x64xf32> -> vector<8x64xf32>
    %266 = arith.addf %54, %265 : vector<8x64xf32>
    %267 = arith.negf %264 : vector<8x128xf32>
    %268 = math.exp %267 : vector<8x128xf32>
    %cst_68 = arith.constant 1.000000e+00 : f32
    %269 = vector.broadcast %cst_68 : f32 to vector<8x128xf32>
    %270 = arith.addf %269, %268 : vector<8x128xf32>
    %271 = arith.divf %269, %270 : vector<8x128xf32>
    %272 = math.tanh %264 : vector<8x128xf32>
    %273 = vector.extract_strided_slice %271 {offsets = [0, 32], sizes = [8, 32], strides = [1, 1]} : vector<8x128xf32> to vector<8x32xf32>
    %274 = arith.mulf %273, %244 : vector<8x32xf32>
    %275 = vector.extract_strided_slice %271 {offsets = [0, 0], sizes = [8, 32], strides = [1, 1]} : vector<8x128xf32> to vector<8x32xf32>
    %276 = vector.extract_strided_slice %272 {offsets = [0, 64], sizes = [8, 32], strides = [1, 1]} : vector<8x128xf32> to vector<8x32xf32>
    %277 = arith.mulf %275, %276 : vector<8x32xf32>
    %278 = arith.addf %274, %277 : vector<8x32xf32>
    %279 = vector.extract_strided_slice %271 {offsets = [0, 96], sizes = [8, 32], strides = [1, 1]} : vector<8x128xf32> to vector<8x32xf32>
    %280 = math.tanh %278 : vector<8x32xf32>
    %281 = arith.mulf %279, %280 : vector<8x32xf32>
    %282 = arith.negf %266 : vector<8x64xf32>
    %283 = math.exp %282 : vector<8x64xf32>
    %cst_69 = arith.constant 1.000000e+00 : f32
    %284 = vector.broadcast %cst_69 : f32 to vector<8x64xf32>
    %285 = arith.addf %284, %283 : vector<8x64xf32>
    %286 = arith.divf %284, %285 : vector<8x64xf32>
    %287 = math.tanh %266 : vector<8x64xf32>
    %288 = vector.extract_strided_slice %286 {offsets = [0, 16], sizes = [8, 16], strides = [1, 1]} : vector<8x64xf32> to vector<8x16xf32>
    %289 = arith.mulf %288, %259 : vector<8x16xf32>
    %290 = vector.extract_strided_slice %286 {offsets = [0, 0], sizes = [8, 16], strides = [1, 1]} : vector<8x64xf32> to vector<8x16xf32>
    %291 = vector.extract_strided_slice %287 {offsets = [0, 32], sizes = [8, 16], strides = [1, 1]} : vector<8x64xf32> to vector<8x16xf32>
    %292 = arith.mulf %290, %291 : vector<8x16xf32>
    %293 = arith.addf %289, %292 : vector<8x16xf32>
    %294 = vector.extract_strided_slice %286 {offsets = [0, 48], sizes = [8, 16], strides = [1, 1]} : vector<8x64xf32> to vector<8x16xf32>
    %295 = math.tanh %293 : vector<8x16xf32>
    %296 = arith.mulf %294, %295 : vector<8x16xf32>
    %cst_70 = arith.constant dense<0.000000e+00> : vector<8x128xf32>
    %297 = tpu.matmul %281, %37, %cst_70 {dimension_numbers = #tpu.dot_dimension_numbers<[1], [0], [0], [1], [0, 0, 1, 1], [], []>} : vector<8x32xf32>, vector<32x128xf32>, vector<8x128xf32> -> vector<8x128xf32>
    %298 = arith.addf %45, %297 : vector<8x128xf32>
    %cst_71 = arith.constant dense<0.000000e+00> : vector<8x64xf32>
    %299 = tpu.matmul %296, %46, %cst_71 {dimension_numbers = #tpu.dot_dimension_numbers<[1], [0], [0], [1], [0, 0, 1, 1], [], []>} : vector<8x16xf32>, vector<16x64xf32>, vector<8x64xf32> -> vector<8x64xf32>
    %300 = arith.addf %54, %299 : vector<8x64xf32>
    %301 = arith.negf %298 : vector<8x128xf32>
    %302 = math.exp %301 : vector<8x128xf32>
    %cst_72 = arith.constant 1.000000e+00 : f32
    %303 = vector.broadcast %cst_72 : f32 to vector<8x128xf32>
    %304 = arith.addf %303, %302 : vector<8x128xf32>
    %305 = arith.divf %303, %304 : vector<8x128xf32>
    %306 = math.tanh %298 : vector<8x128xf32>
    %307 = vector.extract_strided_slice %305 {offsets = [0, 32], sizes = [8, 32], strides = [1, 1]} : vector<8x128xf32> to vector<8x32xf32>
    %308 = arith.mulf %307, %278 : vector<8x32xf32>
    %309 = vector.extract_strided_slice %305 {offsets = [0, 0], sizes = [8, 32], strides = [1, 1]} : vector<8x128xf32> to vector<8x32xf32>
    %310 = vector.extract_strided_slice %306 {offsets = [0, 64], sizes = [8, 32], strides = [1, 1]} : vector<8x128xf32> to vector<8x32xf32>
    %311 = arith.mulf %309, %310 : vector<8x32xf32>
    %312 = arith.addf %308, %311 : vector<8x32xf32>
    %313 = vector.extract_strided_slice %305 {offsets = [0, 96], sizes = [8, 32], strides = [1, 1]} : vector<8x128xf32> to vector<8x32xf32>
    %314 = math.tanh %312 : vector<8x32xf32>
    %315 = arith.mulf %313, %314 : vector<8x32xf32>
    %316 = arith.negf %300 : vector<8x64xf32>
    %317 = math.exp %316 : vector<8x64xf32>
    %cst_73 = arith.constant 1.000000e+00 : f32
    %318 = vector.broadcast %cst_73 : f32 to vector<8x64xf32>
    %319 = arith.addf %318, %317 : vector<8x64xf32>
    %320 = arith.divf %318, %319 : vector<8x64xf32>
    %321 = math.tanh %300 : vector<8x64xf32>
    %322 = vector.extract_strided_slice %320 {offsets = [0, 16], sizes = [8, 16], strides = [1, 1]} : vector<8x64xf32> to vector<8x16xf32>
    %323 = arith.mulf %322, %293 : vector<8x16xf32>
    %324 = vector.extract_strided_slice %320 {offsets = [0, 0], sizes = [8, 16], strides = [1, 1]} : vector<8x64xf32> to vector<8x16xf32>
    %325 = vector.extract_strided_slice %321 {offsets = [0, 32], sizes = [8, 16], strides = [1, 1]} : vector<8x64xf32> to vector<8x16xf32>
    %326 = arith.mulf %324, %325 : vector<8x16xf32>
    %327 = arith.addf %323, %326 : vector<8x16xf32>
    %328 = vector.extract_strided_slice %320 {offsets = [0, 48], sizes = [8, 16], strides = [1, 1]} : vector<8x64xf32> to vector<8x16xf32>
    %329 = math.tanh %327 : vector<8x16xf32>
    %330 = arith.mulf %328, %329 : vector<8x16xf32>
    %331 = tpu.concatenate %77, %111, %145, %179, %213, %247, %281, %315 in 0 : vector<8x32xf32>, vector<8x32xf32>, vector<8x32xf32>, vector<8x32xf32>, vector<8x32xf32>, vector<8x32xf32>, vector<8x32xf32>, vector<8x32xf32> -> vector<64x32xf32>
    %332 = tpu.concatenate %92, %126, %160, %194, %228, %262, %296, %330 in 0 : vector<8x16xf32>, vector<8x16xf32>, vector<8x16xf32>, vector<8x16xf32>, vector<8x16xf32>, vector<8x16xf32>, vector<8x16xf32>, vector<8x16xf32> -> vector<64x16xf32>
    %c0_74 = arith.constant 0 : index
    %c0_75 = arith.constant 0 : index
    %333 = vector.load %arg13[%c0_74, %c0_75] : memref<16x64xf32, #tpu.memory_space<vmem>>, vector<16x64xf32>
    %c0_76 = arith.constant 0 : index
    %c0_77 = arith.constant 0 : index
    %334 = vector.load %arg14[%c0_76, %c0_77] : memref<1x64xf32, #tpu.memory_space<vmem>>, vector<1x64xf32>
    %c0_78 = arith.constant 0 : index
    %c0_79 = arith.constant 0 : index
    %335 = vector.load %arg12[%c0_78, %c0_79] : memref<16x64xf32, #tpu.memory_space<vmem>>, vector<16x64xf32>
    %cst_80 = arith.constant dense<0.000000e+00> : vector<64x64xf32>
    %336 = tpu.matmul %332, %335, %cst_80 {dimension_numbers = #tpu.dot_dimension_numbers<[1], [0], [0], [1], [0, 0, 1, 1], [], []>} : vector<64x16xf32>, vector<16x64xf32>, vector<64x64xf32> -> vector<64x64xf32>
    %337 = vector.broadcast %334 : vector<1x64xf32> to vector<64x64xf32>
    %338 = arith.addf %336, %337 : vector<64x64xf32>
    %cst_81 = arith.constant 0.000000e+00 : f32
    %339 = vector.broadcast %cst_81 : f32 to vector<8x16xf32>
    %cst_82 = arith.constant 0.000000e+00 : f32
    %340 = vector.broadcast %cst_82 : f32 to vector<8x16xf32>
    %341 = vector.extract_strided_slice %338 {offsets = [0, 0], sizes = [8, 64], strides = [1, 1]} : vector<64x64xf32> to vector<8x64xf32>
    %cst_83 = arith.constant dense<0.000000e+00> : vector<8x64xf32>
    %342 = tpu.matmul %339, %333, %cst_83 {dimension_numbers = #tpu.dot_dimension_numbers<[1], [0], [0], [1], [0, 0, 1, 1], [], []>} : vector<8x16xf32>, vector<16x64xf32>, vector<8x64xf32> -> vector<8x64xf32>
    %343 = arith.addf %341, %342 : vector<8x64xf32>
    %344 = arith.negf %343 : vector<8x64xf32>
    %345 = math.exp %344 : vector<8x64xf32>
    %cst_84 = arith.constant 1.000000e+00 : f32
    %346 = vector.broadcast %cst_84 : f32 to vector<8x64xf32>
    %347 = arith.addf %346, %345 : vector<8x64xf32>
    %348 = arith.divf %346, %347 : vector<8x64xf32>
    %349 = math.tanh %343 : vector<8x64xf32>
    %350 = vector.extract_strided_slice %348 {offsets = [0, 16], sizes = [8, 16], strides = [1, 1]} : vector<8x64xf32> to vector<8x16xf32>
    %351 = arith.mulf %350, %340 : vector<8x16xf32>
    %352 = vector.extract_strided_slice %348 {offsets = [0, 0], sizes = [8, 16], strides = [1, 1]} : vector<8x64xf32> to vector<8x16xf32>
    %353 = vector.extract_strided_slice %349 {offsets = [0, 32], sizes = [8, 16], strides = [1, 1]} : vector<8x64xf32> to vector<8x16xf32>
    %354 = arith.mulf %352, %353 : vector<8x16xf32>
    %355 = arith.addf %351, %354 : vector<8x16xf32>
    %356 = vector.extract_strided_slice %348 {offsets = [0, 48], sizes = [8, 16], strides = [1, 1]} : vector<8x64xf32> to vector<8x16xf32>
    %357 = math.tanh %355 : vector<8x16xf32>
    %358 = arith.mulf %356, %357 : vector<8x16xf32>
    %359 = vector.extract_strided_slice %338 {offsets = [8, 0], sizes = [8, 64], strides = [1, 1]} : vector<64x64xf32> to vector<8x64xf32>
    %cst_85 = arith.constant dense<0.000000e+00> : vector<8x64xf32>
    %360 = tpu.matmul %358, %333, %cst_85 {dimension_numbers = #tpu.dot_dimension_numbers<[1], [0], [0], [1], [0, 0, 1, 1], [], []>} : vector<8x16xf32>, vector<16x64xf32>, vector<8x64xf32> -> vector<8x64xf32>
    %361 = arith.addf %359, %360 : vector<8x64xf32>
    %362 = arith.negf %361 : vector<8x64xf32>
    %363 = math.exp %362 : vector<8x64xf32>
    %cst_86 = arith.constant 1.000000e+00 : f32
    %364 = vector.broadcast %cst_86 : f32 to vector<8x64xf32>
    %365 = arith.addf %364, %363 : vector<8x64xf32>
    %366 = arith.divf %364, %365 : vector<8x64xf32>
    %367 = math.tanh %361 : vector<8x64xf32>
    %368 = vector.extract_strided_slice %366 {offsets = [0, 16], sizes = [8, 16], strides = [1, 1]} : vector<8x64xf32> to vector<8x16xf32>
    %369 = arith.mulf %368, %355 : vector<8x16xf32>
    %370 = vector.extract_strided_slice %366 {offsets = [0, 0], sizes = [8, 16], strides = [1, 1]} : vector<8x64xf32> to vector<8x16xf32>
    %371 = vector.extract_strided_slice %367 {offsets = [0, 32], sizes = [8, 16], strides = [1, 1]} : vector<8x64xf32> to vector<8x16xf32>
    %372 = arith.mulf %370, %371 : vector<8x16xf32>
    %373 = arith.addf %369, %372 : vector<8x16xf32>
    %374 = vector.extract_strided_slice %366 {offsets = [0, 48], sizes = [8, 16], strides = [1, 1]} : vector<8x64xf32> to vector<8x16xf32>
    %375 = math.tanh %373 : vector<8x16xf32>
    %376 = arith.mulf %374, %375 : vector<8x16xf32>
    %377 = vector.extract_strided_slice %338 {offsets = [16, 0], sizes = [8, 64], strides = [1, 1]} : vector<64x64xf32> to vector<8x64xf32>
    %cst_87 = arith.constant dense<0.000000e+00> : vector<8x64xf32>
    %378 = tpu.matmul %376, %333, %cst_87 {dimension_numbers = #tpu.dot_dimension_numbers<[1], [0], [0], [1], [0, 0, 1, 1], [], []>} : vector<8x16xf32>, vector<16x64xf32>, vector<8x64xf32> -> vector<8x64xf32>
    %379 = arith.addf %377, %378 : vector<8x64xf32>
    %380 = arith.negf %379 : vector<8x64xf32>
    %381 = math.exp %380 : vector<8x64xf32>
    %cst_88 = arith.constant 1.000000e+00 : f32
    %382 = vector.broadcast %cst_88 : f32 to vector<8x64xf32>
    %383 = arith.addf %382, %381 : vector<8x64xf32>
    %384 = arith.divf %382, %383 : vector<8x64xf32>
    %385 = math.tanh %379 : vector<8x64xf32>
    %386 = vector.extract_strided_slice %384 {offsets = [0, 16], sizes = [8, 16], strides = [1, 1]} : vector<8x64xf32> to vector<8x16xf32>
    %387 = arith.mulf %386, %373 : vector<8x16xf32>
    %388 = vector.extract_strided_slice %384 {offsets = [0, 0], sizes = [8, 16], strides = [1, 1]} : vector<8x64xf32> to vector<8x16xf32>
    %389 = vector.extract_strided_slice %385 {offsets = [0, 32], sizes = [8, 16], strides = [1, 1]} : vector<8x64xf32> to vector<8x16xf32>
    %390 = arith.mulf %388, %389 : vector<8x16xf32>
    %391 = arith.addf %387, %390 : vector<8x16xf32>
    %392 = vector.extract_strided_slice %384 {offsets = [0, 48], sizes = [8, 16], strides = [1, 1]} : vector<8x64xf32> to vector<8x16xf32>
    %393 = math.tanh %391 : vector<8x16xf32>
    %394 = arith.mulf %392, %393 : vector<8x16xf32>
    %395 = vector.extract_strided_slice %338 {offsets = [24, 0], sizes = [8, 64], strides = [1, 1]} : vector<64x64xf32> to vector<8x64xf32>
    %cst_89 = arith.constant dense<0.000000e+00> : vector<8x64xf32>
    %396 = tpu.matmul %394, %333, %cst_89 {dimension_numbers = #tpu.dot_dimension_numbers<[1], [0], [0], [1], [0, 0, 1, 1], [], []>} : vector<8x16xf32>, vector<16x64xf32>, vector<8x64xf32> -> vector<8x64xf32>
    %397 = arith.addf %395, %396 : vector<8x64xf32>
    %398 = arith.negf %397 : vector<8x64xf32>
    %399 = math.exp %398 : vector<8x64xf32>
    %cst_90 = arith.constant 1.000000e+00 : f32
    %400 = vector.broadcast %cst_90 : f32 to vector<8x64xf32>
    %401 = arith.addf %400, %399 : vector<8x64xf32>
    %402 = arith.divf %400, %401 : vector<8x64xf32>
    %403 = math.tanh %397 : vector<8x64xf32>
    %404 = vector.extract_strided_slice %402 {offsets = [0, 16], sizes = [8, 16], strides = [1, 1]} : vector<8x64xf32> to vector<8x16xf32>
    %405 = arith.mulf %404, %391 : vector<8x16xf32>
    %406 = vector.extract_strided_slice %402 {offsets = [0, 0], sizes = [8, 16], strides = [1, 1]} : vector<8x64xf32> to vector<8x16xf32>
    %407 = vector.extract_strided_slice %403 {offsets = [0, 32], sizes = [8, 16], strides = [1, 1]} : vector<8x64xf32> to vector<8x16xf32>
    %408 = arith.mulf %406, %407 : vector<8x16xf32>
    %409 = arith.addf %405, %408 : vector<8x16xf32>
    %410 = vector.extract_strided_slice %402 {offsets = [0, 48], sizes = [8, 16], strides = [1, 1]} : vector<8x64xf32> to vector<8x16xf32>
    %411 = math.tanh %409 : vector<8x16xf32>
    %412 = arith.mulf %410, %411 : vector<8x16xf32>
    %413 = vector.extract_strided_slice %338 {offsets = [32, 0], sizes = [8, 64], strides = [1, 1]} : vector<64x64xf32> to vector<8x64xf32>
    %cst_91 = arith.constant dense<0.000000e+00> : vector<8x64xf32>
    %414 = tpu.matmul %412, %333, %cst_91 {dimension_numbers = #tpu.dot_dimension_numbers<[1], [0], [0], [1], [0, 0, 1, 1], [], []>} : vector<8x16xf32>, vector<16x64xf32>, vector<8x64xf32> -> vector<8x64xf32>
    %415 = arith.addf %413, %414 : vector<8x64xf32>
    %416 = arith.negf %415 : vector<8x64xf32>
    %417 = math.exp %416 : vector<8x64xf32>
    %cst_92 = arith.constant 1.000000e+00 : f32
    %418 = vector.broadcast %cst_92 : f32 to vector<8x64xf32>
    %419 = arith.addf %418, %417 : vector<8x64xf32>
    %420 = arith.divf %418, %419 : vector<8x64xf32>
    %421 = math.tanh %415 : vector<8x64xf32>
    %422 = vector.extract_strided_slice %420 {offsets = [0, 16], sizes = [8, 16], strides = [1, 1]} : vector<8x64xf32> to vector<8x16xf32>
    %423 = arith.mulf %422, %409 : vector<8x16xf32>
    %424 = vector.extract_strided_slice %420 {offsets = [0, 0], sizes = [8, 16], strides = [1, 1]} : vector<8x64xf32> to vector<8x16xf32>
    %425 = vector.extract_strided_slice %421 {offsets = [0, 32], sizes = [8, 16], strides = [1, 1]} : vector<8x64xf32> to vector<8x16xf32>
    %426 = arith.mulf %424, %425 : vector<8x16xf32>
    %427 = arith.addf %423, %426 : vector<8x16xf32>
    %428 = vector.extract_strided_slice %420 {offsets = [0, 48], sizes = [8, 16], strides = [1, 1]} : vector<8x64xf32> to vector<8x16xf32>
    %429 = math.tanh %427 : vector<8x16xf32>
    %430 = arith.mulf %428, %429 : vector<8x16xf32>
    %431 = vector.extract_strided_slice %338 {offsets = [40, 0], sizes = [8, 64], strides = [1, 1]} : vector<64x64xf32> to vector<8x64xf32>
    %cst_93 = arith.constant dense<0.000000e+00> : vector<8x64xf32>
    %432 = tpu.matmul %430, %333, %cst_93 {dimension_numbers = #tpu.dot_dimension_numbers<[1], [0], [0], [1], [0, 0, 1, 1], [], []>} : vector<8x16xf32>, vector<16x64xf32>, vector<8x64xf32> -> vector<8x64xf32>
    %433 = arith.addf %431, %432 : vector<8x64xf32>
    %434 = arith.negf %433 : vector<8x64xf32>
    %435 = math.exp %434 : vector<8x64xf32>
    %cst_94 = arith.constant 1.000000e+00 : f32
    %436 = vector.broadcast %cst_94 : f32 to vector<8x64xf32>
    %437 = arith.addf %436, %435 : vector<8x64xf32>
    %438 = arith.divf %436, %437 : vector<8x64xf32>
    %439 = math.tanh %433 : vector<8x64xf32>
    %440 = vector.extract_strided_slice %438 {offsets = [0, 16], sizes = [8, 16], strides = [1, 1]} : vector<8x64xf32> to vector<8x16xf32>
    %441 = arith.mulf %440, %427 : vector<8x16xf32>
    %442 = vector.extract_strided_slice %438 {offsets = [0, 0], sizes = [8, 16], strides = [1, 1]} : vector<8x64xf32> to vector<8x16xf32>
    %443 = vector.extract_strided_slice %439 {offsets = [0, 32], sizes = [8, 16], strides = [1, 1]} : vector<8x64xf32> to vector<8x16xf32>
    %444 = arith.mulf %442, %443 : vector<8x16xf32>
    %445 = arith.addf %441, %444 : vector<8x16xf32>
    %446 = vector.extract_strided_slice %438 {offsets = [0, 48], sizes = [8, 16], strides = [1, 1]} : vector<8x64xf32> to vector<8x16xf32>
    %447 = math.tanh %445 : vector<8x16xf32>
    %448 = arith.mulf %446, %447 : vector<8x16xf32>
    %449 = vector.extract_strided_slice %338 {offsets = [48, 0], sizes = [8, 64], strides = [1, 1]} : vector<64x64xf32> to vector<8x64xf32>
    %cst_95 = arith.constant dense<0.000000e+00> : vector<8x64xf32>
    %450 = tpu.matmul %448, %333, %cst_95 {dimension_numbers = #tpu.dot_dimension_numbers<[1], [0], [0], [1], [0, 0, 1, 1], [], []>} : vector<8x16xf32>, vector<16x64xf32>, vector<8x64xf32> -> vector<8x64xf32>
    %451 = arith.addf %449, %450 : vector<8x64xf32>
    %452 = arith.negf %451 : vector<8x64xf32>
    %453 = math.exp %452 : vector<8x64xf32>
    %cst_96 = arith.constant 1.000000e+00 : f32
    %454 = vector.broadcast %cst_96 : f32 to vector<8x64xf32>
    %455 = arith.addf %454, %453 : vector<8x64xf32>
    %456 = arith.divf %454, %455 : vector<8x64xf32>
    %457 = math.tanh %451 : vector<8x64xf32>
    %458 = vector.extract_strided_slice %456 {offsets = [0, 16], sizes = [8, 16], strides = [1, 1]} : vector<8x64xf32> to vector<8x16xf32>
    %459 = arith.mulf %458, %445 : vector<8x16xf32>
    %460 = vector.extract_strided_slice %456 {offsets = [0, 0], sizes = [8, 16], strides = [1, 1]} : vector<8x64xf32> to vector<8x16xf32>
    %461 = vector.extract_strided_slice %457 {offsets = [0, 32], sizes = [8, 16], strides = [1, 1]} : vector<8x64xf32> to vector<8x16xf32>
    %462 = arith.mulf %460, %461 : vector<8x16xf32>
    %463 = arith.addf %459, %462 : vector<8x16xf32>
    %464 = vector.extract_strided_slice %456 {offsets = [0, 48], sizes = [8, 16], strides = [1, 1]} : vector<8x64xf32> to vector<8x16xf32>
    %465 = math.tanh %463 : vector<8x16xf32>
    %466 = arith.mulf %464, %465 : vector<8x16xf32>
    %467 = vector.extract_strided_slice %338 {offsets = [56, 0], sizes = [8, 64], strides = [1, 1]} : vector<64x64xf32> to vector<8x64xf32>
    %cst_97 = arith.constant dense<0.000000e+00> : vector<8x64xf32>
    %468 = tpu.matmul %466, %333, %cst_97 {dimension_numbers = #tpu.dot_dimension_numbers<[1], [0], [0], [1], [0, 0, 1, 1], [], []>} : vector<8x16xf32>, vector<16x64xf32>, vector<8x64xf32> -> vector<8x64xf32>
    %469 = arith.addf %467, %468 : vector<8x64xf32>
    %470 = arith.negf %469 : vector<8x64xf32>
    %471 = math.exp %470 : vector<8x64xf32>
    %cst_98 = arith.constant 1.000000e+00 : f32
    %472 = vector.broadcast %cst_98 : f32 to vector<8x64xf32>
    %473 = arith.addf %472, %471 : vector<8x64xf32>
    %474 = arith.divf %472, %473 : vector<8x64xf32>
    %475 = math.tanh %469 : vector<8x64xf32>
    %476 = vector.extract_strided_slice %474 {offsets = [0, 16], sizes = [8, 16], strides = [1, 1]} : vector<8x64xf32> to vector<8x16xf32>
    %477 = arith.mulf %476, %463 : vector<8x16xf32>
    %478 = vector.extract_strided_slice %474 {offsets = [0, 0], sizes = [8, 16], strides = [1, 1]} : vector<8x64xf32> to vector<8x16xf32>
    %479 = vector.extract_strided_slice %475 {offsets = [0, 32], sizes = [8, 16], strides = [1, 1]} : vector<8x64xf32> to vector<8x16xf32>
    %480 = arith.mulf %478, %479 : vector<8x16xf32>
    %481 = arith.addf %477, %480 : vector<8x16xf32>
    %482 = vector.extract_strided_slice %474 {offsets = [0, 48], sizes = [8, 16], strides = [1, 1]} : vector<8x64xf32> to vector<8x16xf32>
    %483 = math.tanh %481 : vector<8x16xf32>
    %484 = arith.mulf %482, %483 : vector<8x16xf32>
    %485 = tpu.concatenate %358, %376, %394, %412, %430, %448, %466, %484 in 0 : vector<8x16xf32>, vector<8x16xf32>, vector<8x16xf32>, vector<8x16xf32>, vector<8x16xf32>, vector<8x16xf32>, vector<8x16xf32>, vector<8x16xf32> -> vector<64x16xf32>
    %cst_99 = arith.constant 0.000000e+00 : f32
    %486 = vector.broadcast %cst_99 : f32 to vector<16x32xf32>
    %cst_100 = arith.constant 0.000000e+00 : f32
    %487 = vector.broadcast %cst_100 : f32 to vector<16x16xf32>
    %488 = tpu.concatenate %486, %331, %486 in 0 : vector<16x32xf32>, vector<64x32xf32>, vector<16x32xf32> -> vector<96x32xf32>
    %c0_101 = arith.constant 0 : index
    %c0_102 = arith.constant 0 : index
    %489 = vector.load %arg26[%c0_101, %c0_102] : memref<96x32xf32, #tpu.memory_space<vmem>>, vector<96x32xf32>
    tpu.vector_store %arg26[%c0_101, %c0_102], %488 {strides = array<i32>} : memref<96x32xf32, #tpu.memory_space<vmem>>, vector<96x32xf32>,
    %490 = tpu.concatenate %487, %485, %487 in 0 : vector<16x16xf32>, vector<64x16xf32>, vector<16x16xf32> -> vector<96x16xf32>
    %c0_103 = arith.constant 0 : index
    %c0_104 = arith.constant 0 : index
    %491 = vector.load %arg27[%c0_103, %c0_104] : memref<96x16xf32, #tpu.memory_space<vmem>>, vector<96x16xf32>
    tpu.vector_store %arg27[%c0_103, %c0_104], %490 {strides = array<i32>} : memref<96x16xf32, #tpu.memory_space<vmem>>, vector<96x16xf32>,
    %c0_105 = arith.constant 0 : index
    %c0_106 = arith.constant 0 : index
    %c0_107 = arith.constant 0 : index
    %492 = vector.load %arg15[%c0_105, %c0_106, %c0_107] : memref<5x48x32xf32, #tpu.memory_space<vmem>>, vector<5x48x32xf32>
    %c0_108 = arith.constant 0 : index
    %c0_109 = arith.constant 0 : index
    %493 = vector.load %arg16[%c0_108, %c0_109] : memref<1x32xf32, #tpu.memory_space<vmem>>, vector<1x32xf32>
    %c0_110 = arith.constant 0 : index
    %c0_111 = arith.constant 0 : index
    %494 = vector.load %arg26[%c0_110, %c0_111] : memref<96x32xf32, #tpu.memory_space<vmem>>, vector<64x32xf32>
    %495 = vector.extract_strided_slice %492 {offsets = [0, 0, 0], sizes = [1, 32, 32], strides = [1, 1, 1]} : vector<5x48x32xf32> to vector<1x32x32xf32>
    %496 = vector.shape_cast %495 : vector<1x32x32xf32> to vector<32x32xf32>
    %cst_112 = arith.constant dense<0.000000e+00> : vector<64x32xf32>
    %497 = tpu.matmul %494, %496, %cst_112 {dimension_numbers = #tpu.dot_dimension_numbers<[1], [0], [0], [1], [0, 0, 1, 1], [], []>} : vector<64x32xf32>, vector<32x32xf32>, vector<64x32xf32> -> vector<64x32xf32>
    %498 = vector.broadcast %493 : vector<1x32xf32> to vector<64x32xf32>
    %499 = arith.addf %498, %497 : vector<64x32xf32>
    %c0_113 = arith.constant 0 : index
    %c0_114 = arith.constant 0 : index
    %500 = vector.load %arg27[%c0_113, %c0_114] : memref<96x16xf32, #tpu.memory_space<vmem>>, vector<64x16xf32>
    %501 = vector.extract_strided_slice %492 {offsets = [0, 32, 0], sizes = [1, 16, 32], strides = [1, 1, 1]} : vector<5x48x32xf32> to vector<1x16x32xf32>
    %502 = vector.shape_cast %501 : vector<1x16x32xf32> to vector<16x32xf32>
    %cst_115 = arith.constant dense<0.000000e+00> : vector<64x32xf32>
    %503 = tpu.matmul %500, %502, %cst_115 {dimension_numbers = #tpu.dot_dimension_numbers<[1], [0], [0], [1], [0, 0, 1, 1], [], []>} : vector<64x16xf32>, vector<16x32xf32>, vector<64x32xf32> -> vector<64x32xf32>
    %504 = arith.addf %499, %503 : vector<64x32xf32>
    %c8 = arith.constant 8 : index
    %c0_116 = arith.constant 0 : index
    %505 = vector.load %arg26[%c8, %c0_116] : memref<96x32xf32, #tpu.memory_space<vmem>>, vector<64x32xf32>
    %506 = vector.extract_strided_slice %492 {offsets = [1, 0, 0], sizes = [1, 32, 32], strides = [1, 1, 1]} : vector<5x48x32xf32> to vector<1x32x32xf32>
    %507 = vector.shape_cast %506 : vector<1x32x32xf32> to vector<32x32xf32>
    %cst_117 = arith.constant dense<0.000000e+00> : vector<64x32xf32>
    %508 = tpu.matmul %505, %507, %cst_117 {dimension_numbers = #tpu.dot_dimension_numbers<[1], [0], [0], [1], [0, 0, 1, 1], [], []>} : vector<64x32xf32>, vector<32x32xf32>, vector<64x32xf32> -> vector<64x32xf32>
    %509 = arith.addf %504, %508 : vector<64x32xf32>
    %c8_118 = arith.constant 8 : index
    %c0_119 = arith.constant 0 : index
    %510 = vector.load %arg27[%c8_118, %c0_119] : memref<96x16xf32, #tpu.memory_space<vmem>>, vector<64x16xf32>
    %511 = vector.extract_strided_slice %492 {offsets = [1, 32, 0], sizes = [1, 16, 32], strides = [1, 1, 1]} : vector<5x48x32xf32> to vector<1x16x32xf32>
    %512 = vector.shape_cast %511 : vector<1x16x32xf32> to vector<16x32xf32>
    %cst_120 = arith.constant dense<0.000000e+00> : vector<64x32xf32>
    %513 = tpu.matmul %510, %512, %cst_120 {dimension_numbers = #tpu.dot_dimension_numbers<[1], [0], [0], [1], [0, 0, 1, 1], [], []>} : vector<64x16xf32>, vector<16x32xf32>, vector<64x32xf32> -> vector<64x32xf32>
    %514 = arith.addf %509, %513 : vector<64x32xf32>
    %c16_121 = arith.constant 16 : index
    %c0_122 = arith.constant 0 : index
    %515 = vector.load %arg26[%c16_121, %c0_122] : memref<96x32xf32, #tpu.memory_space<vmem>>, vector<64x32xf32>
    %516 = vector.extract_strided_slice %492 {offsets = [2, 0, 0], sizes = [1, 32, 32], strides = [1, 1, 1]} : vector<5x48x32xf32> to vector<1x32x32xf32>
    %517 = vector.shape_cast %516 : vector<1x32x32xf32> to vector<32x32xf32>
    %cst_123 = arith.constant dense<0.000000e+00> : vector<64x32xf32>
    %518 = tpu.matmul %515, %517, %cst_123 {dimension_numbers = #tpu.dot_dimension_numbers<[1], [0], [0], [1], [0, 0, 1, 1], [], []>} : vector<64x32xf32>, vector<32x32xf32>, vector<64x32xf32> -> vector<64x32xf32>
    %519 = arith.addf %514, %518 : vector<64x32xf32>
    %c16_124 = arith.constant 16 : index
    %c0_125 = arith.constant 0 : index
    %520 = vector.load %arg27[%c16_124, %c0_125] : memref<96x16xf32, #tpu.memory_space<vmem>>, vector<64x16xf32>
    %521 = vector.extract_strided_slice %492 {offsets = [2, 32, 0], sizes = [1, 16, 32], strides = [1, 1, 1]} : vector<5x48x32xf32> to vector<1x16x32xf32>
    %522 = vector.shape_cast %521 : vector<1x16x32xf32> to vector<16x32xf32>
    %cst_126 = arith.constant dense<0.000000e+00> : vector<64x32xf32>
    %523 = tpu.matmul %520, %522, %cst_126 {dimension_numbers = #tpu.dot_dimension_numbers<[1], [0], [0], [1], [0, 0, 1, 1], [], []>} : vector<64x16xf32>, vector<16x32xf32>, vector<64x32xf32> -> vector<64x32xf32>
    %524 = arith.addf %519, %523 : vector<64x32xf32>
    %c24 = arith.constant 24 : index
    %c0_127 = arith.constant 0 : index
    %525 = vector.load %arg26[%c24, %c0_127] : memref<96x32xf32, #tpu.memory_space<vmem>>, vector<64x32xf32>
    %526 = vector.extract_strided_slice %492 {offsets = [3, 0, 0], sizes = [1, 32, 32], strides = [1, 1, 1]} : vector<5x48x32xf32> to vector<1x32x32xf32>
    %527 = vector.shape_cast %526 : vector<1x32x32xf32> to vector<32x32xf32>
    %cst_128 = arith.constant dense<0.000000e+00> : vector<64x32xf32>
    %528 = tpu.matmul %525, %527, %cst_128 {dimension_numbers = #tpu.dot_dimension_numbers<[1], [0], [0], [1], [0, 0, 1, 1], [], []>} : vector<64x32xf32>, vector<32x32xf32>, vector<64x32xf32> -> vector<64x32xf32>
    %529 = arith.addf %524, %528 : vector<64x32xf32>
    %c24_129 = arith.constant 24 : index
    %c0_130 = arith.constant 0 : index
    %530 = vector.load %arg27[%c24_129, %c0_130] : memref<96x16xf32, #tpu.memory_space<vmem>>, vector<64x16xf32>
    %531 = vector.extract_strided_slice %492 {offsets = [3, 32, 0], sizes = [1, 16, 32], strides = [1, 1, 1]} : vector<5x48x32xf32> to vector<1x16x32xf32>
    %532 = vector.shape_cast %531 : vector<1x16x32xf32> to vector<16x32xf32>
    %cst_131 = arith.constant dense<0.000000e+00> : vector<64x32xf32>
    %533 = tpu.matmul %530, %532, %cst_131 {dimension_numbers = #tpu.dot_dimension_numbers<[1], [0], [0], [1], [0, 0, 1, 1], [], []>} : vector<64x16xf32>, vector<16x32xf32>, vector<64x32xf32> -> vector<64x32xf32>
    %534 = arith.addf %529, %533 : vector<64x32xf32>
    %c32_132 = arith.constant 32 : index
    %c0_133 = arith.constant 0 : index
    %535 = vector.load %arg26[%c32_132, %c0_133] : memref<96x32xf32, #tpu.memory_space<vmem>>, vector<64x32xf32>
    %536 = vector.extract_strided_slice %492 {offsets = [4, 0, 0], sizes = [1, 32, 32], strides = [1, 1, 1]} : vector<5x48x32xf32> to vector<1x32x32xf32>
    %537 = vector.shape_cast %536 : vector<1x32x32xf32> to vector<32x32xf32>
    %cst_134 = arith.constant dense<0.000000e+00> : vector<64x32xf32>
    %538 = tpu.matmul %535, %537, %cst_134 {dimension_numbers = #tpu.dot_dimension_numbers<[1], [0], [0], [1], [0, 0, 1, 1], [], []>} : vector<64x32xf32>, vector<32x32xf32>, vector<64x32xf32> -> vector<64x32xf32>
    %539 = arith.addf %534, %538 : vector<64x32xf32>
    %c32_135 = arith.constant 32 : index
    %c0_136 = arith.constant 0 : index
    %540 = vector.load %arg27[%c32_135, %c0_136] : memref<96x16xf32, #tpu.memory_space<vmem>>, vector<64x16xf32>
    %541 = vector.extract_strided_slice %492 {offsets = [4, 32, 0], sizes = [1, 16, 32], strides = [1, 1, 1]} : vector<5x48x32xf32> to vector<1x16x32xf32>
    %542 = vector.shape_cast %541 : vector<1x16x32xf32> to vector<16x32xf32>
    %cst_137 = arith.constant dense<0.000000e+00> : vector<64x32xf32>
    %543 = tpu.matmul %540, %542, %cst_137 {dimension_numbers = #tpu.dot_dimension_numbers<[1], [0], [0], [1], [0, 0, 1, 1], [], []>} : vector<64x16xf32>, vector<16x32xf32>, vector<64x32xf32> -> vector<64x32xf32>
    %544 = arith.addf %539, %543 : vector<64x32xf32>
    %c0_138 = arith.constant 0 : index
    %c0_139 = arith.constant 0 : index
    %545 = vector.load %arg17[%c0_138, %c0_139] : memref<1x32xf32, #tpu.memory_space<vmem>>, vector<1x32xf32>
    %546 = vector.broadcast %545 : vector<1x32xf32> to vector<64x32xf32>
    %547 = arith.mulf %544, %546 : vector<64x32xf32>
    %c0_140 = arith.constant 0 : index
    %c0_141 = arith.constant 0 : index
    %548 = vector.load %arg18[%c0_140, %c0_141] : memref<1x32xf32, #tpu.memory_space<vmem>>, vector<1x32xf32>
    %549 = vector.broadcast %548 : vector<1x32xf32> to vector<64x32xf32>
    %550 = arith.addf %547, %549 : vector<64x32xf32>
    %cst_142 = arith.constant 2.000000e-01 : f32
    %551 = vector.broadcast %cst_142 : f32 to vector<64x32xf32>
    %552 = arith.mulf %551, %550 : vector<64x32xf32>
    %553 = arith.maximumf %550, %552 : vector<64x32xf32>
    %cst_143 = arith.constant 0.000000e+00 : f32
    %554 = vector.broadcast %cst_143 : f32 to vector<8x32xf32>
    %555 = tpu.concatenate %554, %553, %554 in 0 : vector<8x32xf32>, vector<64x32xf32>, vector<8x32xf32> -> vector<80x32xf32>
    %c0_144 = arith.constant 0 : index
    %c0_145 = arith.constant 0 : index
    %556 = vector.load %arg28[%c0_144, %c0_145] : memref<80x32xf32, #tpu.memory_space<vmem>>, vector<80x32xf32>
    tpu.vector_store %arg28[%c0_144, %c0_145], %555 {strides = array<i32>} : memref<80x32xf32, #tpu.memory_space<vmem>>, vector<80x32xf32>,
    %c0_146 = arith.constant 0 : index
    %c0_147 = arith.constant 0 : index
    %c0_148 = arith.constant 0 : index
    %557 = vector.load %arg19[%c0_146, %c0_147, %c0_148] : memref<3x32x16xf32, #tpu.memory_space<vmem>>, vector<3x32x16xf32>
    %c0_149 = arith.constant 0 : index
    %c0_150 = arith.constant 0 : index
    %558 = vector.load %arg20[%c0_149, %c0_150] : memref<1x16xf32, #tpu.memory_space<vmem>>, vector<1x16xf32>
    %c0_151 = arith.constant 0 : index
    %c0_152 = arith.constant 0 : index
    %559 = vector.load %arg28[%c0_151, %c0_152] : memref<80x32xf32, #tpu.memory_space<vmem>>, vector<64x32xf32>
    %560 = vector.extract_strided_slice %557 {offsets = [0, 0, 0], sizes = [1, 32, 16], strides = [1, 1, 1]} : vector<3x32x16xf32> to vector<1x32x16xf32>
    %561 = vector.shape_cast %560 : vector<1x32x16xf32> to vector<32x16xf32>
    %cst_153 = arith.constant dense<0.000000e+00> : vector<64x16xf32>
    %562 = tpu.matmul %559, %561, %cst_153 {dimension_numbers = #tpu.dot_dimension_numbers<[1], [0], [0], [1], [0, 0, 1, 1], [], []>} : vector<64x32xf32>, vector<32x16xf32>, vector<64x16xf32> -> vector<64x16xf32>
    %563 = vector.broadcast %558 : vector<1x16xf32> to vector<64x16xf32>
    %564 = arith.addf %563, %562 : vector<64x16xf32>
    %c8_154 = arith.constant 8 : index
    %c0_155 = arith.constant 0 : index
    %565 = vector.load %arg28[%c8_154, %c0_155] : memref<80x32xf32, #tpu.memory_space<vmem>>, vector<64x32xf32>
    %566 = vector.extract_strided_slice %557 {offsets = [1, 0, 0], sizes = [1, 32, 16], strides = [1, 1, 1]} : vector<3x32x16xf32> to vector<1x32x16xf32>
    %567 = vector.shape_cast %566 : vector<1x32x16xf32> to vector<32x16xf32>
    %cst_156 = arith.constant dense<0.000000e+00> : vector<64x16xf32>
    %568 = tpu.matmul %565, %567, %cst_156 {dimension_numbers = #tpu.dot_dimension_numbers<[1], [0], [0], [1], [0, 0, 1, 1], [], []>} : vector<64x32xf32>, vector<32x16xf32>, vector<64x16xf32> -> vector<64x16xf32>
    %569 = arith.addf %564, %568 : vector<64x16xf32>
    %c16_157 = arith.constant 16 : index
    %c0_158 = arith.constant 0 : index
    %570 = vector.load %arg28[%c16_157, %c0_158] : memref<80x32xf32, #tpu.memory_space<vmem>>, vector<64x32xf32>
    %571 = vector.extract_strided_slice %557 {offsets = [2, 0, 0], sizes = [1, 32, 16], strides = [1, 1, 1]} : vector<3x32x16xf32> to vector<1x32x16xf32>
    %572 = vector.shape_cast %571 : vector<1x32x16xf32> to vector<32x16xf32>
    %cst_159 = arith.constant dense<0.000000e+00> : vector<64x16xf32>
    %573 = tpu.matmul %570, %572, %cst_159 {dimension_numbers = #tpu.dot_dimension_numbers<[1], [0], [0], [1], [0, 0, 1, 1], [], []>} : vector<64x32xf32>, vector<32x16xf32>, vector<64x16xf32> -> vector<64x16xf32>
    %574 = arith.addf %569, %573 : vector<64x16xf32>
    %c0_160 = arith.constant 0 : index
    %c0_161 = arith.constant 0 : index
    %575 = vector.load %arg21[%c0_160, %c0_161] : memref<1x16xf32, #tpu.memory_space<vmem>>, vector<1x16xf32>
    %576 = vector.broadcast %575 : vector<1x16xf32> to vector<64x16xf32>
    %577 = arith.mulf %574, %576 : vector<64x16xf32>
    %c0_162 = arith.constant 0 : index
    %c0_163 = arith.constant 0 : index
    %578 = vector.load %arg22[%c0_162, %c0_163] : memref<1x16xf32, #tpu.memory_space<vmem>>, vector<1x16xf32>
    %579 = vector.broadcast %578 : vector<1x16xf32> to vector<64x16xf32>
    %580 = arith.addf %577, %579 : vector<64x16xf32>
    %cst_164 = arith.constant 2.000000e-01 : f32
    %581 = vector.broadcast %cst_164 : f32 to vector<64x16xf32>
    %582 = arith.mulf %581, %580 : vector<64x16xf32>
    %583 = arith.maximumf %580, %582 : vector<64x16xf32>
    %cst_165 = arith.constant 0.000000e+00 : f32
    %584 = vector.broadcast %cst_165 : f32 to vector<8x16xf32>
    %585 = tpu.concatenate %584, %583, %584 in 0 : vector<8x16xf32>, vector<64x16xf32>, vector<8x16xf32> -> vector<80x16xf32>
    %c0_166 = arith.constant 0 : index
    %c0_167 = arith.constant 0 : index
    %586 = vector.load %arg29[%c0_166, %c0_167] : memref<80x16xf32, #tpu.memory_space<vmem>>, vector<80x16xf32>
    tpu.vector_store %arg29[%c0_166, %c0_167], %585 {strides = array<i32>} : memref<80x16xf32, #tpu.memory_space<vmem>>, vector<80x16xf32>,
    %c0_168 = arith.constant 0 : index
    %c0_169 = arith.constant 0 : index
    %587 = vector.load %arg23[%c0_168, %c0_169] : memref<3x16xf32, #tpu.memory_space<vmem>>, vector<3x16xf32>
    %c0_170 = arith.constant 0 : index
    %c0_171 = arith.constant 0 : index
    %588 = vector.load %arg29[%c0_170, %c0_171] : memref<80x16xf32, #tpu.memory_space<vmem>>, vector<64x16xf32>
    %589 = vector.extract_strided_slice %587 {offsets = [0, 0], sizes = [1, 16], strides = [1, 1]} : vector<3x16xf32> to vector<1x16xf32>
    %590 = vector.broadcast %589 : vector<1x16xf32> to vector<64x16xf32>
    %591 = arith.mulf %588, %590 : vector<64x16xf32>
    %c8_172 = arith.constant 8 : index
    %c0_173 = arith.constant 0 : index
    %592 = vector.load %arg29[%c8_172, %c0_173] : memref<80x16xf32, #tpu.memory_space<vmem>>, vector<64x16xf32>
    %593 = vector.extract_strided_slice %587 {offsets = [1, 0], sizes = [1, 16], strides = [1, 1]} : vector<3x16xf32> to vector<1x16xf32>
    %594 = vector.broadcast %593 : vector<1x16xf32> to vector<64x16xf32>
    %595 = arith.mulf %592, %594 : vector<64x16xf32>
    %596 = arith.addf %591, %595 : vector<64x16xf32>
    %c16_174 = arith.constant 16 : index
    %c0_175 = arith.constant 0 : index
    %597 = vector.load %arg29[%c16_174, %c0_175] : memref<80x16xf32, #tpu.memory_space<vmem>>, vector<64x16xf32>
    %598 = vector.extract_strided_slice %587 {offsets = [2, 0], sizes = [1, 16], strides = [1, 1]} : vector<3x16xf32> to vector<1x16xf32>
    %599 = vector.broadcast %598 : vector<1x16xf32> to vector<64x16xf32>
    %600 = arith.mulf %597, %599 : vector<64x16xf32>
    %601 = arith.addf %596, %600 : vector<64x16xf32>
    %cst_176 = arith.constant dense<0.000000e+00> : vector<64xf32>
    %602 = vector.multi_reduction <add>, %601, %cst_176 [1] : vector<64x16xf32> to vector<64xf32>
    %603 = vector.shape_cast %602 : vector<64xf32> to vector<64x1xf32>
    %c0_177 = arith.constant 0 : index
    %c0_178 = arith.constant 0 : index
    %604 = vector.load %arg24[%c0_177, %c0_178] : memref<1x1xf32, #tpu.memory_space<vmem>>, vector<1x1xf32>
    %605 = vector.broadcast %604 : vector<1x1xf32> to vector<64x1xf32>
    %606 = arith.addf %603, %605 : vector<64x1xf32>
    %cst_179 = arith.constant 2.000000e-01 : f32
    %607 = vector.broadcast %cst_179 : f32 to vector<64x1xf32>
    %608 = arith.mulf %607, %606 : vector<64x1xf32>
    %609 = arith.maximumf %606, %608 : vector<64x1xf32>
    %c0_180 = arith.constant 0 : index
    %c0_181 = arith.constant 0 : index
    %610 = vector.load %arg25[%c0_180, %c0_181] : memref<64x1xf32, #tpu.memory_space<vmem>>, vector<64x1xf32>
    tpu.vector_store %arg25[%c0_180, %c0_181], %609 {strides = array<i32>} : memref<64x1xf32, #tpu.memory_space<vmem>>, vector<64x1xf32>,
    return
  }
}

</mosaic_0001>

<llo_original>
// kernel: forward.1
$region0: #{forward.1}
  #allocation0 [shape = 'u32[]', space=smem, size = 0x4, offset = 0x4, fixed_abs, tag = 'smem constant byte address 0x4 - core index']
  #allocation1 [shape = 'u32[144,128]{1,0:T(1,128)}', space=vmem, size = 0x12000, scoped, tag = 'internal scratch']
  #allocation2 [shape = 'f32[96,32]{1,0:T(8,128)}', space=vmem, size = 0xc000, scoped, tag = 'scratch operand']
  #allocation3 [shape = 'f32[96,16]{1,0:T(8,128)}', space=vmem, size = 0xc000, scoped, tag = 'scratch operand']
  #allocation4 [shape = 'f32[80,32]{1,0:T(8,128)}', space=vmem, size = 0xa000, scoped, tag = 'scratch operand']
  #allocation5 [shape = 'f32[80,16]{1,0:T(8,128)}', space=vmem, size = 0xa000, scoped, tag = 'scratch operand']
  #allocation6 [shape = 'f32[1,1]{1,0:T(1,128)S(1)}', space=vmem, size = 0x200, scoped, tag = 'scoped memory for forward.1']
  %s0 = inlined_call_operand.vmem [shape: f32[8,32], index: 0, kind: input, shape index: {}]
  %s1 = inlined_call_operand.vmem [shape: f32[8,16], index: 1, kind: input, shape index: {}]
  %s2 = inlined_call_operand.vmem [shape: f32[48,32], index: 2, kind: input, shape index: {}]
  %s3 = inlined_call_operand.vmem [shape: f32[1,32], index: 3, kind: input, shape index: {}]
  %s4 = inlined_call_operand.vmem [shape: f32[1,32], index: 4, kind: input, shape index: {}]
  %s5 = inlined_call_operand.vmem [shape: f32[1,32], index: 5, kind: input, shape index: {}]
  %s6 = inlined_call_operand.vmem [shape: f32[64,128], index: 6, kind: input, shape index: {}]
  %s7 = inlined_call_operand.vmem [shape: f32[32,128], index: 7, kind: input, shape index: {}]
  %s8 = inlined_call_operand.vmem [shape: f32[1,128], index: 8, kind: input, shape index: {}]
  %s9 = inlined_call_operand.vmem [shape: f32[64,64], index: 9, kind: input, shape index: {}]
  %s10 = inlined_call_operand.vmem [shape: f32[16,64], index: 10, kind: input, shape index: {}]
  %s11 = inlined_call_operand.vmem [shape: f32[1,64], index: 11, kind: input, shape index: {}]
  %s12 = inlined_call_operand.vmem [shape: f32[16,64], index: 12, kind: input, shape index: {}]
  %s13 = inlined_call_operand.vmem [shape: f32[16,64], index: 13, kind: input, shape index: {}]
  %s14 = inlined_call_operand.vmem [shape: f32[1,64], index: 14, kind: input, shape index: {}]
  %s15 = inlined_call_operand.vmem [shape: f32[5,48,32], index: 15, kind: input, shape index: {}]
  %s16 = inlined_call_operand.vmem [shape: f32[1,32], index: 16, kind: input, shape index: {}]
  %s17 = inlined_call_operand.vmem [shape: f32[1,32], index: 17, kind: input, shape index: {}]
  %s18 = inlined_call_operand.vmem [shape: f32[1,32], index: 18, kind: input, shape index: {}]
  %s19 = inlined_call_operand.vmem [shape: f32[3,32,16], index: 19, kind: input, shape index: {}]
  %s20 = inlined_call_operand.vmem [shape: f32[1,16], index: 20, kind: input, shape index: {}]
  %s21 = inlined_call_operand.vmem [shape: f32[1,16], index: 21, kind: input, shape index: {}]
  %s22 = inlined_call_operand.vmem [shape: f32[1,16], index: 22, kind: input, shape index: {}]
  %s23 = inlined_call_operand.vmem [shape: f32[3,16], index: 23, kind: input, shape index: {}]
  %s24 = inlined_call_operand.<no memory space> [shape: f32[1,1], index: 24, kind: input, shape index: {}]
  %s25 = inlined_call_operand.vmem [shape: f32[64,1], index: 25, kind: output, shape index: {}]
  %s26 = sld [smem:[#allocation0]]
  $region110: #{forward.1} parent=0
    _
  %s28 = ssub.s32 1, %s26
  %s29 = scalar_select 0, %s28, %s26
  %v30 = vstv %s24
  %31 = vst [vmem:[#allocation6] sm:$0x1] %v30
  // Predicated region
  $region2: #{forward.1} parent=0 // pred_check
    _
  $region3: #{forward.1} parent=0 // pred_check_branch
    %33 = sbr.rel (0) target = $region5
  $region4: #{forward.1} parent=0 // pred_region
    _
  $region5: #{forward.1} parent=0 // pred_fallthru
    _
  // Predicated region
  $region6: #{forward.1} parent=0 // pred_check
    _
  $region7: #{forward.1} parent=0 // pred_check_branch
    %35 = sbr.rel (0) target = $region9
  $region8: #{forward.1} parent=0 // pred_region
    _
  $region9: #{forward.1} parent=0 // pred_fallthru
    _
  // Predicated region
  $region10: #{forward.1} parent=0 // pred_check
    _
  $region11: #{forward.1} parent=0 // pred_check_branch
    %37 = sbr.rel (0) target = $region13
  $region12: #{forward.1} parent=0 // pred_region
    _
  $region13: #{forward.1} parent=0 // pred_fallthru
    _
  // Predicated region
  $region14: #{forward.1} parent=0 // pred_check
    _
  $region15: #{forward.1} parent=0 // pred_check_branch
    %39 = sbr.rel (0) target = $region17
  $region16: #{forward.1} parent=0 // pred_region
    _
  $region17: #{forward.1} parent=0 // pred_fallthru
    _
  // Predicated region
  $region18: #{forward.1} parent=0 // pred_check
    _
  $region19: #{forward.1} parent=0 // pred_check_branch
    %41 = sbr.rel (0) target = $region21
  $region20: #{forward.1} parent=0 // pred_region
    _
  $region21: #{forward.1} parent=0 // pred_fallthru
    _
  // Predicated region
  $region22: #{forward.1} parent=0 // pred_check
    _
  $region23: #{forward.1} parent=0 // pred_check_branch
    %43 = sbr.rel (0) target = $region25
  $region24: #{forward.1} parent=0 // pred_region
    _
  $region25: #{forward.1} parent=0 // pred_fallthru
    _
  // Predicated region
  $region26: #{forward.1} parent=0 // pred_check
    _
  $region27: #{forward.1} parent=0 // pred_check_branch
    %45 = sbr.rel (0) target = $region29
  $region28: #{forward.1} parent=0 // pred_region
    _
  $region29: #{forward.1} parent=0 // pred_fallthru
    _
  // Predicated region
  $region30: #{forward.1} parent=0 // pred_check
    _
  $region31: #{forward.1} parent=0 // pred_check_branch
    %47 = sbr.rel (0) target = $region33
  $region32: #{forward.1} parent=0 // pred_region
    _
  $region33: #{forward.1} parent=0 // pred_fallthru
    _
  // Predicated region
  $region34: #{forward.1} parent=0 // pred_check
    _
  $region35: #{forward.1} parent=0 // pred_check_branch
    %49 = sbr.rel (0) target = $region37
  $region36: #{forward.1} parent=0 // pred_region
    _
  $region37: #{forward.1} parent=0 // pred_fallthru
    _
  // Predicated region
  $region38: #{forward.1} parent=0 // pred_check
    _
  $region39: #{forward.1} parent=0 // pred_check_branch
    %51 = sbr.rel (0) target = $region41
  $region40: #{forward.1} parent=0 // pred_region
    _
  $region41: #{forward.1} parent=0 // pred_fallthru
    _
  // Predicated region
  $region42: #{forward.1} parent=0 // pred_check
    _
  $region43: #{forward.1} parent=0 // pred_check_branch
    %53 = sbr.rel (0) target = $region45
  $region44: #{forward.1} parent=0 // pred_region
    _
  $region45: #{forward.1} parent=0 // pred_fallthru
    _
  // Predicated region
  $region46: #{forward.1} parent=0 // pred_check
    _
  $region47: #{forward.1} parent=0 // pred_check_branch
    %55 = sbr.rel (0) target = $region49
  $region48: #{forward.1} parent=0 // pred_region
    _
  $region49: #{forward.1} parent=0 // pred_fallthru
    _
  // Predicated region
  $region50: #{forward.1} parent=0 // pred_check
    _
  $region51: #{forward.1} parent=0 // pred_check_branch
    %57 = sbr.rel (0) target = $region53
  $region52: #{forward.1} parent=0 // pred_region
    _
  $region53: #{forward.1} parent=0 // pred_fallthru
    _
  // Predicated region
  $region54: #{forward.1} parent=0 // pred_check
    _
  $region55: #{forward.1} parent=0 // pred_check_branch
    %59 = sbr.rel (0) target = $region57
  $region56: #{forward.1} parent=0 // pred_region
    _
  $region57: #{forward.1} parent=0 // pred_fallthru
    _
  // Predicated region
  $region58: #{forward.1} parent=0 // pred_check
    _
  $region59: #{forward.1} parent=0 // pred_check_branch
    %61 = sbr.rel (0) target = $region61
  $region60: #{forward.1} parent=0 // pred_region
    _
  $region61: #{forward.1} parent=0 // pred_fallthru
    _
  // Predicated region
  $region62: #{forward.1} parent=0 // pred_check
    _
  $region63: #{forward.1} parent=0 // pred_check_branch
    %63 = sbr.rel (0) target = $region65
  $region64: #{forward.1} parent=0 // pred_region
    _
  $region65: #{forward.1} parent=0 // pred_fallthru
    _
  // Predicated region
  $region66: #{forward.1} parent=0 // pred_check
    _
  $region67: #{forward.1} parent=0 // pred_check_branch
    %65 = sbr.rel (0) target = $region69
  $region68: #{forward.1} parent=0 // pred_region
    _
  $region69: #{forward.1} parent=0 // pred_fallthru
    _
  // Predicated region
  $region70: #{forward.1} parent=0 // pred_check
    _
  $region71: #{forward.1} parent=0 // pred_check_branch
    %67 = sbr.rel (0) target = $region73
  $region72: #{forward.1} parent=0 // pred_region
    _
  $region73: #{forward.1} parent=0 // pred_fallthru
    _
  // Predicated region
  $region74: #{forward.1} parent=0 // pred_check
    _
  $region75: #{forward.1} parent=0 // pred_check_branch
    %69 = sbr.rel (0) target = $region77
  $region76: #{forward.1} parent=0 // pred_region
    _
  $region77: #{forward.1} parent=0 // pred_fallthru
    _
  // Predicated region
  $region78: #{forward.1} parent=0 // pred_check
    _
  $region79: #{forward.1} parent=0 // pred_check_branch
    %71 = sbr.rel (0) target = $region81
  $region80: #{forward.1} parent=0 // pred_region
    _
  $region81: #{forward.1} parent=0 // pred_fallthru
    _
  // Predicated region
  $region82: #{forward.1} parent=0 // pred_check
    _
  $region83: #{forward.1} parent=0 // pred_check_branch
    %73 = sbr.rel (0) target = $region85
  $region84: #{forward.1} parent=0 // pred_region
    _
  $region85: #{forward.1} parent=0 // pred_fallthru
    _
  // Predicated region
  $region86: #{forward.1} parent=0 // pred_check
    _
  $region87: #{forward.1} parent=0 // pred_check_branch
    %75 = sbr.rel (0) target = $region89
  $region88: #{forward.1} parent=0 // pred_region
    _
  $region89: #{forward.1} parent=0 // pred_fallthru
    _
  // Predicated region
  $region90: #{forward.1} parent=0 // pred_check
    _
  $region91: #{forward.1} parent=0 // pred_check_branch
    %77 = sbr.rel (0) target = $region93
  $region92: #{forward.1} parent=0 // pred_region
    _
  $region93: #{forward.1} parent=0 // pred_fallthru
    _
  // Predicated region
  $region94: #{forward.1} parent=0 // pred_check
    _
  $region95: #{forward.1} parent=0 // pred_check_branch
    %79 = sbr.rel (0) target = $region97
  $region96: #{forward.1} parent=0 // pred_region
    _
  $region97: #{forward.1} parent=0 // pred_fallthru
    _
  // Predicated region
  $region98: #{forward.1} parent=0 // pred_check
    _
  $region99: #{forward.1} parent=0 // pred_check_branch
    %81 = sbr.rel (0) target = $region101
  $region100: #{forward.1} parent=0 // pred_region
    _
  $region101: #{forward.1} parent=0 // pred_fallthru
    _
  %v82 = vld [vmem:[%s0] sm:$0xff]
  %v83 = vld [vmem:[%s1] sm:$0xff]
  %v84 = vld [vmem:[%s2] sm:$0xff]
  %v85 = vld [vmem:[%s2 + $0x8] sm:$0xff]
  %v86 = vld [vmem:[%s2 + $0x10] sm:$0xff]
  %v87 = vld [vmem:[%s2 + $0x18] sm:$0xff]
  %v88 = vld [vmem:[%s2 + $0x20] sm:$0xff]
  %v89 = vld [vmem:[%s2 + $0x28] sm:$0xff]
  %vm90 = vcmask 261120
  %v92 = vsel %vm90, %v82, 0
  %94 = vmatprep.subr.mxu0 0.0
  %95 = vmatpush1.msra.mxu0 %v86
  %96 = vmatprep.subr.mxu0 0.0
  %97 = vmatpush1.msra.mxu0 %v87
  %98 = vmatprep.subr.mxu0 0.0
  %99 = vmatpush1.msra.mxu0 %v88
  %100 = vmatprep.subr.mxu0 0.0
  %101 = vmatpush1.msra.mxu0 %v89
  %102 = vmatprep.subr.mxu0 0.0
  %103 = vmatpush1.msra.mxu0 0.0
  %104 = vmatprep.subr.mxu0 0.0
  %105 = vmatpush1.msra.mxu0 0.0
  %106 = vmatprep.subr.mxu0 0.0
  %107 = vmatpush1.msra.mxu0 0.0
  %108 = vmatprep.subr.mxu0 0.0
  %109 = vmatpush1.msra.mxu0 0.0
  %110 = vmatprep.subr.mxu0 0.0
  %111 = vmatpush1.msra.mxu0 0.0
  %112 = vmatprep.subr.mxu0 0.0
  %113 = vmatpush1.msra.mxu0 0.0
  %114 = vmatprep.subr.mxu0 0.0
  %115 = vmatpush1.msra.mxu0 0.0
  %116 = vmatprep.subr.mxu0 0.0
  %117 = vmatpush1.msra.mxu0 0.0
  %118 = vmatprep.subr.mxu0 0.0
  %119 = vmatpush1.msra.mxu0 0.0
  %120 = vmatprep.subr.mxu0 0.0
  %121 = vmatpush1.msra.mxu0 0.0
  %122 = vmatprep.subr.mxu0 0.0
  %123 = vmatpush1.msra.mxu0 0.0
  %124 = vmatprep.subr.mxu0 0.0
  %125 = vmatpush1.msra.mxu0 0.0
  %126 = vmatprep.subr.mxu0 0.0
  %127 = vmatpush1.msra.mxu0 0.0
  %128 = vmatprep.subr.mxu0 0.0
  %129 = vmatpush1.msra.mxu0 0.0
  %130 = vmatprep.subr.mxu0 0.0
  %131 = vmatpush1.msra.mxu0 0.0
  %132 = vmatprep.subr.mxu0 0.0
  %133 = vmatpush1.msra.mxu0 0.0
  %134 = vmatprep.subr.mxu0 0.0
  %135 = vmatpush1.msra.mxu0 0.0
  %136 = vmatprep.subr.mxu0 0.0
  %137 = vmatpush1.msra.mxu0 0.0
  %138 = vmatprep.subr.mxu0 0.0
  %139 = vmatpush1.msra.mxu0 0.0
  %140 = vmatprep.subr.mxu0 0.0
  %141 = vmatpush1.msra.mxu0 0.0
  %142 = vmatprep.subr.mxu0 0.0
  %143 = vmatpush1.msra.mxu0 0.0
  %144 = vmatprep.subr.mxu0 0.0
  %145 = vmatpush1.msra.mxu0 0.0
  %146 = vmatprep.subr.mxu0 0.0
  %147 = vmatpush1.msra.mxu0 0.0
  %148 = vmatprep.subr.mxu0 0.0
  %149 = vmatpush1.msra.mxu0 0.0
  %150 = vmatprep.subr.mxu0 0.0
  %151 = vmatpush1.msra.mxu0 0.0
  %152 = vmatprep.subr.mxu0 0.0
  %153 = vmatpush1.msra.mxu0 0.0
  %154 = vmatprep.subr.mxu0 0.0
  %155 = vmatpush1.msra.mxu0 0.0
  %156 = vmatprep.subr.mxu0 0.0
  %157 = vmatpush1.msra.mxu0 0.0
  %158 = vmatprep.mubr.f32.mxu0 0.0
  %159 = vmatmul.mubr.f32.gmra.mrb[0].mxu0 %v92
  %v160 = vpop.f32.mrb[0].mxu0
  %v161 = vadd.f32 0.0, %v160
  %v162 = vpop.f32.mrb[0].mxu0
  %163 = vdwg.mxu0
  %vm164 = vcmask 130048
  %v166 = vsel %vm164, %v83, 0
  %168 = vmatprep.subr.mxu0 0.0
  %169 = vmatpush1.msra.mxu0 %v84
  %170 = vmatprep.subr.mxu0 0.0
  %171 = vmatpush1.msra.mxu0 %v85
  %172 = vmatprep.subr.mxu0 0.0
  %173 = vmatpush1.msra.mxu0 0.0
  %174 = vmatprep.subr.mxu0 0.0
  %175 = vmatpush1.msra.mxu0 0.0
  %176 = vmatprep.subr.mxu0 0.0
  %177 = vmatpush1.msra.mxu0 0.0
  %178 = vmatprep.subr.mxu0 0.0
  %179 = vmatpush1.msra.mxu0 0.0
  %180 = vmatprep.subr.mxu0 0.0
  %181 = vmatpush1.msra.mxu0 0.0
  %182 = vmatprep.subr.mxu0 0.0
  %183 = vmatpush1.msra.mxu0 0.0
  %184 = vmatprep.subr.mxu0 0.0
  %185 = vmatpush1.msra.mxu0 0.0
  %186 = vmatprep.subr.mxu0 0.0
  %187 = vmatpush1.msra.mxu0 0.0
  %188 = vmatprep.subr.mxu0 0.0
  %189 = vmatpush1.msra.mxu0 0.0
  %190 = vmatprep.subr.mxu0 0.0
  %191 = vmatpush1.msra.mxu0 0.0
  %192 = vmatprep.subr.mxu0 0.0
  %193 = vmatpush1.msra.mxu0 0.0
  %194 = vmatprep.subr.mxu0 0.0
  %195 = vmatpush1.msra.mxu0 0.0
  %196 = vmatprep.subr.mxu0 0.0
  %197 = vmatpush1.msra.mxu0 0.0
  %198 = vmatprep.subr.mxu0 0.0
  %199 = vmatpush1.msra.mxu0 0.0
  %200 = vmatprep.subr.mxu0 0.0
  %201 = vmatpush1.msra.mxu0 0.0
  %202 = vmatprep.subr.mxu0 0.0
  %203 = vmatpush1.msra.mxu0 0.0
  %204 = vmatprep.subr.mxu0 0.0
  %205 = vmatpush1.msra.mxu0 0.0
  %206 = vmatprep.subr.mxu0 0.0
  %207 = vmatpush1.msra.mxu0 0.0
  %208 = vmatprep.subr.mxu0 0.0
  %209 = vmatpush1.msra.mxu0 0.0
  %210 = vmatprep.subr.mxu0 0.0
  %211 = vmatpush1.msra.mxu0 0.0
  %212 = vmatprep.subr.mxu0 0.0
  %213 = vmatpush1.msra.mxu0 0.0
  %214 = vmatprep.subr.mxu0 0.0
  %215 = vmatpush1.msra.mxu0 0.0
  %216 = vmatprep.subr.mxu0 0.0
  %217 = vmatpush1.msra.mxu0 0.0
  %218 = vmatprep.subr.mxu0 0.0
  %219 = vmatpush1.msra.mxu0 0.0
  %220 = vmatprep.subr.mxu0 0.0
  %221 = vmatpush1.msra.mxu0 0.0
  %222 = vmatprep.subr.mxu0 0.0
  %223 = vmatpush1.msra.mxu0 0.0
  %224 = vmatprep.subr.mxu0 0.0
  %225 = vmatpush1.msra.mxu0 0.0
  %226 = vmatprep.subr.mxu0 0.0
  %227 = vmatpush1.msra.mxu0 0.0
  %228 = vmatprep.subr.mxu0 0.0
  %229 = vmatpush1.msra.mxu0 0.0
  %230 = vmatprep.subr.mxu0 0.0
  %231 = vmatpush1.msra.mxu0 0.0
  %232 = vmatprep.mubr.f32.mxu0 0.0
  %233 = vmatmul.mubr.f32.gmra.mrb[0].mxu0 %v166
  %v234 = vpop.f32.mrb[0].mxu0
  %v235 = vadd.f32 %v161, %v234
  %v236 = vpop.f32.mrb[0].mxu0
  %237 = vdwg.mxu0
  %v238 = vld [vmem:[%s3] sm:$0x1]
  %v240 = vlaneseq
  %v241 = vshrl.u32 %v240, 7
  %v242 = vsub.s32 0, %v241
  %v243 = vrot.slane %v238, %v242
  %v245 = vadd.f32 %v235, %v243
  %v246 = vsel %vm90, %v245, 0.0
  %247 = vadd.xlane.f32.xlu0 %v246
  %v248 = vpop.xlane.xlu0 %247
  %v249 = vrcp.pop 32.0
  %v250 = vmul.f32 %v248, %v249
  %v251 = vsub.f32 %v245, %v250
  %v252 = vmul.f32 %v251, %v251
  %v253 = vsel %vm90, %v252, 0.0
  %254 = vadd.xlane.f32.xlu0 %v253
  %v255 = vpop.xlane.xlu0 %254
  %v256 = vmul.f32 %v255, %v249
  %v257 = vadd.f32 %v256, 1e-05
  %v258 = vrsqrt.pop %v257
  %v259 = vmul.f32 %v251, %v258
  %v260 = vld [vmem:[%s4] sm:$0x1]
  %v262 = vlaneseq
  %v263 = vshrl.u32 %v262, 7
  %v264 = vsub.s32 0, %v263
  %v265 = vrot.slane %v260, %v264
  %v267 = vmul.f32 %v259, %v265
  %v268 = vld [vmem:[%s5] sm:$0x1]
  %v270 = vlaneseq
  %v271 = vshrl.u32 %v270, 7
  %v272 = vsub.s32 0, %v271
  %v273 = vrot.slane %v268, %v272
  %v275 = vadd.f32 %v267, %v273
  %v276 = vmul.f32 %v275, 0.2
  %v277 = vmax.f32 %v275, %v276
  %v278 = vld [vmem:[%s7] sm:$0xff]
  %v279 = vld [vmem:[%s7 + $0x8] sm:$0xff]
  %v280 = vld [vmem:[%s7 + $0x10] sm:$0xff]
  %v281 = vld [vmem:[%s7 + $0x18] sm:$0xff]
  %v282 = vld [vmem:[%s8] sm:$0x1]
  %v283 = vld [vmem:[%s6] sm:$0xff]
  %v284 = vld [vmem:[%s6 + $0x8] sm:$0xff]
  %v285 = vld [vmem:[%s6 + $0x10] sm:$0xff]
  %v286 = vld [vmem:[%s6 + $0x18] sm:$0xff]
  %v287 = vld [vmem:[%s6 + $0x20] sm:$0xff]
  %v288 = vld [vmem:[%s6 + $0x28] sm:$0xff]
  %v289 = vld [vmem:[%s6 + $0x30] sm:$0xff]
  %v290 = vld [vmem:[%s6 + $0x38] sm:$0xff]
  %291 = vmatprep.subr.mxu0 0.0
  %292 = vmatpush1.msra.mxu0 %v287
  %293 = vmatprep.subr.mxu0 0.0
  %294 = vmatpush1.msra.mxu0 %v288
  %295 = vmatprep.subr.mxu0 0.0
  %296 = vmatpush1.msra.mxu0 %v289
  %297 = vmatprep.subr.mxu0 0.0
  %298 = vmatpush1.msra.mxu0 %v290
  %299 = vmatprep.subr.mxu0 0.0
  %300 = vmatpush1.msra.mxu0 0.0
  %301 = vmatprep.subr.mxu0 0.0
  %302 = vmatpush1.msra.mxu0 0.0
  %303 = vmatprep.subr.mxu0 0.0
  %304 = vmatpush1.msra.mxu0 0.0
  %305 = vmatprep.subr.mxu0 0.0
  %306 = vmatpush1.msra.mxu0 0.0
  %307 = vmatprep.subr.mxu0 0.0
  %308 = vmatpush1.msra.mxu0 0.0
  %309 = vmatprep.subr.mxu0 0.0
  %310 = vmatpush1.msra.mxu0 0.0
  %311 = vmatprep.subr.mxu0 0.0
  %312 = vmatpush1.msra.mxu0 0.0
  %313 = vmatprep.subr.mxu0 0.0
  %314 = vmatpush1.msra.mxu0 0.0
  %315 = vmatprep.subr.mxu0 0.0
  %316 = vmatpush1.msra.mxu0 0.0
  %317 = vmatprep.subr.mxu0 0.0
  %318 = vmatpush1.msra.mxu0 0.0
  %319 = vmatprep.subr.mxu0 0.0
  %320 = vmatpush1.msra.mxu0 0.0
  %321 = vmatprep.subr.mxu0 0.0
  %322 = vmatpush1.msra.mxu0 0.0
  %323 = vmatprep.subr.mxu0 0.0
  %324 = vmatpush1.msra.mxu0 0.0
  %325 = vmatprep.subr.mxu0 0.0
  %326 = vmatpush1.msra.mxu0 0.0
  %327 = vmatprep.subr.mxu0 0.0
  %328 = vmatpush1.msra.mxu0 0.0
  %329 = vmatprep.subr.mxu0 0.0
  %330 = vmatpush1.msra.mxu0 0.0
  %331 = vmatprep.subr.mxu0 0.0
  %332 = vmatpush1.msra.mxu0 0.0
  %333 = vmatprep.subr.mxu0 0.0
  %334 = vmatpush1.msra.mxu0 0.0
  %335 = vmatprep.subr.mxu0 0.0
  %336 = vmatpush1.msra.mxu0 0.0
  %337 = vmatprep.subr.mxu0 0.0
  %338 = vmatpush1.msra.mxu0 0.0
  %339 = vmatprep.subr.mxu0 0.0
  %340 = vmatpush1.msra.mxu0 0.0
  %341 = vmatprep.subr.mxu0 0.0
  %342 = vmatpush1.msra.mxu0 0.0
  %343 = vmatprep.subr.mxu0 0.0
  %344 = vmatpush1.msra.mxu0 0.0
  %345 = vmatprep.subr.mxu0 0.0
  %346 = vmatpush1.msra.mxu0 0.0
  %347 = vmatprep.subr.mxu0 0.0
  %348 = vmatpush1.msra.mxu0 0.0
  %349 = vmatprep.subr.mxu0 0.0
  %350 = vmatpush1.msra.mxu0 0.0
  %351 = vmatprep.subr.mxu0 0.0
  %352 = vmatpush1.msra.mxu0 0.0
  %353 = vmatprep.subr.mxu0 0.0
  %354 = vmatpush1.msra.mxu0 0.0
  %355 = vmatprep.mubr.f32.mxu0 0.0
  %356 = vmatmul.mubr.f32.gmra.mrb[0].mxu0 %v92
  %v357 = vpop.f32.mrb[0].mxu0
  %v358 = vadd.f32 0.0, %v357
  %v359 = vpop.f32.mrb[0].mxu0
  %360 = vdwg.mxu0
  %v362 = vsel %vm90, %v277, 0
  %364 = vmatprep.subr.mxu0 0.0
  %365 = vmatpush1.msra.mxu0 %v283
  %366 = vmatprep.subr.mxu0 0.0
  %367 = vmatpush1.msra.mxu0 %v284
  %368 = vmatprep.subr.mxu0 0.0
  %369 = vmatpush1.msra.mxu0 %v285
  %370 = vmatprep.subr.mxu0 0.0
  %371 = vmatpush1.msra.mxu0 %v286
  %372 = vmatprep.subr.mxu0 0.0
  %373 = vmatpush1.msra.mxu0 0.0
  %374 = vmatprep.subr.mxu0 0.0
  %375 = vmatpush1.msra.mxu0 0.0
  %376 = vmatprep.subr.mxu0 0.0
  %377 = vmatpush1.msra.mxu0 0.0
  %378 = vmatprep.subr.mxu0 0.0
  %379 = vmatpush1.msra.mxu0 0.0
  %380 = vmatprep.subr.mxu0 0.0
  %381 = vmatpush1.msra.mxu0 0.0
  %382 = vmatprep.subr.mxu0 0.0
  %383 = vmatpush1.msra.mxu0 0.0
  %384 = vmatprep.subr.mxu0 0.0
  %385 = vmatpush1.msra.mxu0 0.0
  %386 = vmatprep.subr.mxu0 0.0
  %387 = vmatpush1.msra.mxu0 0.0
  %388 = vmatprep.subr.mxu0 0.0
  %389 = vmatpush1.msra.mxu0 0.0
  %390 = vmatprep.subr.mxu0 0.0
  %391 = vmatpush1.msra.mxu0 0.0
  %392 = vmatprep.subr.mxu0 0.0
  %393 = vmatpush1.msra.mxu0 0.0
  %394 = vmatprep.subr.mxu0 0.0
  %395 = vmatpush1.msra.mxu0 0.0
  %396 = vmatprep.subr.mxu0 0.0
  %397 = vmatpush1.msra.mxu0 0.0
  %398 = vmatprep.subr.mxu0 0.0
  %399 = vmatpush1.msra.mxu0 0.0
  %400 = vmatprep.subr.mxu0 0.0
  %401 = vmatpush1.msra.mxu0 0.0
  %402 = vmatprep.subr.mxu0 0.0
  %403 = vmatpush1.msra.mxu0 0.0
  %404 = vmatprep.subr.mxu0 0.0
  %405 = vmatpush1.msra.mxu0 0.0
  %406 = vmatprep.subr.mxu0 0.0
  %407 = vmatpush1.msra.mxu0 0.0
  %408 = vmatprep.subr.mxu0 0.0
  %409 = vmatpush1.msra.mxu0 0.0
  %410 = vmatprep.subr.mxu0 0.0
  %411 = vmatpush1.msra.mxu0 0.0
  %412 = vmatprep.subr.mxu0 0.0
  %413 = vmatpush1.msra.mxu0 0.0
  %414 = vmatprep.subr.mxu0 0.0
  %415 = vmatpush1.msra.mxu0 0.0
  %416 = vmatprep.subr.mxu0 0.0
  %417 = vmatpush1.msra.mxu0 0.0
  %418 = vmatprep.subr.mxu0 0.0
  %419 = vmatpush1.msra.mxu0 0.0
  %420 = vmatprep.subr.mxu0 0.0
  %421 = vmatpush1.msra.mxu0 0.0
  %422 = vmatprep.subr.mxu0 0.0
  %423 = vmatpush1.msra.mxu0 0.0
  %424 = vmatprep.subr.mxu0 0.0
  %425 = vmatpush1.msra.mxu0 0.0
  %426 = vmatprep.subr.mxu0 0.0
  %427 = vmatpush1.msra.mxu0 0.0
  %428 = vmatprep.mubr.f32.mxu0 0.0
  %429 = vmatmul.mubr.f32.gmra.mrb[0].mxu0 %v362
  %v430 = vpop.f32.mrb[0].mxu0
  %v431 = vadd.f32 %v358, %v430
  %v432 = vpop.f32.mrb[0].mxu0
  %433 = vdwg.mxu0
  %v435 = vlaneseq
  %v436 = vshrl.u32 %v435, 7
  %v437 = vsub.s32 0, %v436
  %v438 = vrot.slane %v282, %v437
  %v440 = vadd.f32 %v431, %v438
  %v441 = vld [vmem:[%s10] sm:$0xff]
  %v442 = vld [vmem:[%s10 + $0x8] sm:$0xff]
  %v443 = vld [vmem:[%s11] sm:$0x1]
  %v444 = vld [vmem:[%s9] sm:$0xff]
  %v445 = vld [vmem:[%s9 + $0x8] sm:$0xff]
  %v446 = vld [vmem:[%s9 + $0x10] sm:$0xff]
  %v447 = vld [vmem:[%s9 + $0x18] sm:$0xff]
  %v448 = vld [vmem:[%s9 + $0x20] sm:$0xff]
  %v449 = vld [vmem:[%s9 + $0x28] sm:$0xff]
  %v450 = vld [vmem:[%s9 + $0x30] sm:$0xff]
  %v451 = vld [vmem:[%s9 + $0x38] sm:$0xff]
  %452 = vmatprep.subr.mxu0 0.0
  %453 = vmatpush1.msra.mxu0 %v448
  %454 = vmatprep.subr.mxu0 0.0
  %455 = vmatpush1.msra.mxu0 %v449
  %456 = vmatprep.subr.mxu0 0.0
  %457 = vmatpush1.msra.mxu0 %v450
  %458 = vmatprep.subr.mxu0 0.0
  %459 = vmatpush1.msra.mxu0 %v451
  %460 = vmatprep.subr.mxu0 0.0
  %461 = vmatpush1.msra.mxu0 0.0
  %462 = vmatprep.subr.mxu0 0.0
  %463 = vmatpush1.msra.mxu0 0.0
  %464 = vmatprep.subr.mxu0 0.0
  %465 = vmatpush1.msra.mxu0 0.0
  %466 = vmatprep.subr.mxu0 0.0
  %467 = vmatpush1.msra.mxu0 0.0
  %468 = vmatprep.subr.mxu0 0.0
  %469 = vmatpush1.msra.mxu0 0.0
  %470 = vmatprep.subr.mxu0 0.0
  %471 = vmatpush1.msra.mxu0 0.0
  %472 = vmatprep.subr.mxu0 0.0
  %473 = vmatpush1.msra.mxu0 0.0
  %474 = vmatprep.subr.mxu0 0.0
  %475 = vmatpush1.msra.mxu0 0.0
  %476 = vmatprep.subr.mxu0 0.0
  %477 = vmatpush1.msra.mxu0 0.0
  %478 = vmatprep.subr.mxu0 0.0
  %479 = vmatpush1.msra.mxu0 0.0
  %480 = vmatprep.subr.mxu0 0.0
  %481 = vmatpush1.msra.mxu0 0.0
  %482 = vmatprep.subr.mxu0 0.0
  %483 = vmatpush1.msra.mxu0 0.0
  %484 = vmatprep.subr.mxu0 0.0
  %485 = vmatpush1.msra.mxu0 0.0
  %486 = vmatprep.subr.mxu0 0.0
  %487 = vmatpush1.msra.mxu0 0.0
  %488 = vmatprep.subr.mxu0 0.0
  %489 = vmatpush1.msra.mxu0 0.0
  %490 = vmatprep.subr.mxu0 0.0
  %491 = vmatpush1.msra.mxu0 0.0
  %492 = vmatprep.subr.mxu0 0.0
  %493 = vmatpush1.msra.mxu0 0.0
  %494 = vmatprep.subr.mxu0 0.0
  %495 = vmatpush1.msra.mxu0 0.0
  %496 = vmatprep.subr.mxu0 0.0
  %497 = vmatpush1.msra.mxu0 0.0
  %498 = vmatprep.subr.mxu0 0.0
  %499 = vmatpush1.msra.mxu0 0.0
  %500 = vmatprep.subr.mxu0 0.0
  %501 = vmatpush1.msra.mxu0 0.0
  %502 = vmatprep.subr.mxu0 0.0
  %503 = vmatpush1.msra.mxu0 0.0
  %504 = vmatprep.subr.mxu0 0.0
  %505 = vmatpush1.msra.mxu0 0.0
  %506 = vmatprep.subr.mxu0 0.0
  %507 = vmatpush1.msra.mxu0 0.0
  %508 = vmatprep.subr.mxu0 0.0
  %509 = vmatpush1.msra.mxu0 0.0
  %510 = vmatprep.subr.mxu0 0.0
  %511 = vmatpush1.msra.mxu0 0.0
  %512 = vmatprep.subr.mxu0 0.0
  %513 = vmatpush1.msra.mxu0 0.0
  %514 = vmatprep.subr.mxu0 0.0
  %515 = vmatpush1.msra.mxu0 0.0
  %516 = vmatprep.mubr.f32.mxu0 0.0
  %517 = vmatmul.mubr.f32.gmra.mrb[0].mxu0 %v92
  %v518 = vpop.f32.mrb[0].mxu0
  %v519 = vadd.f32 0.0, %v518
  %v520 = vpop.f32.mrb[0].mxu0
  %521 = vdwg.mxu0
  %522 = vmatprep.subr.mxu0 0.0
  %523 = vmatpush1.msra.mxu0 %v444
  %524 = vmatprep.subr.mxu0 0.0
  %525 = vmatpush1.msra.mxu0 %v445
  %526 = vmatprep.subr.mxu0 0.0
  %527 = vmatpush1.msra.mxu0 %v446
  %528 = vmatprep.subr.mxu0 0.0
  %529 = vmatpush1.msra.mxu0 %v447
  %530 = vmatprep.subr.mxu0 0.0
  %531 = vmatpush1.msra.mxu0 0.0
  %532 = vmatprep.subr.mxu0 0.0
  %533 = vmatpush1.msra.mxu0 0.0
  %534 = vmatprep.subr.mxu0 0.0
  %535 = vmatpush1.msra.mxu0 0.0
  %536 = vmatprep.subr.mxu0 0.0
  %537 = vmatpush1.msra.mxu0 0.0
  %538 = vmatprep.subr.mxu0 0.0
  %539 = vmatpush1.msra.mxu0 0.0
  %540 = vmatprep.subr.mxu0 0.0
  %541 = vmatpush1.msra.mxu0 0.0
  %542 = vmatprep.subr.mxu0 0.0
  %543 = vmatpush1.msra.mxu0 0.0
  %544 = vmatprep.subr.mxu0 0.0
  %545 = vmatpush1.msra.mxu0 0.0
  %546 = vmatprep.subr.mxu0 0.0
  %547 = vmatpush1.msra.mxu0 0.0
  %548 = vmatprep.subr.mxu0 0.0
  %549 = vmatpush1.msra.mxu0 0.0
  %550 = vmatprep.subr.mxu0 0.0
  %551 = vmatpush1.msra.mxu0 0.0
  %552 = vmatprep.subr.mxu0 0.0
  %553 = vmatpush1.msra.mxu0 0.0
  %554 = vmatprep.subr.mxu0 0.0
  %555 = vmatpush1.msra.mxu0 0.0
  %556 = vmatprep.subr.mxu0 0.0
  %557 = vmatpush1.msra.mxu0 0.0
  %558 = vmatprep.subr.mxu0 0.0
  %559 = vmatpush1.msra.mxu0 0.0
  %560 = vmatprep.subr.mxu0 0.0
  %561 = vmatpush1.msra.mxu0 0.0
  %562 = vmatprep.subr.mxu0 0.0
  %563 = vmatpush1.msra.mxu0 0.0
  %564 = vmatprep.subr.mxu0 0.0
  %565 = vmatpush1.msra.mxu0 0.0
  %566 = vmatprep.subr.mxu0 0.0
  %567 = vmatpush1.msra.mxu0 0.0
  %568 = vmatprep.subr.mxu0 0.0
  %569 = vmatpush1.msra.mxu0 0.0
  %570 = vmatprep.subr.mxu0 0.0
  %571 = vmatpush1.msra.mxu0 0.0
  %572 = vmatprep.subr.mxu0 0.0
  %573 = vmatpush1.msra.mxu0 0.0
  %574 = vmatprep.subr.mxu0 0.0
  %575 = vmatpush1.msra.mxu0 0.0
  %576 = vmatprep.subr.mxu0 0.0
  %577 = vmatpush1.msra.mxu0 0.0
  %578 = vmatprep.subr.mxu0 0.0
  %579 = vmatpush1.msra.mxu0 0.0
  %580 = vmatprep.subr.mxu0 0.0
  %581 = vmatpush1.msra.mxu0 0.0
  %582 = vmatprep.subr.mxu0 0.0
  %583 = vmatpush1.msra.mxu0 0.0
  %584 = vmatprep.subr.mxu0 0.0
  %585 = vmatpush1.msra.mxu0 0.0
  %586 = vmatprep.mubr.f32.mxu0 0.0
  %587 = vmatmul.mubr.f32.gmra.mrb[0].mxu0 %v362
  %v588 = vpop.f32.mrb[0].mxu0
  %v589 = vadd.f32 %v519, %v588
  %v590 = vpop.f32.mrb[0].mxu0
  %591 = vdwg.mxu0
  %v593 = vlaneseq
  %v594 = vshrl.u32 %v593, 7
  %v595 = vsub.s32 0, %v594
  %v596 = vrot.slane %v443, %v595
  %v598 = vadd.f32 %v589, %v596
  %v600 = vsel %vm90, 0.0, 0
  %602 = vmatprep.subr.mxu0 0.0
  %603 = vmatpush1.msra.mxu0 %v278
  %604 = vmatprep.subr.mxu0 0.0
  %605 = vmatpush1.msra.mxu0 %v279
  %606 = vmatprep.subr.mxu0 0.0
  %607 = vmatpush1.msra.mxu0 %v280
  %608 = vmatprep.subr.mxu0 0.0
  %609 = vmatpush1.msra.mxu0 %v281
  %610 = vmatprep.subr.mxu0 0.0
  %611 = vmatpush1.msra.mxu0 0.0
  %612 = vmatprep.subr.mxu0 0.0
  %613 = vmatpush1.msra.mxu0 0.0
  %614 = vmatprep.subr.mxu0 0.0
  %615 = vmatpush1.msra.mxu0 0.0
  %616 = vmatprep.subr.mxu0 0.0
  %617 = vmatpush1.msra.mxu0 0.0
  %618 = vmatprep.subr.mxu0 0.0
  %619 = vmatpush1.msra.mxu0 0.0
  %620 = vmatprep.subr.mxu0 0.0
  %621 = vmatpush1.msra.mxu0 0.0
  %622 = vmatprep.subr.mxu0 0.0
  %623 = vmatpush1.msra.mxu0 0.0
  %624 = vmatprep.subr.mxu0 0.0
  %625 = vmatpush1.msra.mxu0 0.0
  %626 = vmatprep.subr.mxu0 0.0
  %627 = vmatpush1.msra.mxu0 0.0
  %628 = vmatprep.subr.mxu0 0.0
  %629 = vmatpush1.msra.mxu0 0.0
  %630 = vmatprep.subr.mxu0 0.0
  %631 = vmatpush1.msra.mxu0 0.0
  %632 = vmatprep.subr.mxu0 0.0
  %633 = vmatpush1.msra.mxu0 0.0
  %634 = vmatprep.subr.mxu0 0.0
  %635 = vmatpush1.msra.mxu0 0.0
  %636 = vmatprep.subr.mxu0 0.0
  %637 = vmatpush1.msra.mxu0 0.0
  %638 = vmatprep.subr.mxu0 0.0
  %639 = vmatpush1.msra.mxu0 0.0
  %640 = vmatprep.subr.mxu0 0.0
  %641 = vmatpush1.msra.mxu0 0.0
  %642 = vmatprep.subr.mxu0 0.0
  %643 = vmatpush1.msra.mxu0 0.0
  %644 = vmatprep.subr.mxu0 0.0
  %645 = vmatpush1.msra.mxu0 0.0
  %646 = vmatprep.subr.mxu0 0.0
  %647 = vmatpush1.msra.mxu0 0.0
  %648 = vmatprep.subr.mxu0 0.0
  %649 = vmatpush1.msra.mxu0 0.0
  %650 = vmatprep.subr.mxu0 0.0
  %651 = vmatpush1.msra.mxu0 0.0
  %652 = vmatprep.subr.mxu0 0.0
  %653 = vmatpush1.msra.mxu0 0.0
  %654 = vmatprep.subr.mxu0 0.0
  %655 = vmatpush1.msra.mxu0 0.0
  %656 = vmatprep.subr.mxu0 0.0
  %657 = vmatpush1.msra.mxu0 0.0
  %658 = vmatprep.subr.mxu0 0.0
  %659 = vmatpush1.msra.mxu0 0.0
  %660 = vmatprep.subr.mxu0 0.0
  %661 = vmatpush1.msra.mxu0 0.0
  %662 = vmatprep.subr.mxu0 0.0
  %663 = vmatpush1.msra.mxu0 0.0
  %664 = vmatprep.subr.mxu0 0.0
  %665 = vmatpush1.msra.mxu0 0.0
  %666 = vmatprep.mubr.f32.mxu0 0.0
  %667 = vmatmul.mubr.f32.gmra.mrb[0].mxu0 %v600
  %v668 = vpop.f32.mrb[0].mxu0
  %v669 = vadd.f32 0.0, %v668
  %v670 = vpop.f32.mrb[0].mxu0
  %671 = vdwg.mxu0
  %v672 = vadd.f32 %v440, %v669
  %v673 = vsel %vm164, 0.0, 0
  %675 = vmatprep.subr.mxu0 0.0
  %676 = vmatpush1.msra.mxu0 %v441
  %677 = vmatprep.subr.mxu0 0.0
  %678 = vmatpush1.msra.mxu0 %v442
  %679 = vmatprep.subr.mxu0 0.0
  %680 = vmatpush1.msra.mxu0 0.0
  %681 = vmatprep.subr.mxu0 0.0
  %682 = vmatpush1.msra.mxu0 0.0
  %683 = vmatprep.subr.mxu0 0.0
  %684 = vmatpush1.msra.mxu0 0.0
  %685 = vmatprep.subr.mxu0 0.0
  %686 = vmatpush1.msra.mxu0 0.0
  %687 = vmatprep.subr.mxu0 0.0
  %688 = vmatpush1.msra.mxu0 0.0
  %689 = vmatprep.subr.mxu0 0.0
  %690 = vmatpush1.msra.mxu0 0.0
  %691 = vmatprep.subr.mxu0 0.0
  %692 = vmatpush1.msra.mxu0 0.0
  %693 = vmatprep.subr.mxu0 0.0
  %694 = vmatpush1.msra.mxu0 0.0
  %695 = vmatprep.subr.mxu0 0.0
  %696 = vmatpush1.msra.mxu0 0.0
  %697 = vmatprep.subr.mxu0 0.0
  %698 = vmatpush1.msra.mxu0 0.0
  %699 = vmatprep.subr.mxu0 0.0
  %700 = vmatpush1.msra.mxu0 0.0
  %701 = vmatprep.subr.mxu0 0.0
  %702 = vmatpush1.msra.mxu0 0.0
  %703 = vmatprep.subr.mxu0 0.0
  %704 = vmatpush1.msra.mxu0 0.0
  %705 = vmatprep.subr.mxu0 0.0
  %706 = vmatpush1.msra.mxu0 0.0
  %707 = vmatprep.subr.mxu0 0.0
  %708 = vmatpush1.msra.mxu0 0.0
  %709 = vmatprep.subr.mxu0 0.0
  %710 = vmatpush1.msra.mxu0 0.0
  %711 = vmatprep.subr.mxu0 0.0
  %712 = vmatpush1.msra.mxu0 0.0
  %713 = vmatprep.subr.mxu0 0.0
  %714 = vmatpush1.msra.mxu0 0.0
  %715 = vmatprep.subr.mxu0 0.0
  %716 = vmatpush1.msra.mxu0 0.0
  %717 = vmatprep.subr.mxu0 0.0
  %718 = vmatpush1.msra.mxu0 0.0
  %719 = vmatprep.subr.mxu0 0.0
  %720 = vmatpush1.msra.mxu0 0.0
  %721 = vmatprep.subr.mxu0 0.0
  %722 = vmatpush1.msra.mxu0 0.0
  %723 = vmatprep.subr.mxu0 0.0
  %724 = vmatpush1.msra.mxu0 0.0
  %725 = vmatprep.subr.mxu0 0.0
  %726 = vmatpush1.msra.mxu0 0.0
  %727 = vmatprep.subr.mxu0 0.0
  %728 = vmatpush1.msra.mxu0 0.0
  %729 = vmatprep.subr.mxu0 0.0
  %730 = vmatpush1.msra.mxu0 0.0
  %731 = vmatprep.subr.mxu0 0.0
  %732 = vmatpush1.msra.mxu0 0.0
  %733 = vmatprep.subr.mxu0 0.0
  %734 = vmatpush1.msra.mxu0 0.0
  %735 = vmatprep.subr.mxu0 0.0
  %736 = vmatpush1.msra.mxu0 0.0
  %737 = vmatprep.subr.mxu0 0.0
  %738 = vmatpush1.msra.mxu0 0.0
  %739 = vmatprep.mubr.f32.mxu0 0.0
  %740 = vmatmul.mubr.f32.gmra.mrb[0].mxu0 %v673
  %v741 = vpop.f32.mrb[0].mxu0
  %v742 = vadd.f32 0.0, %v741
  %v743 = vpop.f32.mrb[0].mxu0
  %744 = vdwg.mxu0
  %v745 = vadd.f32 %v598, %v742
  %v746 = vxor.u32 %v672, 2147483648
  %v747 = vmul.f32 %v746, 1.442695
  %v748 = vpow.pop %v747
  %v749 = vadd.f32 %v748, 1.0
  %v750 = vrcp.pop %v749
  %v751 = vmul.f32 1.0, %v750
  %v752 = vtanh.pop %v672
  %v753 = vmul.f32 %v751, 0.0
  %755 = vrot.lane.b32.xlu0 %v752, 64
  %v756 = vpop.permute.xlu0 %755
  %v758 = vmul.f32 %v751, %v756
  %760 = vrot.lane.b32.xlu0 %v758, 32
  %v761 = vpop.permute.xlu0 %760
  %v763 = vadd.f32 %v753, %v761
  %v764 = vtanh.pop %v763
  %766 = vrot.lane.b32.xlu0 %v764, 64
  %v767 = vpop.permute.xlu0 %766
  %v769 = vmul.f32 %v751, %v767
  %v770 = vxor.u32 %v745, 2147483648
  %v771 = vmul.f32 %v770, 1.442695
  %v772 = vpow.pop %v771
  %v773 = vadd.f32 %v772, 1.0
  %v774 = vrcp.pop %v773
  %v775 = vmul.f32 1.0, %v774
  %v776 = vtanh.pop %v745
  %v777 = vmul.f32 %v775, 0.0
  %779 = vrot.lane.b32.xlu0 %v776, 96
  %v780 = vpop.permute.xlu0 %779
  %v782 = vmul.f32 %v775, %v780
  %784 = vrot.lane.b32.xlu0 %v782, 16
  %v785 = vpop.permute.xlu0 %784
  %v787 = vadd.f32 %v777, %v785
  %v788 = vtanh.pop %v787
  %790 = vrot.lane.b32.xlu0 %v788, 32
  %v791 = vpop.permute.xlu0 %790
  %v793 = vmul.f32 %v775, %v791
  %795 = vrot.lane.b32.xlu0 %v769, 32
  %v796 = vpop.permute.xlu0 %795
  %v797 = vsel %vm90, %v796, 0
  %799 = vmatprep.subr.mxu0 0.0
  %800 = vmatpush1.msra.mxu0 %v278
  %801 = vmatprep.subr.mxu0 0.0
  %802 = vmatpush1.msra.mxu0 %v279
  %803 = vmatprep.subr.mxu0 0.0
  %804 = vmatpush1.msra.mxu0 %v280
  %805 = vmatprep.subr.mxu0 0.0
  %806 = vmatpush1.msra.mxu0 %v281
  %807 = vmatprep.subr.mxu0 0.0
  %808 = vmatpush1.msra.mxu0 0.0
  %809 = vmatprep.subr.mxu0 0.0
  %810 = vmatpush1.msra.mxu0 0.0
  %811 = vmatprep.subr.mxu0 0.0
  %812 = vmatpush1.msra.mxu0 0.0
  %813 = vmatprep.subr.mxu0 0.0
  %814 = vmatpush1.msra.mxu0 0.0
  %815 = vmatprep.subr.mxu0 0.0
  %816 = vmatpush1.msra.mxu0 0.0
  %817 = vmatprep.subr.mxu0 0.0
  %818 = vmatpush1.msra.mxu0 0.0
  %819 = vmatprep.subr.mxu0 0.0
  %820 = vmatpush1.msra.mxu0 0.0
  %821 = vmatprep.subr.mxu0 0.0
  %822 = vmatpush1.msra.mxu0 0.0
  %823 = vmatprep.subr.mxu0 0.0
  %824 = vmatpush1.msra.mxu0 0.0
  %825 = vmatprep.subr.mxu0 0.0
  %826 = vmatpush1.msra.mxu0 0.0
  %827 = vmatprep.subr.mxu0 0.0
  %828 = vmatpush1.msra.mxu0 0.0
  %829 = vmatprep.subr.mxu0 0.0
  %830 = vmatpush1.msra.mxu0 0.0
  %831 = vmatprep.subr.mxu0 0.0
  %832 = vmatpush1.msra.mxu0 0.0
  %833 = vmatprep.subr.mxu0 0.0
  %834 = vmatpush1.msra.mxu0 0.0
  %835 = vmatprep.subr.mxu0 0.0
  %836 = vmatpush1.msra.mxu0 0.0
  %837 = vmatprep.subr.mxu0 0.0
  %838 = vmatpush1.msra.mxu0 0.0
  %839 = vmatprep.subr.mxu0 0.0
  %840 = vmatpush1.msra.mxu0 0.0
  %841 = vmatprep.subr.mxu0 0.0
  %842 = vmatpush1.msra.mxu0 0.0
  %843 = vmatprep.subr.mxu0 0.0
  %844 = vmatpush1.msra.mxu0 0.0
  %845 = vmatprep.subr.mxu0 0.0
  %846 = vmatpush1.msra.mxu0 0.0
  %847 = vmatprep.subr.mxu0 0.0
  %848 = vmatpush1.msra.mxu0 0.0
  %849 = vmatprep.subr.mxu0 0.0
  %850 = vmatpush1.msra.mxu0 0.0
  %851 = vmatprep.subr.mxu0 0.0
  %852 = vmatpush1.msra.mxu0 0.0
  %853 = vmatprep.subr.mxu0 0.0
  %854 = vmatpush1.msra.mxu0 0.0
  %855 = vmatprep.subr.mxu0 0.0
  %856 = vmatpush1.msra.mxu0 0.0
  %857 = vmatprep.subr.mxu0 0.0
  %858 = vmatpush1.msra.mxu0 0.0
  %859 = vmatprep.subr.mxu0 0.0
  %860 = vmatpush1.msra.mxu0 0.0
  %861 = vmatprep.subr.mxu0 0.0
  %862 = vmatpush1.msra.mxu0 0.0
  %863 = vmatprep.mubr.f32.mxu0 0.0
  %864 = vmatmul.mubr.f32.gmra.mrb[0].mxu0 %v797
  %v865 = vpop.f32.mrb[0].mxu0
  %v866 = vadd.f32 0.0, %v865
  %v867 = vpop.f32.mrb[0].mxu0
  %868 = vdwg.mxu0
  %v869 = vadd.f32 %v440, %v866
  %871 = vrot.lane.b32.xlu0 %v793, 80
  %v872 = vpop.permute.xlu0 %871
  %v873 = vsel %vm164, %v872, 0
  %875 = vmatprep.subr.mxu0 0.0
  %876 = vmatpush1.msra.mxu0 %v441
  %877 = vmatprep.subr.mxu0 0.0
  %878 = vmatpush1.msra.mxu0 %v442
  %879 = vmatprep.subr.mxu0 0.0
  %880 = vmatpush1.msra.mxu0 0.0
  %881 = vmatprep.subr.mxu0 0.0
  %882 = vmatpush1.msra.mxu0 0.0
  %883 = vmatprep.subr.mxu0 0.0
  %884 = vmatpush1.msra.mxu0 0.0
  %885 = vmatprep.subr.mxu0 0.0
  %886 = vmatpush1.msra.mxu0 0.0
  %887 = vmatprep.subr.mxu0 0.0
  %888 = vmatpush1.msra.mxu0 0.0
  %889 = vmatprep.subr.mxu0 0.0
  %890 = vmatpush1.msra.mxu0 0.0
  %891 = vmatprep.subr.mxu0 0.0
  %892 = vmatpush1.msra.mxu0 0.0
  %893 = vmatprep.subr.mxu0 0.0
  %894 = vmatpush1.msra.mxu0 0.0
  %895 = vmatprep.subr.mxu0 0.0
  %896 = vmatpush1.msra.mxu0 0.0
  %897 = vmatprep.subr.mxu0 0.0
  %898 = vmatpush1.msra.mxu0 0.0
  %899 = vmatprep.subr.mxu0 0.0
  %900 = vmatpush1.msra.mxu0 0.0
  %901 = vmatprep.subr.mxu0 0.0
  %902 = vmatpush1.msra.mxu0 0.0
  %903 = vmatprep.subr.mxu0 0.0
  %904 = vmatpush1.msra.mxu0 0.0
  %905 = vmatprep.subr.mxu0 0.0
  %906 = vmatpush1.msra.mxu0 0.0
  %907 = vmatprep.subr.mxu0 0.0
  %908 = vmatpush1.msra.mxu0 0.0
  %909 = vmatprep.subr.mxu0 0.0
  %910 = vmatpush1.msra.mxu0 0.0
  %911 = vmatprep.subr.mxu0 0.0
  %912 = vmatpush1.msra.mxu0 0.0
  %913 = vmatprep.subr.mxu0 0.0
  %914 = vmatpush1.msra.mxu0 0.0
  %915 = vmatprep.subr.mxu0 0.0
  %916 = vmatpush1.msra.mxu0 0.0
  %917 = vmatprep.subr.mxu0 0.0
  %918 = vmatpush1.msra.mxu0 0.0
  %919 = vmatprep.subr.mxu0 0.0
  %920 = vmatpush1.msra.mxu0 0.0
  %921 = vmatprep.subr.mxu0 0.0
  %922 = vmatpush1.msra.mxu0 0.0
  %923 = vmatprep.subr.mxu0 0.0
  %924 = vmatpush1.msra.mxu0 0.0
  %925 = vmatprep.subr.mxu0 0.0
  %926 = vmatpush1.msra.mxu0 0.0
  %927 = vmatprep.subr.mxu0 0.0
  %928 = vmatpush1.msra.mxu0 0.0
  %929 = vmatprep.subr.mxu0 0.0
  %930 = vmatpush1.msra.mxu0 0.0
  %931 = vmatprep.subr.mxu0 0.0
  %932 = vmatpush1.msra.mxu0 0.0
  %933 = vmatprep.subr.mxu0 0.0
  %934 = vmatpush1.msra.mxu0 0.0
  %935 = vmatprep.subr.mxu0 0.0
  %936 = vmatpush1.msra.mxu0 0.0
  %937 = vmatprep.subr.mxu0 0.0
  %938 = vmatpush1.msra.mxu0 0.0
  %939 = vmatprep.mubr.f32.mxu0 0.0
  %940 = vmatmul.mubr.f32.gmra.mrb[0].mxu0 %v873
  %v941 = vpop.f32.mrb[0].mxu0
  %v942 = vadd.f32 0.0, %v941
  %v943 = vpop.f32.mrb[0].mxu0
  %944 = vdwg.mxu0
  %v945 = vadd.f32 %v598, %v942
  %v946 = vxor.u32 %v869, 2147483648
  %v947 = vmul.f32 %v946, 1.442695
  %v948 = vpow.pop %v947
  %v949 = vadd.f32 %v948, 1.0
  %v950 = vrcp.pop %v949
  %v951 = vmul.f32 1.0, %v950
  %v952 = vtanh.pop %v869
  %v953 = vmul.f32 %v951, %v763
  %955 = vrot.lane.b32.xlu0 %v952, 64
  %v956 = vpop.permute.xlu0 %955
  %v958 = vmul.f32 %v951, %v956
  %960 = vrot.lane.b32.xlu0 %v958, 32
  %v961 = vpop.permute.xlu0 %960
  %v963 = vadd.f32 %v953, %v961
  %v964 = vtanh.pop %v963
  %966 = vrot.lane.b32.xlu0 %v964, 64
  %v967 = vpop.permute.xlu0 %966
  %v969 = vmul.f32 %v951, %v967
  %v970 = vxor.u32 %v945, 2147483648
  %v971 = vmul.f32 %v970, 1.442695
  %v972 = vpow.pop %v971
  %v973 = vadd.f32 %v972, 1.0
  %v974 = vrcp.pop %v973
  %v975 = vmul.f32 1.0, %v974
  %v976 = vtanh.pop %v945
  %v977 = vmul.f32 %v975, %v787
  %979 = vrot.lane.b32.xlu0 %v976, 96
  %v980 = vpop.permute.xlu0 %979
  %v982 = vmul.f32 %v975, %v980
  %984 = vrot.lane.b32.xlu0 %v982, 16
  %v985 = vpop.permute.xlu0 %984
  %v987 = vadd.f32 %v977, %v985
  %v988 = vtanh.pop %v987
  %990 = vrot.lane.b32.xlu0 %v988, 32
  %v991 = vpop.permute.xlu0 %990
  %v993 = vmul.f32 %v975, %v991
  %995 = vrot.lane.b32.xlu0 %v969, 32
  %v996 = vpop.permute.xlu0 %995
  %v997 = vsel %vm90, %v996, 0
  %999 = vmatprep.subr.mxu0 0.0
  %1000 = vmatpush1.msra.mxu0 %v278
  %1001 = vmatprep.subr.mxu0 0.0
  %1002 = vmatpush1.msra.mxu0 %v279
  %1003 = vmatprep.subr.mxu0 0.0
  %1004 = vmatpush1.msra.mxu0 %v280
  %1005 = vmatprep.subr.mxu0 0.0
  %1006 = vmatpush1.msra.mxu0 %v281
  %1007 = vmatprep.subr.mxu0 0.0
  %1008 = vmatpush1.msra.mxu0 0.0
  %1009 = vmatprep.subr.mxu0 0.0
  %1010 = vmatpush1.msra.mxu0 0.0
  %1011 = vmatprep.subr.mxu0 0.0
  %1012 = vmatpush1.msra.mxu0 0.0
  %1013 = vmatprep.subr.mxu0 0.0
  %1014 = vmatpush1.msra.mxu0 0.0
  %1015 = vmatprep.subr.mxu0 0.0
  %1016 = vmatpush1.msra.mxu0 0.0
  %1017 = vmatprep.subr.mxu0 0.0
  %1018 = vmatpush1.msra.mxu0 0.0
  %1019 = vmatprep.subr.mxu0 0.0
  %1020 = vmatpush1.msra.mxu0 0.0
  %1021 = vmatprep.subr.mxu0 0.0
  %1022 = vmatpush1.msra.mxu0 0.0
  %1023 = vmatprep.subr.mxu0 0.0
  %1024 = vmatpush1.msra.mxu0 0.0
  %1025 = vmatprep.subr.mxu0 0.0
  %1026 = vmatpush1.msra.mxu0 0.0
  %1027 = vmatprep.subr.mxu0 0.0
  %1028 = vmatpush1.msra.mxu0 0.0
  %1029 = vmatprep.subr.mxu0 0.0
  %1030 = vmatpush1.msra.mxu0 0.0
  %1031 = vmatprep.subr.mxu0 0.0
  %1032 = vmatpush1.msra.mxu0 0.0
  %1033 = vmatprep.subr.mxu0 0.0
  %1034 = vmatpush1.msra.mxu0 0.0
  %1035 = vmatprep.subr.mxu0 0.0
  %1036 = vmatpush1.msra.mxu0 0.0
  %1037 = vmatprep.subr.mxu0 0.0
  %1038 = vmatpush1.msra.mxu0 0.0
  %1039 = vmatprep.subr.mxu0 0.0
  %1040 = vmatpush1.msra.mxu0 0.0
  %1041 = vmatprep.subr.mxu0 0.0
  %1042 = vmatpush1.msra.mxu0 0.0
  %1043 = vmatprep.subr.mxu0 0.0
  %1044 = vmatpush1.msra.mxu0 0.0
  %1045 = vmatprep.subr.mxu0 0.0
  %1046 = vmatpush1.msra.mxu0 0.0
  %1047 = vmatprep.subr.mxu0 0.0
  %1048 = vmatpush1.msra.mxu0 0.0
  %1049 = vmatprep.subr.mxu0 0.0
  %1050 = vmatpush1.msra.mxu0 0.0
  %1051 = vmatprep.subr.mxu0 0.0
  %1052 = vmatpush1.msra.mxu0 0.0
  %1053 = vmatprep.subr.mxu0 0.0
  %1054 = vmatpush1.msra.mxu0 0.0
  %1055 = vmatprep.subr.mxu0 0.0
  %1056 = vmatpush1.msra.mxu0 0.0
  %1057 = vmatprep.subr.mxu0 0.0
  %1058 = vmatpush1.msra.mxu0 0.0
  %1059 = vmatprep.subr.mxu0 0.0
  %1060 = vmatpush1.msra.mxu0 0.0
  %1061 = vmatprep.subr.mxu0 0.0
  %1062 = vmatpush1.msra.mxu0 0.0
  %1063 = vmatprep.mubr.f32.mxu0 0.0
  %1064 = vmatmul.mubr.f32.gmra.mrb[0].mxu0 %v997
  %v1065 = vpop.f32.mrb[0].mxu0
  %v1066 = vadd.f32 0.0, %v1065
  %v1067 = vpop.f32.mrb[0].mxu0
  %1068 = vdwg.mxu0
  %v1069 = vadd.f32 %v440, %v1066
  %1071 = vrot.lane.b32.xlu0 %v993, 80
  %v1072 = vpop.permute.xlu0 %1071
  %v1073 = vsel %vm164, %v1072, 0
  %1075 = vmatprep.subr.mxu0 0.0
  %1076 = vmatpush1.msra.mxu0 %v441
  %1077 = vmatprep.subr.mxu0 0.0
  %1078 = vmatpush1.msra.mxu0 %v442
  %1079 = vmatprep.subr.mxu0 0.0
  %1080 = vmatpush1.msra.mxu0 0.0
  %1081 = vmatprep.subr.mxu0 0.0
  %1082 = vmatpush1.msra.mxu0 0.0
  %1083 = vmatprep.subr.mxu0 0.0
  %1084 = vmatpush1.msra.mxu0 0.0
  %1085 = vmatprep.subr.mxu0 0.0
  %1086 = vmatpush1.msra.mxu0 0.0
  %1087 = vmatprep.subr.mxu0 0.0
  %1088 = vmatpush1.msra.mxu0 0.0
  %1089 = vmatprep.subr.mxu0 0.0
  %1090 = vmatpush1.msra.mxu0 0.0
  %1091 = vmatprep.subr.mxu0 0.0
  %1092 = vmatpush1.msra.mxu0 0.0
  %1093 = vmatprep.subr.mxu0 0.0
  %1094 = vmatpush1.msra.mxu0 0.0
  %1095 = vmatprep.subr.mxu0 0.0
  %1096 = vmatpush1.msra.mxu0 0.0
  %1097 = vmatprep.subr.mxu0 0.0
  %1098 = vmatpush1.msra.mxu0 0.0
  %1099 = vmatprep.subr.mxu0 0.0
  %1100 = vmatpush1.msra.mxu0 0.0
  %1101 = vmatprep.subr.mxu0 0.0
  %1102 = vmatpush1.msra.mxu0 0.0
  %1103 = vmatprep.subr.mxu0 0.0
  %1104 = vmatpush1.msra.mxu0 0.0
  %1105 = vmatprep.subr.mxu0 0.0
  %1106 = vmatpush1.msra.mxu0 0.0
  %1107 = vmatprep.subr.mxu0 0.0
  %1108 = vmatpush1.msra.mxu0 0.0
  %1109 = vmatprep.subr.mxu0 0.0
  %1110 = vmatpush1.msra.mxu0 0.0
  %1111 = vmatprep.subr.mxu0 0.0
  %1112 = vmatpush1.msra.mxu0 0.0
  %1113 = vmatprep.subr.mxu0 0.0
  %1114 = vmatpush1.msra.mxu0 0.0
  %1115 = vmatprep.subr.mxu0 0.0
  %1116 = vmatpush1.msra.mxu0 0.0
  %1117 = vmatprep.subr.mxu0 0.0
  %1118 = vmatpush1.msra.mxu0 0.0
  %1119 = vmatprep.subr.mxu0 0.0
  %1120 = vmatpush1.msra.mxu0 0.0
  %1121 = vmatprep.subr.mxu0 0.0
  %1122 = vmatpush1.msra.mxu0 0.0
  %1123 = vmatprep.subr.mxu0 0.0
  %1124 = vmatpush1.msra.mxu0 0.0
  %1125 = vmatprep.subr.mxu0 0.0
  %1126 = vmatpush1.msra.mxu0 0.0
  %1127 = vmatprep.subr.mxu0 0.0
  %1128 = vmatpush1.msra.mxu0 0.0
  %1129 = vmatprep.subr.mxu0 0.0
  %1130 = vmatpush1.msra.mxu0 0.0
  %1131 = vmatprep.subr.mxu0 0.0
  %1132 = vmatpush1.msra.mxu0 0.0
  %1133 = vmatprep.subr.mxu0 0.0
  %1134 = vmatpush1.msra.mxu0 0.0
  %1135 = vmatprep.subr.mxu0 0.0
  %1136 = vmatpush1.msra.mxu0 0.0
  %1137 = vmatprep.subr.mxu0 0.0
  %1138 = vmatpush1.msra.mxu0 0.0
  %1139 = vmatprep.mubr.f32.mxu0 0.0
  %1140 = vmatmul.mubr.f32.gmra.mrb[0].mxu0 %v1073
  %v1141 = vpop.f32.mrb[0].mxu0
  %v1142 = vadd.f32 0.0, %v1141
  %v1143 = vpop.f32.mrb[0].mxu0
  %1144 = vdwg.mxu0
  %v1145 = vadd.f32 %v598, %v1142
  %v1146 = vxor.u32 %v1069, 2147483648
  %v1147 = vmul.f32 %v1146, 1.442695
  %v1148 = vpow.pop %v1147
  %v1149 = vadd.f32 %v1148, 1.0
  %v1150 = vrcp.pop %v1149
  %v1151 = vmul.f32 1.0, %v1150
  %v1152 = vtanh.pop %v1069
  %v1153 = vmul.f32 %v1151, %v963
  %1155 = vrot.lane.b32.xlu0 %v1152, 64
  %v1156 = vpop.permute.xlu0 %1155
  %v1158 = vmul.f32 %v1151, %v1156
  %1160 = vrot.lane.b32.xlu0 %v1158, 32
  %v1161 = vpop.permute.xlu0 %1160
  %v1163 = vadd.f32 %v1153, %v1161
  %v1164 = vtanh.pop %v1163
  %1166 = vrot.lane.b32.xlu0 %v1164, 64
  %v1167 = vpop.permute.xlu0 %1166
  %v1169 = vmul.f32 %v1151, %v1167
  %v1170 = vxor.u32 %v1145, 2147483648
  %v1171 = vmul.f32 %v1170, 1.442695
  %v1172 = vpow.pop %v1171
  %v1173 = vadd.f32 %v1172, 1.0
  %v1174 = vrcp.pop %v1173
  %v1175 = vmul.f32 1.0, %v1174
  %v1176 = vtanh.pop %v1145
  %v1177 = vmul.f32 %v1175, %v987
  %1179 = vrot.lane.b32.xlu0 %v1176, 96
  %v1180 = vpop.permute.xlu0 %1179
  %v1182 = vmul.f32 %v1175, %v1180
  %1184 = vrot.lane.b32.xlu0 %v1182, 16
  %v1185 = vpop.permute.xlu0 %1184
  %v1187 = vadd.f32 %v1177, %v1185
  %v1188 = vtanh.pop %v1187
  %1190 = vrot.lane.b32.xlu0 %v1188, 32
  %v1191 = vpop.permute.xlu0 %1190
  %v1193 = vmul.f32 %v1175, %v1191
  %1195 = vrot.lane.b32.xlu0 %v1169, 32
  %v1196 = vpop.permute.xlu0 %1195
  %v1197 = vsel %vm90, %v1196, 0
  %1199 = vmatprep.subr.mxu0 0.0
  %1200 = vmatpush1.msra.mxu0 %v278
  %1201 = vmatprep.subr.mxu0 0.0
  %1202 = vmatpush1.msra.mxu0 %v279
  %1203 = vmatprep.subr.mxu0 0.0
  %1204 = vmatpush1.msra.mxu0 %v280
  %1205 = vmatprep.subr.mxu0 0.0
  %1206 = vmatpush1.msra.mxu0 %v281
  %1207 = vmatprep.subr.mxu0 0.0
  %1208 = vmatpush1.msra.mxu0 0.0
  %1209 = vmatprep.subr.mxu0 0.0
  %1210 = vmatpush1.msra.mxu0 0.0
  %1211 = vmatprep.subr.mxu0 0.0
  %1212 = vmatpush1.msra.mxu0 0.0
  %1213 = vmatprep.subr.mxu0 0.0
  %1214 = vmatpush1.msra.mxu0 0.0
  %1215 = vmatprep.subr.mxu0 0.0
  %1216 = vmatpush1.msra.mxu0 0.0
  %1217 = vmatprep.subr.mxu0 0.0
  %1218 = vmatpush1.msra.mxu0 0.0
  %1219 = vmatprep.subr.mxu0 0.0
  %1220 = vmatpush1.msra.mxu0 0.0
  %1221 = vmatprep.subr.mxu0 0.0
  %1222 = vmatpush1.msra.mxu0 0.0
  %1223 = vmatprep.subr.mxu0 0.0
  %1224 = vmatpush1.msra.mxu0 0.0
  %1225 = vmatprep.subr.mxu0 0.0
  %1226 = vmatpush1.msra.mxu0 0.0
  %1227 = vmatprep.subr.mxu0 0.0
  %1228 = vmatpush1.msra.mxu0 0.0
  %1229 = vmatprep.subr.mxu0 0.0
  %1230 = vmatpush1.msra.mxu0 0.0
  %1231 = vmatprep.subr.mxu0 0.0
  %1232 = vmatpush1.msra.mxu0 0.0
  %1233 = vmatprep.subr.mxu0 0.0
  %1234 = vmatpush1.msra.mxu0 0.0
  %1235 = vmatprep.subr.mxu0 0.0
  %1236 = vmatpush1.msra.mxu0 0.0
  %1237 = vmatprep.subr.mxu0 0.0
  %1238 = vmatpush1.msra.mxu0 0.0
  %1239 = vmatprep.subr.mxu0 0.0
  %1240 = vmatpush1.msra.mxu0 0.0
  %1241 = vmatprep.subr.mxu0 0.0
  %1242 = vmatpush1.msra.mxu0 0.0
  %1243 = vmatprep.subr.mxu0 0.0
  %1244 = vmatpush1.msra.mxu0 0.0
  %1245 = vmatprep.subr.mxu0 0.0
  %1246 = vmatpush1.msra.mxu0 0.0
  %1247 = vmatprep.subr.mxu0 0.0
  %1248 = vmatpush1.msra.mxu0 0.0
  %1249 = vmatprep.subr.mxu0 0.0
  %1250 = vmatpush1.msra.mxu0 0.0
  %1251 = vmatprep.subr.mxu0 0.0
  %1252 = vmatpush1.msra.mxu0 0.0
  %1253 = vmatprep.subr.mxu0 0.0
  %1254 = vmatpush1.msra.mxu0 0.0
  %1255 = vmatprep.subr.mxu0 0.0
  %1256 = vmatpush1.msra.mxu0 0.0
  %1257 = vmatprep.subr.mxu0 0.0
  %1258 = vmatpush1.msra.mxu0 0.0
  %1259 = vmatprep.subr.mxu0 0.0
  %1260 = vmatpush1.msra.mxu0 0.0
  %1261 = vmatprep.subr.mxu0 0.0
  %1262 = vmatpush1.msra.mxu0 0.0
  %1263 = vmatprep.mubr.f32.mxu0 0.0
  %1264 = vmatmul.mubr.f32.gmra.mrb[0].mxu0 %v1197
  %v1265 = vpop.f32.mrb[0].mxu0
  %v1266 = vadd.f32 0.0, %v1265
  %v1267 = vpop.f32.mrb[0].mxu0
  %1268 = vdwg.mxu0
  %v1269 = vadd.f32 %v440, %v1266
  %1271 = vrot.lane.b32.xlu0 %v1193, 80
  %v1272 = vpop.permute.xlu0 %1271
  %v1273 = vsel %vm164, %v1272, 0
  %1275 = vmatprep.subr.mxu0 0.0
  %1276 = vmatpush1.msra.mxu0 %v441
  %1277 = vmatprep.subr.mxu0 0.0
  %1278 = vmatpush1.msra.mxu0 %v442
  %1279 = vmatprep.subr.mxu0 0.0
  %1280 = vmatpush1.msra.mxu0 0.0
  %1281 = vmatprep.subr.mxu0 0.0
  %1282 = vmatpush1.msra.mxu0 0.0
  %1283 = vmatprep.subr.mxu0 0.0
  %1284 = vmatpush1.msra.mxu0 0.0
  %1285 = vmatprep.subr.mxu0 0.0
  %1286 = vmatpush1.msra.mxu0 0.0
  %1287 = vmatprep.subr.mxu0 0.0
  %1288 = vmatpush1.msra.mxu0 0.0
  %1289 = vmatprep.subr.mxu0 0.0
  %1290 = vmatpush1.msra.mxu0 0.0
  %1291 = vmatprep.subr.mxu0 0.0
  %1292 = vmatpush1.msra.mxu0 0.0
  %1293 = vmatprep.subr.mxu0 0.0
  %1294 = vmatpush1.msra.mxu0 0.0
  %1295 = vmatprep.subr.mxu0 0.0
  %1296 = vmatpush1.msra.mxu0 0.0
  %1297 = vmatprep.subr.mxu0 0.0
  %1298 = vmatpush1.msra.mxu0 0.0
  %1299 = vmatprep.subr.mxu0 0.0
  %1300 = vmatpush1.msra.mxu0 0.0
  %1301 = vmatprep.subr.mxu0 0.0
  %1302 = vmatpush1.msra.mxu0 0.0
  %1303 = vmatprep.subr.mxu0 0.0
  %1304 = vmatpush1.msra.mxu0 0.0
  %1305 = vmatprep.subr.mxu0 0.0
  %1306 = vmatpush1.msra.mxu0 0.0
  %1307 = vmatprep.subr.mxu0 0.0
  %1308 = vmatpush1.msra.mxu0 0.0
  %1309 = vmatprep.subr.mxu0 0.0
  %1310 = vmatpush1.msra.mxu0 0.0
  %1311 = vmatprep.subr.mxu0 0.0
  %1312 = vmatpush1.msra.mxu0 0.0
  %1313 = vmatprep.subr.mxu0 0.0
  %1314 = vmatpush1.msra.mxu0 0.0
  %1315 = vmatprep.subr.mxu0 0.0
  %1316 = vmatpush1.msra.mxu0 0.0
  %1317 = vmatprep.subr.mxu0 0.0
  %1318 = vmatpush1.msra.mxu0 0.0
  %1319 = vmatprep.subr.mxu0 0.0
  %1320 = vmatpush1.msra.mxu0 0.0
  %1321 = vmatprep.subr.mxu0 0.0
  %1322 = vmatpush1.msra.mxu0 0.0
  %1323 = vmatprep.subr.mxu0 0.0
  %1324 = vmatpush1.msra.mxu0 0.0
  %1325 = vmatprep.subr.mxu0 0.0
  %1326 = vmatpush1.msra.mxu0 0.0
  %1327 = vmatprep.subr.mxu0 0.0
  %1328 = vmatpush1.msra.mxu0 0.0
  %1329 = vmatprep.subr.mxu0 0.0
  %1330 = vmatpush1.msra.mxu0 0.0
  %1331 = vmatprep.subr.mxu0 0.0
  %1332 = vmatpush1.msra.mxu0 0.0
  %1333 = vmatprep.subr.mxu0 0.0
  %1334 = vmatpush1.msra.mxu0 0.0
  %1335 = vmatprep.subr.mxu0 0.0
  %1336 = vmatpush1.msra.mxu0 0.0
  %1337 = vmatprep.subr.mxu0 0.0
  %1338 = vmatpush1.msra.mxu0 0.0
  %1339 = vmatprep.mubr.f32.mxu0 0.0
  %1340 = vmatmul.mubr.f32.gmra.mrb[0].mxu0 %v1273
  %v1341 = vpop.f32.mrb[0].mxu0
  %v1342 = vadd.f32 0.0, %v1341
  %v1343 = vpop.f32.mrb[0].mxu0
  %1344 = vdwg.mxu0
  %v1345 = vadd.f32 %v598, %v1342
  %v1346 = vxor.u32 %v1269, 2147483648
  %v1347 = vmul.f32 %v1346, 1.442695
  %v1348 = vpow.pop %v1347
  %v1349 = vadd.f32 %v1348, 1.0
  %v1350 = vrcp.pop %v1349
  %v1351 = vmul.f32 1.0, %v1350
  %v1352 = vtanh.pop %v1269
  %v1353 = vmul.f32 %v1351, %v1163
  %1355 = vrot.lane.b32.xlu0 %v1352, 64
  %v1356 = vpop.permute.xlu0 %1355
  %v1358 = vmul.f32 %v1351, %v1356
  %1360 = vrot.lane.b32.xlu0 %v1358, 32
  %v1361 = vpop.permute.xlu0 %1360
  %v1363 = vadd.f32 %v1353, %v1361
  %v1364 = vtanh.pop %v1363
  %1366 = vrot.lane.b32.xlu0 %v1364, 64
  %v1367 = vpop.permute.xlu0 %1366
  %v1369 = vmul.f32 %v1351, %v1367
  %v1370 = vxor.u32 %v1345, 2147483648
  %v1371 = vmul.f32 %v1370, 1.442695
  %v1372 = vpow.pop %v1371
  %v1373 = vadd.f32 %v1372, 1.0
  %v1374 = vrcp.pop %v1373
  %v1375 = vmul.f32 1.0, %v1374
  %v1376 = vtanh.pop %v1345
  %v1377 = vmul.f32 %v1375, %v1187
  %1379 = vrot.lane.b32.xlu0 %v1376, 96
  %v1380 = vpop.permute.xlu0 %1379
  %v1382 = vmul.f32 %v1375, %v1380
  %1384 = vrot.lane.b32.xlu0 %v1382, 16
  %v1385 = vpop.permute.xlu0 %1384
  %v1387 = vadd.f32 %v1377, %v1385
  %v1388 = vtanh.pop %v1387
  %1390 = vrot.lane.b32.xlu0 %v1388, 32
  %v1391 = vpop.permute.xlu0 %1390
  %v1393 = vmul.f32 %v1375, %v1391
  %1395 = vrot.lane.b32.xlu0 %v1369, 32
  %v1396 = vpop.permute.xlu0 %1395
  %v1397 = vsel %vm90, %v1396, 0
  %1399 = vmatprep.subr.mxu0 0.0
  %1400 = vmatpush1.msra.mxu0 %v278
  %1401 = vmatprep.subr.mxu0 0.0
  %1402 = vmatpush1.msra.mxu0 %v279
  %1403 = vmatprep.subr.mxu0 0.0
  %1404 = vmatpush1.msra.mxu0 %v280
  %1405 = vmatprep.subr.mxu0 0.0
  %1406 = vmatpush1.msra.mxu0 %v281
  %1407 = vmatprep.subr.mxu0 0.0
  %1408 = vmatpush1.msra.mxu0 0.0
  %1409 = vmatprep.subr.mxu0 0.0
  %1410 = vmatpush1.msra.mxu0 0.0
  %1411 = vmatprep.subr.mxu0 0.0
  %1412 = vmatpush1.msra.mxu0 0.0
  %1413 = vmatprep.subr.mxu0 0.0
  %1414 = vmatpush1.msra.mxu0 0.0
  %1415 = vmatprep.subr.mxu0 0.0
  %1416 = vmatpush1.msra.mxu0 0.0
  %1417 = vmatprep.subr.mxu0 0.0
  %1418 = vmatpush1.msra.mxu0 0.0
  %1419 = vmatprep.subr.mxu0 0.0
  %1420 = vmatpush1.msra.mxu0 0.0
  %1421 = vmatprep.subr.mxu0 0.0
  %1422 = vmatpush1.msra.mxu0 0.0
  %1423 = vmatprep.subr.mxu0 0.0
  %1424 = vmatpush1.msra.mxu0 0.0
  %1425 = vmatprep.subr.mxu0 0.0
  %1426 = vmatpush1.msra.mxu0 0.0
  %1427 = vmatprep.subr.mxu0 0.0
  %1428 = vmatpush1.msra.mxu0 0.0
  %1429 = vmatprep.subr.mxu0 0.0
  %1430 = vmatpush1.msra.mxu0 0.0
  %1431 = vmatprep.subr.mxu0 0.0
  %1432 = vmatpush1.msra.mxu0 0.0
  %1433 = vmatprep.subr.mxu0 0.0
  %1434 = vmatpush1.msra.mxu0 0.0
  %1435 = vmatprep.subr.mxu0 0.0
  %1436 = vmatpush1.msra.mxu0 0.0
  %1437 = vmatprep.subr.mxu0 0.0
  %1438 = vmatpush1.msra.mxu0 0.0
  %1439 = vmatprep.subr.mxu0 0.0
  %1440 = vmatpush1.msra.mxu0 0.0
  %1441 = vmatprep.subr.mxu0 0.0
  %1442 = vmatpush1.msra.mxu0 0.0
  %1443 = vmatprep.subr.mxu0 0.0
  %1444 = vmatpush1.msra.mxu0 0.0
  %1445 = vmatprep.subr.mxu0 0.0
  %1446 = vmatpush1.msra.mxu0 0.0
  %1447 = vmatprep.subr.mxu0 0.0
  %1448 = vmatpush1.msra.mxu0 0.0
  %1449 = vmatprep.subr.mxu0 0.0
  %1450 = vmatpush1.msra.mxu0 0.0
  %1451 = vmatprep.subr.mxu0 0.0
  %1452 = vmatpush1.msra.mxu0 0.0
  %1453 = vmatprep.subr.mxu0 0.0
  %1454 = vmatpush1.msra.mxu0 0.0
  %1455 = vmatprep.subr.mxu0 0.0
  %1456 = vmatpush1.msra.mxu0 0.0
  %1457 = vmatprep.subr.mxu0 0.0
  %1458 = vmatpush1.msra.mxu0 0.0
  %1459 = vmatprep.subr.mxu0 0.0
  %1460 = vmatpush1.msra.mxu0 0.0
  %1461 = vmatprep.subr.mxu0 0.0
  %1462 = vmatpush1.msra.mxu0 0.0
  %1463 = vmatprep.mubr.f32.mxu0 0.0
  %1464 = vmatmul.mubr.f32.gmra.mrb[0].mxu0 %v1397
  %v1465 = vpop.f32.mrb[0].mxu0
  %v1466 = vadd.f32 0.0, %v1465
  %v1467 = vpop.f32.mrb[0].mxu0
  %1468 = vdwg.mxu0
  %v1469 = vadd.f32 %v440, %v1466
  %1471 = vrot.lane.b32.xlu0 %v1393, 80
  %v1472 = vpop.permute.xlu0 %1471
  %v1473 = vsel %vm164, %v1472, 0
  %1475 = vmatprep.subr.mxu0 0.0
  %1476 = vmatpush1.msra.mxu0 %v441
  %1477 = vmatprep.subr.mxu0 0.0
  %1478 = vmatpush1.msra.mxu0 %v442
  %1479 = vmatprep.subr.mxu0 0.0
  %1480 = vmatpush1.msra.mxu0 0.0
  %1481 = vmatprep.subr.mxu0 0.0
  %1482 = vmatpush1.msra.mxu0 0.0
  %1483 = vmatprep.subr.mxu0 0.0
  %1484 = vmatpush1.msra.mxu0 0.0
  %1485 = vmatprep.subr.mxu0 0.0
  %1486 = vmatpush1.msra.mxu0 0.0
  %1487 = vmatprep.subr.mxu0 0.0
  %1488 = vmatpush1.msra.mxu0 0.0
  %1489 = vmatprep.subr.mxu0 0.0
  %1490 = vmatpush1.msra.mxu0 0.0
  %1491 = vmatprep.subr.mxu0 0.0
  %1492 = vmatpush1.msra.mxu0 0.0
  %1493 = vmatprep.subr.mxu0 0.0
  %1494 = vmatpush1.msra.mxu0 0.0
  %1495 = vmatprep.subr.mxu0 0.0
  %1496 = vmatpush1.msra.mxu0 0.0
  %1497 = vmatprep.subr.mxu0 0.0
  %1498 = vmatpush1.msra.mxu0 0.0
  %1499 = vmatprep.subr.mxu0 0.0
  %1500 = vmatpush1.msra.mxu0 0.0
  %1501 = vmatprep.subr.mxu0 0.0
  %1502 = vmatpush1.msra.mxu0 0.0
  %1503 = vmatprep.subr.mxu0 0.0
  %1504 = vmatpush1.msra.mxu0 0.0
  %1505 = vmatprep.subr.mxu0 0.0
  %1506 = vmatpush1.msra.mxu0 0.0
  %1507 = vmatprep.subr.mxu0 0.0
  %1508 = vmatpush1.msra.mxu0 0.0
  %1509 = vmatprep.subr.mxu0 0.0
  %1510 = vmatpush1.msra.mxu0 0.0
  %1511 = vmatprep.subr.mxu0 0.0
  %1512 = vmatpush1.msra.mxu0 0.0
  %1513 = vmatprep.subr.mxu0 0.0
  %1514 = vmatpush1.msra.mxu0 0.0
  %1515 = vmatprep.subr.mxu0 0.0
  %1516 = vmatpush1.msra.mxu0 0.0
  %1517 = vmatprep.subr.mxu0 0.0
  %1518 = vmatpush1.msra.mxu0 0.0
  %1519 = vmatprep.subr.mxu0 0.0
  %1520 = vmatpush1.msra.mxu0 0.0
  %1521 = vmatprep.subr.mxu0 0.0
  %1522 = vmatpush1.msra.mxu0 0.0
  %1523 = vmatprep.subr.mxu0 0.0
  %1524 = vmatpush1.msra.mxu0 0.0
  %1525 = vmatprep.subr.mxu0 0.0
  %1526 = vmatpush1.msra.mxu0 0.0
  %1527 = vmatprep.subr.mxu0 0.0
  %1528 = vmatpush1.msra.mxu0 0.0
  %1529 = vmatprep.subr.mxu0 0.0
  %1530 = vmatpush1.msra.mxu0 0.0
  %1531 = vmatprep.subr.mxu0 0.0
  %1532 = vmatpush1.msra.mxu0 0.0
  %1533 = vmatprep.subr.mxu0 0.0
  %1534 = vmatpush1.msra.mxu0 0.0
  %1535 = vmatprep.subr.mxu0 0.0
  %1536 = vmatpush1.msra.mxu0 0.0
  %1537 = vmatprep.subr.mxu0 0.0
  %1538 = vmatpush1.msra.mxu0 0.0
  %1539 = vmatprep.mubr.f32.mxu0 0.0
  %1540 = vmatmul.mubr.f32.gmra.mrb[0].mxu0 %v1473
  %v1541 = vpop.f32.mrb[0].mxu0
  %v1542 = vadd.f32 0.0, %v1541
  %v1543 = vpop.f32.mrb[0].mxu0
  %1544 = vdwg.mxu0
  %v1545 = vadd.f32 %v598, %v1542
  %v1546 = vxor.u32 %v1469, 2147483648
  %v1547 = vmul.f32 %v1546, 1.442695
  %v1548 = vpow.pop %v1547
  %v1549 = vadd.f32 %v1548, 1.0
  %v1550 = vrcp.pop %v1549
  %v1551 = vmul.f32 1.0, %v1550
  %v1552 = vtanh.pop %v1469
  %v1553 = vmul.f32 %v1551, %v1363
  %1555 = vrot.lane.b32.xlu0 %v1552, 64
  %v1556 = vpop.permute.xlu0 %1555
  %v1558 = vmul.f32 %v1551, %v1556
  %1560 = vrot.lane.b32.xlu0 %v1558, 32
  %v1561 = vpop.permute.xlu0 %1560
  %v1563 = vadd.f32 %v1553, %v1561
  %v1564 = vtanh.pop %v1563
  %1566 = vrot.lane.b32.xlu0 %v1564, 64
  %v1567 = vpop.permute.xlu0 %1566
  %v1569 = vmul.f32 %v1551, %v1567
  %v1570 = vxor.u32 %v1545, 2147483648
  %v1571 = vmul.f32 %v1570, 1.442695
  %v1572 = vpow.pop %v1571
  %v1573 = vadd.f32 %v1572, 1.0
  %v1574 = vrcp.pop %v1573
  %v1575 = vmul.f32 1.0, %v1574
  %v1576 = vtanh.pop %v1545
  %v1577 = vmul.f32 %v1575, %v1387
  %1579 = vrot.lane.b32.xlu0 %v1576, 96
  %v1580 = vpop.permute.xlu0 %1579
  %v1582 = vmul.f32 %v1575, %v1580
  %1584 = vrot.lane.b32.xlu0 %v1582, 16
  %v1585 = vpop.permute.xlu0 %1584
  %v1587 = vadd.f32 %v1577, %v1585
  %v1588 = vtanh.pop %v1587
  %1590 = vrot.lane.b32.xlu0 %v1588, 32
  %v1591 = vpop.permute.xlu0 %1590
  %v1593 = vmul.f32 %v1575, %v1591
  %1595 = vrot.lane.b32.xlu0 %v1569, 32
  %v1596 = vpop.permute.xlu0 %1595
  %v1597 = vsel %vm90, %v1596, 0
  %1599 = vmatprep.subr.mxu0 0.0
  %1600 = vmatpush1.msra.mxu0 %v278
  %1601 = vmatprep.subr.mxu0 0.0
  %1602 = vmatpush1.msra.mxu0 %v279
  %1603 = vmatprep.subr.mxu0 0.0
  %1604 = vmatpush1.msra.mxu0 %v280
  %1605 = vmatprep.subr.mxu0 0.0
  %1606 = vmatpush1.msra.mxu0 %v281
  %1607 = vmatprep.subr.mxu0 0.0
  %1608 = vmatpush1.msra.mxu0 0.0
  %1609 = vmatprep.subr.mxu0 0.0
  %1610 = vmatpush1.msra.mxu0 0.0
  %1611 = vmatprep.subr.mxu0 0.0
  %1612 = vmatpush1.msra.mxu0 0.0
  %1613 = vmatprep.subr.mxu0 0.0
  %1614 = vmatpush1.msra.mxu0 0.0
  %1615 = vmatprep.subr.mxu0 0.0
  %1616 = vmatpush1.msra.mxu0 0.0
  %1617 = vmatprep.subr.mxu0 0.0
  %1618 = vmatpush1.msra.mxu0 0.0
  %1619 = vmatprep.subr.mxu0 0.0
  %1620 = vmatpush1.msra.mxu0 0.0
  %1621 = vmatprep.subr.mxu0 0.0
  %1622 = vmatpush1.msra.mxu0 0.0
  %1623 = vmatprep.subr.mxu0 0.0
  %1624 = vmatpush1.msra.mxu0 0.0
  %1625 = vmatprep.subr.mxu0 0.0
  %1626 = vmatpush1.msra.mxu0 0.0
  %1627 = vmatprep.subr.mxu0 0.0
  %1628 = vmatpush1.msra.mxu0 0.0
  %1629 = vmatprep.subr.mxu0 0.0
  %1630 = vmatpush1.msra.mxu0 0.0
  %1631 = vmatprep.subr.mxu0 0.0
  %1632 = vmatpush1.msra.mxu0 0.0
  %1633 = vmatprep.subr.mxu0 0.0
  %1634 = vmatpush1.msra.mxu0 0.0
  %1635 = vmatprep.subr.mxu0 0.0
  %1636 = vmatpush1.msra.mxu0 0.0
  %1637 = vmatprep.subr.mxu0 0.0
  %1638 = vmatpush1.msra.mxu0 0.0
  %1639 = vmatprep.subr.mxu0 0.0
  %1640 = vmatpush1.msra.mxu0 0.0
  %1641 = vmatprep.subr.mxu0 0.0
  %1642 = vmatpush1.msra.mxu0 0.0
  %1643 = vmatprep.subr.mxu0 0.0
  %1644 = vmatpush1.msra.mxu0 0.0
  %1645 = vmatprep.subr.mxu0 0.0
  %1646 = vmatpush1.msra.mxu0 0.0
  %1647 = vmatprep.subr.mxu0 0.0
  %1648 = vmatpush1.msra.mxu0 0.0
  %1649 = vmatprep.subr.mxu0 0.0
  %1650 = vmatpush1.msra.mxu0 0.0
  %1651 = vmatprep.subr.mxu0 0.0
  %1652 = vmatpush1.msra.mxu0 0.0
  %1653 = vmatprep.subr.mxu0 0.0
  %1654 = vmatpush1.msra.mxu0 0.0
  %1655 = vmatprep.subr.mxu0 0.0
  %1656 = vmatpush1.msra.mxu0 0.0
  %1657 = vmatprep.subr.mxu0 0.0
  %1658 = vmatpush1.msra.mxu0 0.0
  %1659 = vmatprep.subr.mxu0 0.0
  %1660 = vmatpush1.msra.mxu0 0.0
  %1661 = vmatprep.subr.mxu0 0.0
  %1662 = vmatpush1.msra.mxu0 0.0
  %1663 = vmatprep.mubr.f32.mxu0 0.0
  %1664 = vmatmul.mubr.f32.gmra.mrb[0].mxu0 %v1597
  %v1665 = vpop.f32.mrb[0].mxu0
  %v1666 = vadd.f32 0.0, %v1665
  %v1667 = vpop.f32.mrb[0].mxu0
  %1668 = vdwg.mxu0
  %v1669 = vadd.f32 %v440, %v1666
  %1671 = vrot.lane.b32.xlu0 %v1593, 80
  %v1672 = vpop.permute.xlu0 %1671
  %v1673 = vsel %vm164, %v1672, 0
  %1675 = vmatprep.subr.mxu0 0.0
  %1676 = vmatpush1.msra.mxu0 %v441
  %1677 = vmatprep.subr.mxu0 0.0
  %1678 = vmatpush1.msra.mxu0 %v442
  %1679 = vmatprep.subr.mxu0 0.0
  %1680 = vmatpush1.msra.mxu0 0.0
  %1681 = vmatprep.subr.mxu0 0.0
  %1682 = vmatpush1.msra.mxu0 0.0
  %1683 = vmatprep.subr.mxu0 0.0
  %1684 = vmatpush1.msra.mxu0 0.0
  %1685 = vmatprep.subr.mxu0 0.0
  %1686 = vmatpush1.msra.mxu0 0.0
  %1687 = vmatprep.subr.mxu0 0.0
  %1688 = vmatpush1.msra.mxu0 0.0
  %1689 = vmatprep.subr.mxu0 0.0
  %1690 = vmatpush1.msra.mxu0 0.0
  %1691 = vmatprep.subr.mxu0 0.0
  %1692 = vmatpush1.msra.mxu0 0.0
  %1693 = vmatprep.subr.mxu0 0.0
  %1694 = vmatpush1.msra.mxu0 0.0
  %1695 = vmatprep.subr.mxu0 0.0
  %1696 = vmatpush1.msra.mxu0 0.0
  %1697 = vmatprep.subr.mxu0 0.0
  %1698 = vmatpush1.msra.mxu0 0.0
  %1699 = vmatprep.subr.mxu0 0.0
  %1700 = vmatpush1.msra.mxu0 0.0
  %1701 = vmatprep.subr.mxu0 0.0
  %1702 = vmatpush1.msra.mxu0 0.0
  %1703 = vmatprep.subr.mxu0 0.0
  %1704 = vmatpush1.msra.mxu0 0.0
  %1705 = vmatprep.subr.mxu0 0.0
  %1706 = vmatpush1.msra.mxu0 0.0
  %1707 = vmatprep.subr.mxu0 0.0
  %1708 = vmatpush1.msra.mxu0 0.0
  %1709 = vmatprep.subr.mxu0 0.0
  %1710 = vmatpush1.msra.mxu0 0.0
  %1711 = vmatprep.subr.mxu0 0.0
  %1712 = vmatpush1.msra.mxu0 0.0
  %1713 = vmatprep.subr.mxu0 0.0
  %1714 = vmatpush1.msra.mxu0 0.0
  %1715 = vmatprep.subr.mxu0 0.0
  %1716 = vmatpush1.msra.mxu0 0.0
  %1717 = vmatprep.subr.mxu0 0.0
  %1718 = vmatpush1.msra.mxu0 0.0
  %1719 = vmatprep.subr.mxu0 0.0
  %1720 = vmatpush1.msra.mxu0 0.0
  %1721 = vmatprep.subr.mxu0 0.0
  %1722 = vmatpush1.msra.mxu0 0.0
  %1723 = vmatprep.subr.mxu0 0.0
  %1724 = vmatpush1.msra.mxu0 0.0
  %1725 = vmatprep.subr.mxu0 0.0
  %1726 = vmatpush1.msra.mxu0 0.0
  %1727 = vmatprep.subr.mxu0 0.0
  %1728 = vmatpush1.msra.mxu0 0.0
  %1729 = vmatprep.subr.mxu0 0.0
  %1730 = vmatpush1.msra.mxu0 0.0
  %1731 = vmatprep.subr.mxu0 0.0
  %1732 = vmatpush1.msra.mxu0 0.0
  %1733 = vmatprep.subr.mxu0 0.0
  %1734 = vmatpush1.msra.mxu0 0.0
  %1735 = vmatprep.subr.mxu0 0.0
  %1736 = vmatpush1.msra.mxu0 0.0
  %1737 = vmatprep.subr.mxu0 0.0
  %1738 = vmatpush1.msra.mxu0 0.0
  %1739 = vmatprep.mubr.f32.mxu0 0.0
  %1740 = vmatmul.mubr.f32.gmra.mrb[0].mxu0 %v1673
  %v1741 = vpop.f32.mrb[0].mxu0
  %v1742 = vadd.f32 0.0, %v1741
  %v1743 = vpop.f32.mrb[0].mxu0
  %1744 = vdwg.mxu0
  %v1745 = vadd.f32 %v598, %v1742
  %v1746 = vxor.u32 %v1669, 2147483648
  %v1747 = vmul.f32 %v1746, 1.442695
  %v1748 = vpow.pop %v1747
  %v1749 = vadd.f32 %v1748, 1.0
  %v1750 = vrcp.pop %v1749
  %v1751 = vmul.f32 1.0, %v1750
  %v1752 = vtanh.pop %v1669
  %v1753 = vmul.f32 %v1751, %v1563
  %1755 = vrot.lane.b32.xlu0 %v1752, 64
  %v1756 = vpop.permute.xlu0 %1755
  %v1758 = vmul.f32 %v1751, %v1756
  %1760 = vrot.lane.b32.xlu0 %v1758, 32
  %v1761 = vpop.permute.xlu0 %1760
  %v1763 = vadd.f32 %v1753, %v1761
  %v1764 = vtanh.pop %v1763
  %1766 = vrot.lane.b32.xlu0 %v1764, 64
  %v1767 = vpop.permute.xlu0 %1766
  %v1769 = vmul.f32 %v1751, %v1767
  %v1770 = vxor.u32 %v1745, 2147483648
  %v1771 = vmul.f32 %v1770, 1.442695
  %v1772 = vpow.pop %v1771
  %v1773 = vadd.f32 %v1772, 1.0
  %v1774 = vrcp.pop %v1773
  %v1775 = vmul.f32 1.0, %v1774
  %v1776 = vtanh.pop %v1745
  %v1777 = vmul.f32 %v1775, %v1587
  %1779 = vrot.lane.b32.xlu0 %v1776, 96
  %v1780 = vpop.permute.xlu0 %1779
  %v1782 = vmul.f32 %v1775, %v1780
  %1784 = vrot.lane.b32.xlu0 %v1782, 16
  %v1785 = vpop.permute.xlu0 %1784
  %v1787 = vadd.f32 %v1777, %v1785
  %v1788 = vtanh.pop %v1787
  %1790 = vrot.lane.b32.xlu0 %v1788, 32
  %v1791 = vpop.permute.xlu0 %1790
  %v1793 = vmul.f32 %v1775, %v1791
  %1795 = vrot.lane.b32.xlu0 %v1769, 32
  %v1796 = vpop.permute.xlu0 %1795
  %v1797 = vsel %vm90, %v1796, 0
  %1799 = vmatprep.subr.mxu0 0.0
  %1800 = vmatpush1.msra.mxu0 %v278
  %1801 = vmatprep.subr.mxu0 0.0
  %1802 = vmatpush1.msra.mxu0 %v279
  %1803 = vmatprep.subr.mxu0 0.0
  %1804 = vmatpush1.msra.mxu0 %v280
  %1805 = vmatprep.subr.mxu0 0.0
  %1806 = vmatpush1.msra.mxu0 %v281
  %1807 = vmatprep.subr.mxu0 0.0
  %1808 = vmatpush1.msra.mxu0 0.0
  %1809 = vmatprep.subr.mxu0 0.0
  %1810 = vmatpush1.msra.mxu0 0.0
  %1811 = vmatprep.subr.mxu0 0.0
  %1812 = vmatpush1.msra.mxu0 0.0
  %1813 = vmatprep.subr.mxu0 0.0
  %1814 = vmatpush1.msra.mxu0 0.0
  %1815 = vmatprep.subr.mxu0 0.0
  %1816 = vmatpush1.msra.mxu0 0.0
  %1817 = vmatprep.subr.mxu0 0.0
  %1818 = vmatpush1.msra.mxu0 0.0
  %1819 = vmatprep.subr.mxu0 0.0
  %1820 = vmatpush1.msra.mxu0 0.0
  %1821 = vmatprep.subr.mxu0 0.0
  %1822 = vmatpush1.msra.mxu0 0.0
  %1823 = vmatprep.subr.mxu0 0.0
  %1824 = vmatpush1.msra.mxu0 0.0
  %1825 = vmatprep.subr.mxu0 0.0
  %1826 = vmatpush1.msra.mxu0 0.0
  %1827 = vmatprep.subr.mxu0 0.0
  %1828 = vmatpush1.msra.mxu0 0.0
  %1829 = vmatprep.subr.mxu0 0.0
  %1830 = vmatpush1.msra.mxu0 0.0
  %1831 = vmatprep.subr.mxu0 0.0
  %1832 = vmatpush1.msra.mxu0 0.0
  %1833 = vmatprep.subr.mxu0 0.0
  %1834 = vmatpush1.msra.mxu0 0.0
  %1835 = vmatprep.subr.mxu0 0.0
  %1836 = vmatpush1.msra.mxu0 0.0
  %1837 = vmatprep.subr.mxu0 0.0
  %1838 = vmatpush1.msra.mxu0 0.0
  %1839 = vmatprep.subr.mxu0 0.0
  %1840 = vmatpush1.msra.mxu0 0.0
  %1841 = vmatprep.subr.mxu0 0.0
  %1842 = vmatpush1.msra.mxu0 0.0
  %1843 = vmatprep.subr.mxu0 0.0
  %1844 = vmatpush1.msra.mxu0 0.0
  %1845 = vmatprep.subr.mxu0 0.0
  %1846 = vmatpush1.msra.mxu0 0.0
  %1847 = vmatprep.subr.mxu0 0.0
  %1848 = vmatpush1.msra.mxu0 0.0
  %1849 = vmatprep.subr.mxu0 0.0
  %1850 = vmatpush1.msra.mxu0 0.0
  %1851 = vmatprep.subr.mxu0 0.0
  %1852 = vmatpush1.msra.mxu0 0.0
  %1853 = vmatprep.subr.mxu0 0.0
  %1854 = vmatpush1.msra.mxu0 0.0
  %1855 = vmatprep.subr.mxu0 0.0
  %1856 = vmatpush1.msra.mxu0 0.0
  %1857 = vmatprep.subr.mxu0 0.0
  %1858 = vmatpush1.msra.mxu0 0.0
  %1859 = vmatprep.subr.mxu0 0.0
  %1860 = vmatpush1.msra.mxu0 0.0
  %1861 = vmatprep.subr.mxu0 0.0
  %1862 = vmatpush1.msra.mxu0 0.0
  %1863 = vmatprep.mubr.f32.mxu0 0.0
  %1864 = vmatmul.mubr.f32.gmra.mrb[0].mxu0 %v1797
  %v1865 = vpop.f32.mrb[0].mxu0
  %v1866 = vadd.f32 0.0, %v1865
  %v1867 = vpop.f32.mrb[0].mxu0
  %1868 = vdwg.mxu0
  %v1869 = vadd.f32 %v440, %v1866
  %1871 = vrot.lane.b32.xlu0 %v1793, 80
  %v1872 = vpop.permute.xlu0 %1871
  %v1873 = vsel %vm164, %v1872, 0
  %1875 = vmatprep.subr.mxu0 0.0
  %1876 = vmatpush1.msra.mxu0 %v441
  %1877 = vmatprep.subr.mxu0 0.0
  %1878 = vmatpush1.msra.mxu0 %v442
  %1879 = vmatprep.subr.mxu0 0.0
  %1880 = vmatpush1.msra.mxu0 0.0
  %1881 = vmatprep.subr.mxu0 0.0
  %1882 = vmatpush1.msra.mxu0 0.0
  %1883 = vmatprep.subr.mxu0 0.0
  %1884 = vmatpush1.msra.mxu0 0.0
  %1885 = vmatprep.subr.mxu0 0.0
  %1886 = vmatpush1.msra.mxu0 0.0
  %1887 = vmatprep.subr.mxu0 0.0
  %1888 = vmatpush1.msra.mxu0 0.0
  %1889 = vmatprep.subr.mxu0 0.0
  %1890 = vmatpush1.msra.mxu0 0.0
  %1891 = vmatprep.subr.mxu0 0.0
  %1892 = vmatpush1.msra.mxu0 0.0
  %1893 = vmatprep.subr.mxu0 0.0
  %1894 = vmatpush1.msra.mxu0 0.0
  %1895 = vmatprep.subr.mxu0 0.0
  %1896 = vmatpush1.msra.mxu0 0.0
  %1897 = vmatprep.subr.mxu0 0.0
  %1898 = vmatpush1.msra.mxu0 0.0
  %1899 = vmatprep.subr.mxu0 0.0
  %1900 = vmatpush1.msra.mxu0 0.0
  %1901 = vmatprep.subr.mxu0 0.0
  %1902 = vmatpush1.msra.mxu0 0.0
  %1903 = vmatprep.subr.mxu0 0.0
  %1904 = vmatpush1.msra.mxu0 0.0
  %1905 = vmatprep.subr.mxu0 0.0
  %1906 = vmatpush1.msra.mxu0 0.0
  %1907 = vmatprep.subr.mxu0 0.0
  %1908 = vmatpush1.msra.mxu0 0.0
  %1909 = vmatprep.subr.mxu0 0.0
  %1910 = vmatpush1.msra.mxu0 0.0
  %1911 = vmatprep.subr.mxu0 0.0
  %1912 = vmatpush1.msra.mxu0 0.0
  %1913 = vmatprep.subr.mxu0 0.0
  %1914 = vmatpush1.msra.mxu0 0.0
  %1915 = vmatprep.subr.mxu0 0.0
  %1916 = vmatpush1.msra.mxu0 0.0
  %1917 = vmatprep.subr.mxu0 0.0
  %1918 = vmatpush1.msra.mxu0 0.0
  %1919 = vmatprep.subr.mxu0 0.0
  %1920 = vmatpush1.msra.mxu0 0.0
  %1921 = vmatprep.subr.mxu0 0.0
  %1922 = vmatpush1.msra.mxu0 0.0
  %1923 = vmatprep.subr.mxu0 0.0
  %1924 = vmatpush1.msra.mxu0 0.0
  %1925 = vmatprep.subr.mxu0 0.0
  %1926 = vmatpush1.msra.mxu0 0.0
  %1927 = vmatprep.subr.mxu0 0.0
  %1928 = vmatpush1.msra.mxu0 0.0
  %1929 = vmatprep.subr.mxu0 0.0
  %1930 = vmatpush1.msra.mxu0 0.0
  %1931 = vmatprep.subr.mxu0 0.0
  %1932 = vmatpush1.msra.mxu0 0.0
  %1933 = vmatprep.subr.mxu0 0.0
  %1934 = vmatpush1.msra.mxu0 0.0
  %1935 = vmatprep.subr.mxu0 0.0
  %1936 = vmatpush1.msra.mxu0 0.0
  %1937 = vmatprep.subr.mxu0 0.0
  %1938 = vmatpush1.msra.mxu0 0.0
  %1939 = vmatprep.mubr.f32.mxu0 0.0
  %1940 = vmatmul.mubr.f32.gmra.mrb[0].mxu0 %v1873
  %v1941 = vpop.f32.mrb[0].mxu0
  %v1942 = vadd.f32 0.0, %v1941
  %v1943 = vpop.f32.mrb[0].mxu0
  %1944 = vdwg.mxu0
  %v1945 = vadd.f32 %v598, %v1942
  %v1946 = vxor.u32 %v1869, 2147483648
  %v1947 = vmul.f32 %v1946, 1.442695
  %v1948 = vpow.pop %v1947
  %v1949 = vadd.f32 %v1948, 1.0
  %v1950 = vrcp.pop %v1949
  %v1951 = vmul.f32 1.0, %v1950
  %v1952 = vtanh.pop %v1869
  %v1953 = vmul.f32 %v1951, %v1763
  %1955 = vrot.lane.b32.xlu0 %v1952, 64
  %v1956 = vpop.permute.xlu0 %1955
  %v1958 = vmul.f32 %v1951, %v1956
  %1960 = vrot.lane.b32.xlu0 %v1958, 32
  %v1961 = vpop.permute.xlu0 %1960
  %v1963 = vadd.f32 %v1953, %v1961
  %v1964 = vtanh.pop %v1963
  %1966 = vrot.lane.b32.xlu0 %v1964, 64
  %v1967 = vpop.permute.xlu0 %1966
  %v1969 = vmul.f32 %v1951, %v1967
  %v1970 = vxor.u32 %v1945, 2147483648
  %v1971 = vmul.f32 %v1970, 1.442695
  %v1972 = vpow.pop %v1971
  %v1973 = vadd.f32 %v1972, 1.0
  %v1974 = vrcp.pop %v1973
  %v1975 = vmul.f32 1.0, %v1974
  %v1976 = vtanh.pop %v1945
  %v1977 = vmul.f32 %v1975, %v1787
  %1979 = vrot.lane.b32.xlu0 %v1976, 96
  %v1980 = vpop.permute.xlu0 %1979
  %v1982 = vmul.f32 %v1975, %v1980
  %1984 = vrot.lane.b32.xlu0 %v1982, 16
  %v1985 = vpop.permute.xlu0 %1984
  %v1987 = vadd.f32 %v1977, %v1985
  %v1988 = vtanh.pop %v1987
  %1990 = vrot.lane.b32.xlu0 %v1988, 32
  %v1991 = vpop.permute.xlu0 %1990
  %v1993 = vmul.f32 %v1975, %v1991
  %1995 = vrot.lane.b32.xlu0 %v1969, 32
  %v1996 = vpop.permute.xlu0 %1995
  %v1997 = vsel %vm90, %v1996, 0
  %1999 = vmatprep.subr.mxu0 0.0
  %2000 = vmatpush1.msra.mxu0 %v278
  %2001 = vmatprep.subr.mxu0 0.0
  %2002 = vmatpush1.msra.mxu0 %v279
  %2003 = vmatprep.subr.mxu0 0.0
  %2004 = vmatpush1.msra.mxu0 %v280
  %2005 = vmatprep.subr.mxu0 0.0
  %2006 = vmatpush1.msra.mxu0 %v281
  %2007 = vmatprep.subr.mxu0 0.0
  %2008 = vmatpush1.msra.mxu0 0.0
  %2009 = vmatprep.subr.mxu0 0.0
  %2010 = vmatpush1.msra.mxu0 0.0
  %2011 = vmatprep.subr.mxu0 0.0
  %2012 = vmatpush1.msra.mxu0 0.0
  %2013 = vmatprep.subr.mxu0 0.0
  %2014 = vmatpush1.msra.mxu0 0.0
  %2015 = vmatprep.subr.mxu0 0.0
  %2016 = vmatpush1.msra.mxu0 0.0
  %2017 = vmatprep.subr.mxu0 0.0
  %2018 = vmatpush1.msra.mxu0 0.0
  %2019 = vmatprep.subr.mxu0 0.0
  %2020 = vmatpush1.msra.mxu0 0.0
  %2021 = vmatprep.subr.mxu0 0.0
  %2022 = vmatpush1.msra.mxu0 0.0
  %2023 = vmatprep.subr.mxu0 0.0
  %2024 = vmatpush1.msra.mxu0 0.0
  %2025 = vmatprep.subr.mxu0 0.0
  %2026 = vmatpush1.msra.mxu0 0.0
  %2027 = vmatprep.subr.mxu0 0.0
  %2028 = vmatpush1.msra.mxu0 0.0
  %2029 = vmatprep.subr.mxu0 0.0
  %2030 = vmatpush1.msra.mxu0 0.0
  %2031 = vmatprep.subr.mxu0 0.0
  %2032 = vmatpush1.msra.mxu0 0.0
  %2033 = vmatprep.subr.mxu0 0.0
  %2034 = vmatpush1.msra.mxu0 0.0
  %2035 = vmatprep.subr.mxu0 0.0
  %2036 = vmatpush1.msra.mxu0 0.0
  %2037 = vmatprep.subr.mxu0 0.0
  %2038 = vmatpush1.msra.mxu0 0.0
  %2039 = vmatprep.subr.mxu0 0.0
  %2040 = vmatpush1.msra.mxu0 0.0
  %2041 = vmatprep.subr.mxu0 0.0
  %2042 = vmatpush1.msra.mxu0 0.0
  %2043 = vmatprep.subr.mxu0 0.0
  %2044 = vmatpush1.msra.mxu0 0.0
  %2045 = vmatprep.subr.mxu0 0.0
  %2046 = vmatpush1.msra.mxu0 0.0
  %2047 = vmatprep.subr.mxu0 0.0
  %2048 = vmatpush1.msra.mxu0 0.0
  %2049 = vmatprep.subr.mxu0 0.0
  %2050 = vmatpush1.msra.mxu0 0.0
  %2051 = vmatprep.subr.mxu0 0.0
  %2052 = vmatpush1.msra.mxu0 0.0
  %2053 = vmatprep.subr.mxu0 0.0
  %2054 = vmatpush1.msra.mxu0 0.0
  %2055 = vmatprep.subr.mxu0 0.0
  %2056 = vmatpush1.msra.mxu0 0.0
  %2057 = vmatprep.subr.mxu0 0.0
  %2058 = vmatpush1.msra.mxu0 0.0
  %2059 = vmatprep.subr.mxu0 0.0
  %2060 = vmatpush1.msra.mxu0 0.0
  %2061 = vmatprep.subr.mxu0 0.0
  %2062 = vmatpush1.msra.mxu0 0.0
  %2063 = vmatprep.mubr.f32.mxu0 0.0
  %2064 = vmatmul.mubr.f32.gmra.mrb[0].mxu0 %v1997
  %v2065 = vpop.f32.mrb[0].mxu0
  %v2066 = vadd.f32 0.0, %v2065
  %v2067 = vpop.f32.mrb[0].mxu0
  %2068 = vdwg.mxu0
  %v2069 = vadd.f32 %v440, %v2066
  %2071 = vrot.lane.b32.xlu0 %v1993, 80
  %v2072 = vpop.permute.xlu0 %2071
  %v2073 = vsel %vm164, %v2072, 0
  %2075 = vmatprep.subr.mxu0 0.0
  %2076 = vmatpush1.msra.mxu0 %v441
  %2077 = vmatprep.subr.mxu0 0.0
  %2078 = vmatpush1.msra.mxu0 %v442
  %2079 = vmatprep.subr.mxu0 0.0
  %2080 = vmatpush1.msra.mxu0 0.0
  %2081 = vmatprep.subr.mxu0 0.0
  %2082 = vmatpush1.msra.mxu0 0.0
  %2083 = vmatprep.subr.mxu0 0.0
  %2084 = vmatpush1.msra.mxu0 0.0
  %2085 = vmatprep.subr.mxu0 0.0
  %2086 = vmatpush1.msra.mxu0 0.0
  %2087 = vmatprep.subr.mxu0 0.0
  %2088 = vmatpush1.msra.mxu0 0.0
  %2089 = vmatprep.subr.mxu0 0.0
  %2090 = vmatpush1.msra.mxu0 0.0
  %2091 = vmatprep.subr.mxu0 0.0
  %2092 = vmatpush1.msra.mxu0 0.0
  %2093 = vmatprep.subr.mxu0 0.0
  %2094 = vmatpush1.msra.mxu0 0.0
  %2095 = vmatprep.subr.mxu0 0.0
  %2096 = vmatpush1.msra.mxu0 0.0
  %2097 = vmatprep.subr.mxu0 0.0
  %2098 = vmatpush1.msra.mxu0 0.0
  %2099 = vmatprep.subr.mxu0 0.0
  %2100 = vmatpush1.msra.mxu0 0.0
  %2101 = vmatprep.subr.mxu0 0.0
  %2102 = vmatpush1.msra.mxu0 0.0
  %2103 = vmatprep.subr.mxu0 0.0
  %2104 = vmatpush1.msra.mxu0 0.0
  %2105 = vmatprep.subr.mxu0 0.0
  %2106 = vmatpush1.msra.mxu0 0.0
  %2107 = vmatprep.subr.mxu0 0.0
  %2108 = vmatpush1.msra.mxu0 0.0
  %2109 = vmatprep.subr.mxu0 0.0
  %2110 = vmatpush1.msra.mxu0 0.0
  %2111 = vmatprep.subr.mxu0 0.0
  %2112 = vmatpush1.msra.mxu0 0.0
  %2113 = vmatprep.subr.mxu0 0.0
  %2114 = vmatpush1.msra.mxu0 0.0
  %2115 = vmatprep.subr.mxu0 0.0
  %2116 = vmatpush1.msra.mxu0 0.0
  %2117 = vmatprep.subr.mxu0 0.0
  %2118 = vmatpush1.msra.mxu0 0.0
  %2119 = vmatprep.subr.mxu0 0.0
  %2120 = vmatpush1.msra.mxu0 0.0
  %2121 = vmatprep.subr.mxu0 0.0
  %2122 = vmatpush1.msra.mxu0 0.0
  %2123 = vmatprep.subr.mxu0 0.0
  %2124 = vmatpush1.msra.mxu0 0.0
  %2125 = vmatprep.subr.mxu0 0.0
  %2126 = vmatpush1.msra.mxu0 0.0
  %2127 = vmatprep.subr.mxu0 0.0
  %2128 = vmatpush1.msra.mxu0 0.0
  %2129 = vmatprep.subr.mxu0 0.0
  %2130 = vmatpush1.msra.mxu0 0.0
  %2131 = vmatprep.subr.mxu0 0.0
  %2132 = vmatpush1.msra.mxu0 0.0
  %2133 = vmatprep.subr.mxu0 0.0
  %2134 = vmatpush1.msra.mxu0 0.0
  %2135 = vmatprep.subr.mxu0 0.0
  %2136 = vmatpush1.msra.mxu0 0.0
  %2137 = vmatprep.subr.mxu0 0.0
  %2138 = vmatpush1.msra.mxu0 0.0
  %2139 = vmatprep.mubr.f32.mxu0 0.0
  %2140 = vmatmul.mubr.f32.gmra.mrb[0].mxu0 %v2073
  %v2141 = vpop.f32.mrb[0].mxu0
  %v2142 = vadd.f32 0.0, %v2141
  %v2143 = vpop.f32.mrb[0].mxu0
  %2144 = vdwg.mxu0
  %v2145 = vadd.f32 %v598, %v2142
  %v2146 = vxor.u32 %v2069, 2147483648
  %v2147 = vmul.f32 %v2146, 1.442695
  %v2148 = vpow.pop %v2147
  %v2149 = vadd.f32 %v2148, 1.0
  %v2150 = vrcp.pop %v2149
  %v2151 = vmul.f32 1.0, %v2150
  %v2152 = vtanh.pop %v2069
  %v2153 = vmul.f32 %v2151, %v1963
  %2155 = vrot.lane.b32.xlu0 %v2152, 64
  %v2156 = vpop.permute.xlu0 %2155
  %v2158 = vmul.f32 %v2151, %v2156
  %2160 = vrot.lane.b32.xlu0 %v2158, 32
  %v2161 = vpop.permute.xlu0 %2160
  %v2163 = vadd.f32 %v2153, %v2161
  %v2164 = vtanh.pop %v2163
  %2166 = vrot.lane.b32.xlu0 %v2164, 64
  %v2167 = vpop.permute.xlu0 %2166
  %v2169 = vmul.f32 %v2151, %v2167
  %v2170 = vxor.u32 %v2145, 2147483648
  %v2171 = vmul.f32 %v2170, 1.442695
  %v2172 = vpow.pop %v2171
  %v2173 = vadd.f32 %v2172, 1.0
  %v2174 = vrcp.pop %v2173
  %v2175 = vmul.f32 1.0, %v2174
  %v2176 = vtanh.pop %v2145
  %v2177 = vmul.f32 %v2175, %v1987
  %2179 = vrot.lane.b32.xlu0 %v2176, 96
  %v2180 = vpop.permute.xlu0 %2179
  %v2182 = vmul.f32 %v2175, %v2180
  %2184 = vrot.lane.b32.xlu0 %v2182, 16
  %v2185 = vpop.permute.xlu0 %2184
  %v2187 = vadd.f32 %v2177, %v2185
  %v2188 = vtanh.pop %v2187
  %2190 = vrot.lane.b32.xlu0 %v2188, 32
  %v2191 = vpop.permute.xlu0 %2190
  %v2193 = vmul.f32 %v2175, %v2191
  %v2194 = vld [vmem:[%s13] sm:$0xff]
  %v2195 = vld [vmem:[%s13 + $0x8] sm:$0xff]
  %v2196 = vld [vmem:[%s14] sm:$0x1]
  %v2197 = vld [vmem:[%s12] sm:$0xff]
  %v2198 = vld [vmem:[%s12 + $0x8] sm:$0xff]
  %v2200 = vlaneseq
  %v2201 = vshrl.u32 %v2200, 7
  %v2202 = vsub.s32 0, %v2201
  %v2203 = vrot.slane %v2196, %v2202
  %2206 = vrot.lane.b32.xlu0 %v2193, 80
  %v2207 = vpop.permute.xlu0 %2206
  %v2208 = vsel %vm164, %v2207, 0
  %2210 = vmatprep.subr.mxu0 0.0
  %2211 = vmatpush1.msra.mxu0 %v2197
  %2212 = vmatprep.subr.mxu0 0.0
  %2213 = vmatpush1.msra.mxu0 %v2198
  %2214 = vmatprep.subr.mxu0 0.0
  %2215 = vmatpush1.msra.mxu0 0.0
  %2216 = vmatprep.subr.mxu0 0.0
  %2217 = vmatpush1.msra.mxu0 0.0
  %2218 = vmatprep.subr.mxu0 0.0
  %2219 = vmatpush1.msra.mxu0 0.0
  %2220 = vmatprep.subr.mxu0 0.0
  %2221 = vmatpush1.msra.mxu0 0.0
  %2222 = vmatprep.subr.mxu0 0.0
  %2223 = vmatpush1.msra.mxu0 0.0
  %2224 = vmatprep.subr.mxu0 0.0
  %2225 = vmatpush1.msra.mxu0 0.0
  %2226 = vmatprep.subr.mxu0 0.0
  %2227 = vmatpush1.msra.mxu0 0.0
  %2228 = vmatprep.subr.mxu0 0.0
  %2229 = vmatpush1.msra.mxu0 0.0
  %2230 = vmatprep.subr.mxu0 0.0
  %2231 = vmatpush1.msra.mxu0 0.0
  %2232 = vmatprep.subr.mxu0 0.0
  %2233 = vmatpush1.msra.mxu0 0.0
  %2234 = vmatprep.subr.mxu0 0.0
  %2235 = vmatpush1.msra.mxu0 0.0
  %2236 = vmatprep.subr.mxu0 0.0
  %2237 = vmatpush1.msra.mxu0 0.0
  %2238 = vmatprep.subr.mxu0 0.0
  %2239 = vmatpush1.msra.mxu0 0.0
  %2240 = vmatprep.subr.mxu0 0.0
  %2241 = vmatpush1.msra.mxu0 0.0
  %2242 = vmatprep.subr.mxu0 0.0
  %2243 = vmatpush1.msra.mxu0 0.0
  %2244 = vmatprep.subr.mxu0 0.0
  %2245 = vmatpush1.msra.mxu0 0.0
  %2246 = vmatprep.subr.mxu0 0.0
  %2247 = vmatpush1.msra.mxu0 0.0
  %2248 = vmatprep.subr.mxu0 0.0
  %2249 = vmatpush1.msra.mxu0 0.0
  %2250 = vmatprep.subr.mxu0 0.0
  %2251 = vmatpush1.msra.mxu0 0.0
  %2252 = vmatprep.subr.mxu0 0.0
  %2253 = vmatpush1.msra.mxu0 0.0
  %2254 = vmatprep.subr.mxu0 0.0
  %2255 = vmatpush1.msra.mxu0 0.0
  %2256 = vmatprep.subr.mxu0 0.0
  %2257 = vmatpush1.msra.mxu0 0.0
  %2258 = vmatprep.subr.mxu0 0.0
  %2259 = vmatpush1.msra.mxu0 0.0
  %2260 = vmatprep.subr.mxu0 0.0
  %2261 = vmatpush1.msra.mxu0 0.0
  %2262 = vmatprep.subr.mxu0 0.0
  %2263 = vmatpush1.msra.mxu0 0.0
  %2264 = vmatprep.subr.mxu0 0.0
  %2265 = vmatpush1.msra.mxu0 0.0
  %2266 = vmatprep.subr.mxu0 0.0
  %2267 = vmatpush1.msra.mxu0 0.0
  %2268 = vmatprep.subr.mxu0 0.0
  %2269 = vmatpush1.msra.mxu0 0.0
  %2270 = vmatprep.subr.mxu0 0.0
  %2271 = vmatpush1.msra.mxu0 0.0
  %2272 = vmatprep.subr.mxu0 0.0
  %2273 = vmatpush1.msra.mxu0 0.0
  %2274 = vmatprep.mubr.f32.mxu0 0.0
  %2275 = vmatmul.mubr.f32.gmra.mrb[0].mxu0 %v873
  %v2276 = vpop.f32.mrb[0].mxu0
  %v2277 = vadd.f32 %v2203, %v2276
  %v2278 = vpop.f32.mrb[0].mxu0
  %2279 = vmatprep.mubr.f32.mxu0 0.0
  %2280 = vmatmul.mubr.f32.gmra.mrb[0].mxu0 %v1073
  %v2281 = vpop.f32.mrb[0].mxu0
  %v2282 = vadd.f32 %v2203, %v2281
  %v2283 = vpop.f32.mrb[0].mxu0
  %2284 = vmatprep.mubr.f32.mxu0 0.0
  %2285 = vmatmul.mubr.f32.gmra.mrb[0].mxu0 %v1273
  %v2286 = vpop.f32.mrb[0].mxu0
  %v2287 = vadd.f32 %v2203, %v2286
  %v2288 = vpop.f32.mrb[0].mxu0
  %2289 = vmatprep.mubr.f32.mxu0 0.0
  %2290 = vmatmul.mubr.f32.gmra.mrb[0].mxu0 %v1473
  %v2291 = vpop.f32.mrb[0].mxu0
  %v2292 = vadd.f32 %v2203, %v2291
  %v2293 = vpop.f32.mrb[0].mxu0
  %2294 = vmatprep.mubr.f32.mxu0 0.0
  %2295 = vmatmul.mubr.f32.gmra.mrb[0].mxu0 %v1673
  %v2296 = vpop.f32.mrb[0].mxu0
  %v2297 = vadd.f32 %v2203, %v2296
  %v2298 = vpop.f32.mrb[0].mxu0
  %2299 = vmatprep.mubr.f32.mxu0 0.0
  %2300 = vmatmul.mubr.f32.gmra.mrb[0].mxu0 %v1873
  %v2301 = vpop.f32.mrb[0].mxu0
  %v2302 = vadd.f32 %v2203, %v2301
  %v2303 = vpop.f32.mrb[0].mxu0
  %2304 = vmatprep.mubr.f32.mxu0 0.0
  %2305 = vmatmul.mubr.f32.gmra.mrb[0].mxu0 %v2073
  %v2306 = vpop.f32.mrb[0].mxu0
  %v2307 = vadd.f32 %v2203, %v2306
  %v2308 = vpop.f32.mrb[0].mxu0
  %2309 = vmatprep.mubr.f32.mxu0 0.0
  %2310 = vmatmul.mubr.f32.gmra.mrb[0].mxu0 %v2208
  %v2311 = vpop.f32.mrb[0].mxu0
  %v2312 = vadd.f32 %v2203, %v2311
  %v2313 = vpop.f32.mrb[0].mxu0
  %2314 = vdwg.mxu0
  %2315 = vmatprep.subr.mxu0 0.0
  %2316 = vmatpush1.msra.mxu0 %v2194
  %2317 = vmatprep.subr.mxu0 0.0
  %2318 = vmatpush1.msra.mxu0 %v2195
  %2319 = vmatprep.subr.mxu0 0.0
  %2320 = vmatpush1.msra.mxu0 0.0
  %2321 = vmatprep.subr.mxu0 0.0
  %2322 = vmatpush1.msra.mxu0 0.0
  %2323 = vmatprep.subr.mxu0 0.0
  %2324 = vmatpush1.msra.mxu0 0.0
  %2325 = vmatprep.subr.mxu0 0.0
  %2326 = vmatpush1.msra.mxu0 0.0
  %2327 = vmatprep.subr.mxu0 0.0
  %2328 = vmatpush1.msra.mxu0 0.0
  %2329 = vmatprep.subr.mxu0 0.0
  %2330 = vmatpush1.msra.mxu0 0.0
  %2331 = vmatprep.subr.mxu0 0.0
  %2332 = vmatpush1.msra.mxu0 0.0
  %2333 = vmatprep.subr.mxu0 0.0
  %2334 = vmatpush1.msra.mxu0 0.0
  %2335 = vmatprep.subr.mxu0 0.0
  %2336 = vmatpush1.msra.mxu0 0.0
  %2337 = vmatprep.subr.mxu0 0.0
  %2338 = vmatpush1.msra.mxu0 0.0
  %2339 = vmatprep.subr.mxu0 0.0
  %2340 = vmatpush1.msra.mxu0 0.0
  %2341 = vmatprep.subr.mxu0 0.0
  %2342 = vmatpush1.msra.mxu0 0.0
  %2343 = vmatprep.subr.mxu0 0.0
  %2344 = vmatpush1.msra.mxu0 0.0
  %2345 = vmatprep.subr.mxu0 0.0
  %2346 = vmatpush1.msra.mxu0 0.0
  %2347 = vmatprep.subr.mxu0 0.0
  %2348 = vmatpush1.msra.mxu0 0.0
  %2349 = vmatprep.subr.mxu0 0.0
  %2350 = vmatpush1.msra.mxu0 0.0
  %2351 = vmatprep.subr.mxu0 0.0
  %2352 = vmatpush1.msra.mxu0 0.0
  %2353 = vmatprep.subr.mxu0 0.0
  %2354 = vmatpush1.msra.mxu0 0.0
  %2355 = vmatprep.subr.mxu0 0.0
  %2356 = vmatpush1.msra.mxu0 0.0
  %2357 = vmatprep.subr.mxu0 0.0
  %2358 = vmatpush1.msra.mxu0 0.0
  %2359 = vmatprep.subr.mxu0 0.0
  %2360 = vmatpush1.msra.mxu0 0.0
  %2361 = vmatprep.subr.mxu0 0.0
  %2362 = vmatpush1.msra.mxu0 0.0
  %2363 = vmatprep.subr.mxu0 0.0
  %2364 = vmatpush1.msra.mxu0 0.0
  %2365 = vmatprep.subr.mxu0 0.0
  %2366 = vmatpush1.msra.mxu0 0.0
  %2367 = vmatprep.subr.mxu0 0.0
  %2368 = vmatpush1.msra.mxu0 0.0
  %2369 = vmatprep.subr.mxu0 0.0
  %2370 = vmatpush1.msra.mxu0 0.0
  %2371 = vmatprep.subr.mxu0 0.0
  %2372 = vmatpush1.msra.mxu0 0.0
  %2373 = vmatprep.subr.mxu0 0.0
  %2374 = vmatpush1.msra.mxu0 0.0
  %2375 = vmatprep.subr.mxu0 0.0
  %2376 = vmatpush1.msra.mxu0 0.0
  %2377 = vmatprep.subr.mxu0 0.0
  %2378 = vmatpush1.msra.mxu0 0.0
  %2379 = vmatprep.mubr.f32.mxu0 0.0
  %2380 = vmatmul.mubr.f32.gmra.mrb[0].mxu0 %v673
  %v2381 = vpop.f32.mrb[0].mxu0
  %v2382 = vadd.f32 0.0, %v2381
  %v2383 = vpop.f32.mrb[0].mxu0
  %2384 = vdwg.mxu0
  %v2385 = vadd.f32 %v2277, %v2382
  %v2386 = vxor.u32 %v2385, 2147483648
  %v2387 = vmul.f32 %v2386, 1.442695
  %v2388 = vpow.pop %v2387
  %v2389 = vadd.f32 %v2388, 1.0
  %v2390 = vrcp.pop %v2389
  %v2391 = vmul.f32 1.0, %v2390
  %v2392 = vtanh.pop %v2385
  %v2393 = vmul.f32 %v2391, 0.0
  %2395 = vrot.lane.b32.xlu0 %v2392, 96
  %v2396 = vpop.permute.xlu0 %2395
  %v2398 = vmul.f32 %v2391, %v2396
  %2400 = vrot.lane.b32.xlu0 %v2398, 16
  %v2401 = vpop.permute.xlu0 %2400
  %v2403 = vadd.f32 %v2393, %v2401
  %v2404 = vtanh.pop %v2403
  %2406 = vrot.lane.b32.xlu0 %v2404, 32
  %v2407 = vpop.permute.xlu0 %2406
  %v2409 = vmul.f32 %v2391, %v2407
  %2411 = vrot.lane.b32.xlu0 %v2409, 80
  %v2412 = vpop.permute.xlu0 %2411
  %v2413 = vsel %vm164, %v2412, 0
  %2415 = vmatprep.subr.mxu0 0.0
  %2416 = vmatpush1.msra.mxu0 %v2194
  %2417 = vmatprep.subr.mxu0 0.0
  %2418 = vmatpush1.msra.mxu0 %v2195
  %2419 = vmatprep.subr.mxu0 0.0
  %2420 = vmatpush1.msra.mxu0 0.0
  %2421 = vmatprep.subr.mxu0 0.0
  %2422 = vmatpush1.msra.mxu0 0.0
  %2423 = vmatprep.subr.mxu0 0.0
  %2424 = vmatpush1.msra.mxu0 0.0
  %2425 = vmatprep.subr.mxu0 0.0
  %2426 = vmatpush1.msra.mxu0 0.0
  %2427 = vmatprep.subr.mxu0 0.0
  %2428 = vmatpush1.msra.mxu0 0.0
  %2429 = vmatprep.subr.mxu0 0.0
  %2430 = vmatpush1.msra.mxu0 0.0
  %2431 = vmatprep.subr.mxu0 0.0
  %2432 = vmatpush1.msra.mxu0 0.0
  %2433 = vmatprep.subr.mxu0 0.0
  %2434 = vmatpush1.msra.mxu0 0.0
  %2435 = vmatprep.subr.mxu0 0.0
  %2436 = vmatpush1.msra.mxu0 0.0
  %2437 = vmatprep.subr.mxu0 0.0
  %2438 = vmatpush1.msra.mxu0 0.0
  %2439 = vmatprep.subr.mxu0 0.0
  %2440 = vmatpush1.msra.mxu0 0.0
  %2441 = vmatprep.subr.mxu0 0.0
  %2442 = vmatpush1.msra.mxu0 0.0
  %2443 = vmatprep.subr.mxu0 0.0
  %2444 = vmatpush1.msra.mxu0 0.0
  %2445 = vmatprep.subr.mxu0 0.0
  %2446 = vmatpush1.msra.mxu0 0.0
  %2447 = vmatprep.subr.mxu0 0.0
  %2448 = vmatpush1.msra.mxu0 0.0
  %2449 = vmatprep.subr.mxu0 0.0
  %2450 = vmatpush1.msra.mxu0 0.0
  %2451 = vmatprep.subr.mxu0 0.0
  %2452 = vmatpush1.msra.mxu0 0.0
  %2453 = vmatprep.subr.mxu0 0.0
  %2454 = vmatpush1.msra.mxu0 0.0
  %2455 = vmatprep.subr.mxu0 0.0
  %2456 = vmatpush1.msra.mxu0 0.0
  %2457 = vmatprep.subr.mxu0 0.0
  %2458 = vmatpush1.msra.mxu0 0.0
  %2459 = vmatprep.subr.mxu0 0.0
  %2460 = vmatpush1.msra.mxu0 0.0
  %2461 = vmatprep.subr.mxu0 0.0
  %2462 = vmatpush1.msra.mxu0 0.0
  %2463 = vmatprep.subr.mxu0 0.0
  %2464 = vmatpush1.msra.mxu0 0.0
  %2465 = vmatprep.subr.mxu0 0.0
  %2466 = vmatpush1.msra.mxu0 0.0
  %2467 = vmatprep.subr.mxu0 0.0
  %2468 = vmatpush1.msra.mxu0 0.0
  %2469 = vmatprep.subr.mxu0 0.0
  %2470 = vmatpush1.msra.mxu0 0.0
  %2471 = vmatprep.subr.mxu0 0.0
  %2472 = vmatpush1.msra.mxu0 0.0
  %2473 = vmatprep.subr.mxu0 0.0
  %2474 = vmatpush1.msra.mxu0 0.0
  %2475 = vmatprep.subr.mxu0 0.0
  %2476 = vmatpush1.msra.mxu0 0.0
  %2477 = vmatprep.subr.mxu0 0.0
  %2478 = vmatpush1.msra.mxu0 0.0
  %2479 = vmatprep.mubr.f32.mxu0 0.0
  %2480 = vmatmul.mubr.f32.gmra.mrb[0].mxu0 %v2413
  %v2481 = vpop.f32.mrb[0].mxu0
  %v2482 = vadd.f32 0.0, %v2481
  %v2483 = vpop.f32.mrb[0].mxu0
  %2484 = vdwg.mxu0
  %v2485 = vadd.f32 %v2282, %v2482
  %v2486 = vxor.u32 %v2485, 2147483648
  %v2487 = vmul.f32 %v2486, 1.442695
  %v2488 = vpow.pop %v2487
  %v2489 = vadd.f32 %v2488, 1.0
  %v2490 = vrcp.pop %v2489
  %v2491 = vmul.f32 1.0, %v2490
  %v2492 = vtanh.pop %v2485
  %v2493 = vmul.f32 %v2491, %v2403
  %2495 = vrot.lane.b32.xlu0 %v2492, 96
  %v2496 = vpop.permute.xlu0 %2495
  %v2498 = vmul.f32 %v2491, %v2496
  %2500 = vrot.lane.b32.xlu0 %v2498, 16
  %v2501 = vpop.permute.xlu0 %2500
  %v2503 = vadd.f32 %v2493, %v2501
  %v2504 = vtanh.pop %v2503
  %2506 = vrot.lane.b32.xlu0 %v2504, 32
  %v2507 = vpop.permute.xlu0 %2506
  %v2509 = vmul.f32 %v2491, %v2507
  %2511 = vrot.lane.b32.xlu0 %v2509, 80
  %v2512 = vpop.permute.xlu0 %2511
  %v2513 = vsel %vm164, %v2512, 0
  %2515 = vmatprep.subr.mxu0 0.0
  %2516 = vmatpush1.msra.mxu0 %v2194
  %2517 = vmatprep.subr.mxu0 0.0
  %2518 = vmatpush1.msra.mxu0 %v2195
  %2519 = vmatprep.subr.mxu0 0.0
  %2520 = vmatpush1.msra.mxu0 0.0
  %2521 = vmatprep.subr.mxu0 0.0
  %2522 = vmatpush1.msra.mxu0 0.0
  %2523 = vmatprep.subr.mxu0 0.0
  %2524 = vmatpush1.msra.mxu0 0.0
  %2525 = vmatprep.subr.mxu0 0.0
  %2526 = vmatpush1.msra.mxu0 0.0
  %2527 = vmatprep.subr.mxu0 0.0
  %2528 = vmatpush1.msra.mxu0 0.0
  %2529 = vmatprep.subr.mxu0 0.0
  %2530 = vmatpush1.msra.mxu0 0.0
  %2531 = vmatprep.subr.mxu0 0.0
  %2532 = vmatpush1.msra.mxu0 0.0
  %2533 = vmatprep.subr.mxu0 0.0
  %2534 = vmatpush1.msra.mxu0 0.0
  %2535 = vmatprep.subr.mxu0 0.0
  %2536 = vmatpush1.msra.mxu0 0.0
  %2537 = vmatprep.subr.mxu0 0.0
  %2538 = vmatpush1.msra.mxu0 0.0
  %2539 = vmatprep.subr.mxu0 0.0
  %2540 = vmatpush1.msra.mxu0 0.0
  %2541 = vmatprep.subr.mxu0 0.0
  %2542 = vmatpush1.msra.mxu0 0.0
  %2543 = vmatprep.subr.mxu0 0.0
  %2544 = vmatpush1.msra.mxu0 0.0
  %2545 = vmatprep.subr.mxu0 0.0
  %2546 = vmatpush1.msra.mxu0 0.0
  %2547 = vmatprep.subr.mxu0 0.0
  %2548 = vmatpush1.msra.mxu0 0.0
  %2549 = vmatprep.subr.mxu0 0.0
  %2550 = vmatpush1.msra.mxu0 0.0
  %2551 = vmatprep.subr.mxu0 0.0
  %2552 = vmatpush1.msra.mxu0 0.0
  %2553 = vmatprep.subr.mxu0 0.0
  %2554 = vmatpush1.msra.mxu0 0.0
  %2555 = vmatprep.subr.mxu0 0.0
  %2556 = vmatpush1.msra.mxu0 0.0
  %2557 = vmatprep.subr.mxu0 0.0
  %2558 = vmatpush1.msra.mxu0 0.0
  %2559 = vmatprep.subr.mxu0 0.0
  %2560 = vmatpush1.msra.mxu0 0.0
  %2561 = vmatprep.subr.mxu0 0.0
  %2562 = vmatpush1.msra.mxu0 0.0
  %2563 = vmatprep.subr.mxu0 0.0
  %2564 = vmatpush1.msra.mxu0 0.0
  %2565 = vmatprep.subr.mxu0 0.0
  %2566 = vmatpush1.msra.mxu0 0.0
  %2567 = vmatprep.subr.mxu0 0.0
  %2568 = vmatpush1.msra.mxu0 0.0
  %2569 = vmatprep.subr.mxu0 0.0
  %2570 = vmatpush1.msra.mxu0 0.0
  %2571 = vmatprep.subr.mxu0 0.0
  %2572 = vmatpush1.msra.mxu0 0.0
  %2573 = vmatprep.subr.mxu0 0.0
  %2574 = vmatpush1.msra.mxu0 0.0
  %2575 = vmatprep.subr.mxu0 0.0
  %2576 = vmatpush1.msra.mxu0 0.0
  %2577 = vmatprep.subr.mxu0 0.0
  %2578 = vmatpush1.msra.mxu0 0.0
  %2579 = vmatprep.mubr.f32.mxu0 0.0
  %2580 = vmatmul.mubr.f32.gmra.mrb[0].mxu0 %v2513
  %v2581 = vpop.f32.mrb[0].mxu0
  %v2582 = vadd.f32 0.0, %v2581
  %v2583 = vpop.f32.mrb[0].mxu0
  %2584 = vdwg.mxu0
  %v2585 = vadd.f32 %v2287, %v2582
  %v2586 = vxor.u32 %v2585, 2147483648
  %v2587 = vmul.f32 %v2586, 1.442695
  %v2588 = vpow.pop %v2587
  %v2589 = vadd.f32 %v2588, 1.0
  %v2590 = vrcp.pop %v2589
  %v2591 = vmul.f32 1.0, %v2590
  %v2592 = vtanh.pop %v2585
  %v2593 = vmul.f32 %v2591, %v2503
  %2595 = vrot.lane.b32.xlu0 %v2592, 96
  %v2596 = vpop.permute.xlu0 %2595
  %v2598 = vmul.f32 %v2591, %v2596
  %2600 = vrot.lane.b32.xlu0 %v2598, 16
  %v2601 = vpop.permute.xlu0 %2600
  %v2603 = vadd.f32 %v2593, %v2601
  %v2604 = vtanh.pop %v2603
  %2606 = vrot.lane.b32.xlu0 %v2604, 32
  %v2607 = vpop.permute.xlu0 %2606
  %v2609 = vmul.f32 %v2591, %v2607
  %2611 = vrot.lane.b32.xlu0 %v2609, 80
  %v2612 = vpop.permute.xlu0 %2611
  %v2613 = vsel %vm164, %v2612, 0
  %2615 = vmatprep.subr.mxu0 0.0
  %2616 = vmatpush1.msra.mxu0 %v2194
  %2617 = vmatprep.subr.mxu0 0.0
  %2618 = vmatpush1.msra.mxu0 %v2195
  %2619 = vmatprep.subr.mxu0 0.0
  %2620 = vmatpush1.msra.mxu0 0.0
  %2621 = vmatprep.subr.mxu0 0.0
  %2622 = vmatpush1.msra.mxu0 0.0
  %2623 = vmatprep.subr.mxu0 0.0
  %2624 = vmatpush1.msra.mxu0 0.0
  %2625 = vmatprep.subr.mxu0 0.0
  %2626 = vmatpush1.msra.mxu0 0.0
  %2627 = vmatprep.subr.mxu0 0.0
  %2628 = vmatpush1.msra.mxu0 0.0
  %2629 = vmatprep.subr.mxu0 0.0
  %2630 = vmatpush1.msra.mxu0 0.0
  %2631 = vmatprep.subr.mxu0 0.0
  %2632 = vmatpush1.msra.mxu0 0.0
  %2633 = vmatprep.subr.mxu0 0.0
  %2634 = vmatpush1.msra.mxu0 0.0
  %2635 = vmatprep.subr.mxu0 0.0
  %2636 = vmatpush1.msra.mxu0 0.0
  %2637 = vmatprep.subr.mxu0 0.0
  %2638 = vmatpush1.msra.mxu0 0.0
  %2639 = vmatprep.subr.mxu0 0.0
  %2640 = vmatpush1.msra.mxu0 0.0
  %2641 = vmatprep.subr.mxu0 0.0
  %2642 = vmatpush1.msra.mxu0 0.0
  %2643 = vmatprep.subr.mxu0 0.0
  %2644 = vmatpush1.msra.mxu0 0.0
  %2645 = vmatprep.subr.mxu0 0.0
  %2646 = vmatpush1.msra.mxu0 0.0
  %2647 = vmatprep.subr.mxu0 0.0
  %2648 = vmatpush1.msra.mxu0 0.0
  %2649 = vmatprep.subr.mxu0 0.0
  %2650 = vmatpush1.msra.mxu0 0.0
  %2651 = vmatprep.subr.mxu0 0.0
  %2652 = vmatpush1.msra.mxu0 0.0
  %2653 = vmatprep.subr.mxu0 0.0
  %2654 = vmatpush1.msra.mxu0 0.0
  %2655 = vmatprep.subr.mxu0 0.0
  %2656 = vmatpush1.msra.mxu0 0.0
  %2657 = vmatprep.subr.mxu0 0.0
  %2658 = vmatpush1.msra.mxu0 0.0
  %2659 = vmatprep.subr.mxu0 0.0
  %2660 = vmatpush1.msra.mxu0 0.0
  %2661 = vmatprep.subr.mxu0 0.0
  %2662 = vmatpush1.msra.mxu0 0.0
  %2663 = vmatprep.subr.mxu0 0.0
  %2664 = vmatpush1.msra.mxu0 0.0
  %2665 = vmatprep.subr.mxu0 0.0
  %2666 = vmatpush1.msra.mxu0 0.0
  %2667 = vmatprep.subr.mxu0 0.0
  %2668 = vmatpush1.msra.mxu0 0.0
  %2669 = vmatprep.subr.mxu0 0.0
  %2670 = vmatpush1.msra.mxu0 0.0
  %2671 = vmatprep.subr.mxu0 0.0
  %2672 = vmatpush1.msra.mxu0 0.0
  %2673 = vmatprep.subr.mxu0 0.0
  %2674 = vmatpush1.msra.mxu0 0.0
  %2675 = vmatprep.subr.mxu0 0.0
  %2676 = vmatpush1.msra.mxu0 0.0
  %2677 = vmatprep.subr.mxu0 0.0
  %2678 = vmatpush1.msra.mxu0 0.0
  %2679 = vmatprep.mubr.f32.mxu0 0.0
  %2680 = vmatmul.mubr.f32.gmra.mrb[0].mxu0 %v2613
  %v2681 = vpop.f32.mrb[0].mxu0
  %v2682 = vadd.f32 0.0, %v2681
  %v2683 = vpop.f32.mrb[0].mxu0
  %2684 = vdwg.mxu0
  %v2685 = vadd.f32 %v2292, %v2682
  %v2686 = vxor.u32 %v2685, 2147483648
  %v2687 = vmul.f32 %v2686, 1.442695
  %v2688 = vpow.pop %v2687
  %v2689 = vadd.f32 %v2688, 1.0
  %v2690 = vrcp.pop %v2689
  %v2691 = vmul.f32 1.0, %v2690
  %v2692 = vtanh.pop %v2685
  %v2693 = vmul.f32 %v2691, %v2603
  %2695 = vrot.lane.b32.xlu0 %v2692, 96
  %v2696 = vpop.permute.xlu0 %2695
  %v2698 = vmul.f32 %v2691, %v2696
  %2700 = vrot.lane.b32.xlu0 %v2698, 16
  %v2701 = vpop.permute.xlu0 %2700
  %v2703 = vadd.f32 %v2693, %v2701
  %v2704 = vtanh.pop %v2703
  %2706 = vrot.lane.b32.xlu0 %v2704, 32
  %v2707 = vpop.permute.xlu0 %2706
  %v2709 = vmul.f32 %v2691, %v2707
  %2711 = vrot.lane.b32.xlu0 %v2709, 80
  %v2712 = vpop.permute.xlu0 %2711
  %v2713 = vsel %vm164, %v2712, 0
  %2715 = vmatprep.subr.mxu0 0.0
  %2716 = vmatpush1.msra.mxu0 %v2194
  %2717 = vmatprep.subr.mxu0 0.0
  %2718 = vmatpush1.msra.mxu0 %v2195
  %2719 = vmatprep.subr.mxu0 0.0
  %2720 = vmatpush1.msra.mxu0 0.0
  %2721 = vmatprep.subr.mxu0 0.0
  %2722 = vmatpush1.msra.mxu0 0.0
  %2723 = vmatprep.subr.mxu0 0.0
  %2724 = vmatpush1.msra.mxu0 0.0
  %2725 = vmatprep.subr.mxu0 0.0
  %2726 = vmatpush1.msra.mxu0 0.0
  %2727 = vmatprep.subr.mxu0 0.0
  %2728 = vmatpush1.msra.mxu0 0.0
  %2729 = vmatprep.subr.mxu0 0.0
  %2730 = vmatpush1.msra.mxu0 0.0
  %2731 = vmatprep.subr.mxu0 0.0
  %2732 = vmatpush1.msra.mxu0 0.0
  %2733 = vmatprep.subr.mxu0 0.0
  %2734 = vmatpush1.msra.mxu0 0.0
  %2735 = vmatprep.subr.mxu0 0.0
  %2736 = vmatpush1.msra.mxu0 0.0
  %2737 = vmatprep.subr.mxu0 0.0
  %2738 = vmatpush1.msra.mxu0 0.0
  %2739 = vmatprep.subr.mxu0 0.0
  %2740 = vmatpush1.msra.mxu0 0.0
  %2741 = vmatprep.subr.mxu0 0.0
  %2742 = vmatpush1.msra.mxu0 0.0
  %2743 = vmatprep.subr.mxu0 0.0
  %2744 = vmatpush1.msra.mxu0 0.0
  %2745 = vmatprep.subr.mxu0 0.0
  %2746 = vmatpush1.msra.mxu0 0.0
  %2747 = vmatprep.subr.mxu0 0.0
  %2748 = vmatpush1.msra.mxu0 0.0
  %2749 = vmatprep.subr.mxu0 0.0
  %2750 = vmatpush1.msra.mxu0 0.0
  %2751 = vmatprep.subr.mxu0 0.0
  %2752 = vmatpush1.msra.mxu0 0.0
  %2753 = vmatprep.subr.mxu0 0.0
  %2754 = vmatpush1.msra.mxu0 0.0
  %2755 = vmatprep.subr.mxu0 0.0
  %2756 = vmatpush1.msra.mxu0 0.0
  %2757 = vmatprep.subr.mxu0 0.0
  %2758 = vmatpush1.msra.mxu0 0.0
  %2759 = vmatprep.subr.mxu0 0.0
  %2760 = vmatpush1.msra.mxu0 0.0
  %2761 = vmatprep.subr.mxu0 0.0
  %2762 = vmatpush1.msra.mxu0 0.0
  %2763 = vmatprep.subr.mxu0 0.0
  %2764 = vmatpush1.msra.mxu0 0.0
  %2765 = vmatprep.subr.mxu0 0.0
  %2766 = vmatpush1.msra.mxu0 0.0
  %2767 = vmatprep.subr.mxu0 0.0
  %2768 = vmatpush1.msra.mxu0 0.0
  %2769 = vmatprep.subr.mxu0 0.0
  %2770 = vmatpush1.msra.mxu0 0.0
  %2771 = vmatprep.subr.mxu0 0.0
  %2772 = vmatpush1.msra.mxu0 0.0
  %2773 = vmatprep.subr.mxu0 0.0
  %2774 = vmatpush1.msra.mxu0 0.0
  %2775 = vmatprep.subr.mxu0 0.0
  %2776 = vmatpush1.msra.mxu0 0.0
  %2777 = vmatprep.subr.mxu0 0.0
  %2778 = vmatpush1.msra.mxu0 0.0
  %2779 = vmatprep.mubr.f32.mxu0 0.0
  %2780 = vmatmul.mubr.f32.gmra.mrb[0].mxu0 %v2713
  %v2781 = vpop.f32.mrb[0].mxu0
  %v2782 = vadd.f32 0.0, %v2781
  %v2783 = vpop.f32.mrb[0].mxu0
  %2784 = vdwg.mxu0
  %v2785 = vadd.f32 %v2297, %v2782
  %v2786 = vxor.u32 %v2785, 2147483648
  %v2787 = vmul.f32 %v2786, 1.442695
  %v2788 = vpow.pop %v2787
  %v2789 = vadd.f32 %v2788, 1.0
  %v2790 = vrcp.pop %v2789
  %v2791 = vmul.f32 1.0, %v2790
  %v2792 = vtanh.pop %v2785
  %v2793 = vmul.f32 %v2791, %v2703
  %2795 = vrot.lane.b32.xlu0 %v2792, 96
  %v2796 = vpop.permute.xlu0 %2795
  %v2798 = vmul.f32 %v2791, %v2796
  %2800 = vrot.lane.b32.xlu0 %v2798, 16
  %v2801 = vpop.permute.xlu0 %2800
  %v2803 = vadd.f32 %v2793, %v2801
  %v2804 = vtanh.pop %v2803
  %2806 = vrot.lane.b32.xlu0 %v2804, 32
  %v2807 = vpop.permute.xlu0 %2806
  %v2809 = vmul.f32 %v2791, %v2807
  %2811 = vrot.lane.b32.xlu0 %v2809, 80
  %v2812 = vpop.permute.xlu0 %2811
  %v2813 = vsel %vm164, %v2812, 0
  %2815 = vmatprep.subr.mxu0 0.0
  %2816 = vmatpush1.msra.mxu0 %v2194
  %2817 = vmatprep.subr.mxu0 0.0
  %2818 = vmatpush1.msra.mxu0 %v2195
  %2819 = vmatprep.subr.mxu0 0.0
  %2820 = vmatpush1.msra.mxu0 0.0
  %2821 = vmatprep.subr.mxu0 0.0
  %2822 = vmatpush1.msra.mxu0 0.0
  %2823 = vmatprep.subr.mxu0 0.0
  %2824 = vmatpush1.msra.mxu0 0.0
  %2825 = vmatprep.subr.mxu0 0.0
  %2826 = vmatpush1.msra.mxu0 0.0
  %2827 = vmatprep.subr.mxu0 0.0
  %2828 = vmatpush1.msra.mxu0 0.0
  %2829 = vmatprep.subr.mxu0 0.0
  %2830 = vmatpush1.msra.mxu0 0.0
  %2831 = vmatprep.subr.mxu0 0.0
  %2832 = vmatpush1.msra.mxu0 0.0
  %2833 = vmatprep.subr.mxu0 0.0
  %2834 = vmatpush1.msra.mxu0 0.0
  %2835 = vmatprep.subr.mxu0 0.0
  %2836 = vmatpush1.msra.mxu0 0.0
  %2837 = vmatprep.subr.mxu0 0.0
  %2838 = vmatpush1.msra.mxu0 0.0
  %2839 = vmatprep.subr.mxu0 0.0
  %2840 = vmatpush1.msra.mxu0 0.0
  %2841 = vmatprep.subr.mxu0 0.0
  %2842 = vmatpush1.msra.mxu0 0.0
  %2843 = vmatprep.subr.mxu0 0.0
  %2844 = vmatpush1.msra.mxu0 0.0
  %2845 = vmatprep.subr.mxu0 0.0
  %2846 = vmatpush1.msra.mxu0 0.0
  %2847 = vmatprep.subr.mxu0 0.0
  %2848 = vmatpush1.msra.mxu0 0.0
  %2849 = vmatprep.subr.mxu0 0.0
  %2850 = vmatpush1.msra.mxu0 0.0
  %2851 = vmatprep.subr.mxu0 0.0
  %2852 = vmatpush1.msra.mxu0 0.0
  %2853 = vmatprep.subr.mxu0 0.0
  %2854 = vmatpush1.msra.mxu0 0.0
  %2855 = vmatprep.subr.mxu0 0.0
  %2856 = vmatpush1.msra.mxu0 0.0
  %2857 = vmatprep.subr.mxu0 0.0
  %2858 = vmatpush1.msra.mxu0 0.0
  %2859 = vmatprep.subr.mxu0 0.0
  %2860 = vmatpush1.msra.mxu0 0.0
  %2861 = vmatprep.subr.mxu0 0.0
  %2862 = vmatpush1.msra.mxu0 0.0
  %2863 = vmatprep.subr.mxu0 0.0
  %2864 = vmatpush1.msra.mxu0 0.0
  %2865 = vmatprep.subr.mxu0 0.0
  %2866 = vmatpush1.msra.mxu0 0.0
  %2867 = vmatprep.subr.mxu0 0.0
  %2868 = vmatpush1.msra.mxu0 0.0
  %2869 = vmatprep.subr.mxu0 0.0
  %2870 = vmatpush1.msra.mxu0 0.0
  %2871 = vmatprep.subr.mxu0 0.0
  %2872 = vmatpush1.msra.mxu0 0.0
  %2873 = vmatprep.subr.mxu0 0.0
  %2874 = vmatpush1.msra.mxu0 0.0
  %2875 = vmatprep.subr.mxu0 0.0
  %2876 = vmatpush1.msra.mxu0 0.0
  %2877 = vmatprep.subr.mxu0 0.0
  %2878 = vmatpush1.msra.mxu0 0.0
  %2879 = vmatprep.mubr.f32.mxu0 0.0
  %2880 = vmatmul.mubr.f32.gmra.mrb[0].mxu0 %v2813
  %v2881 = vpop.f32.mrb[0].mxu0
  %v2882 = vadd.f32 0.0, %v2881
  %v2883 = vpop.f32.mrb[0].mxu0
  %2884 = vdwg.mxu0
  %v2885 = vadd.f32 %v2302, %v2882
  %v2886 = vxor.u32 %v2885, 2147483648
  %v2887 = vmul.f32 %v2886, 1.442695
  %v2888 = vpow.pop %v2887
  %v2889 = vadd.f32 %v2888, 1.0
  %v2890 = vrcp.pop %v2889
  %v2891 = vmul.f32 1.0, %v2890
  %v2892 = vtanh.pop %v2885
  %v2893 = vmul.f32 %v2891, %v2803
  %2895 = vrot.lane.b32.xlu0 %v2892, 96
  %v2896 = vpop.permute.xlu0 %2895
  %v2898 = vmul.f32 %v2891, %v2896
  %2900 = vrot.lane.b32.xlu0 %v2898, 16
  %v2901 = vpop.permute.xlu0 %2900
  %v2903 = vadd.f32 %v2893, %v2901
  %v2904 = vtanh.pop %v2903
  %2906 = vrot.lane.b32.xlu0 %v2904, 32
  %v2907 = vpop.permute.xlu0 %2906
  %v2909 = vmul.f32 %v2891, %v2907
  %2911 = vrot.lane.b32.xlu0 %v2909, 80
  %v2912 = vpop.permute.xlu0 %2911
  %v2913 = vsel %vm164, %v2912, 0
  %2915 = vmatprep.subr.mxu0 0.0
  %2916 = vmatpush1.msra.mxu0 %v2194
  %2917 = vmatprep.subr.mxu0 0.0
  %2918 = vmatpush1.msra.mxu0 %v2195
  %2919 = vmatprep.subr.mxu0 0.0
  %2920 = vmatpush1.msra.mxu0 0.0
  %2921 = vmatprep.subr.mxu0 0.0
  %2922 = vmatpush1.msra.mxu0 0.0
  %2923 = vmatprep.subr.mxu0 0.0
  %2924 = vmatpush1.msra.mxu0 0.0
  %2925 = vmatprep.subr.mxu0 0.0
  %2926 = vmatpush1.msra.mxu0 0.0
  %2927 = vmatprep.subr.mxu0 0.0
  %2928 = vmatpush1.msra.mxu0 0.0
  %2929 = vmatprep.subr.mxu0 0.0
  %2930 = vmatpush1.msra.mxu0 0.0
  %2931 = vmatprep.subr.mxu0 0.0
  %2932 = vmatpush1.msra.mxu0 0.0
  %2933 = vmatprep.subr.mxu0 0.0
  %2934 = vmatpush1.msra.mxu0 0.0
  %2935 = vmatprep.subr.mxu0 0.0
  %2936 = vmatpush1.msra.mxu0 0.0
  %2937 = vmatprep.subr.mxu0 0.0
  %2938 = vmatpush1.msra.mxu0 0.0
  %2939 = vmatprep.subr.mxu0 0.0
  %2940 = vmatpush1.msra.mxu0 0.0
  %2941 = vmatprep.subr.mxu0 0.0
  %2942 = vmatpush1.msra.mxu0 0.0
  %2943 = vmatprep.subr.mxu0 0.0
  %2944 = vmatpush1.msra.mxu0 0.0
  %2945 = vmatprep.subr.mxu0 0.0
  %2946 = vmatpush1.msra.mxu0 0.0
  %2947 = vmatprep.subr.mxu0 0.0
  %2948 = vmatpush1.msra.mxu0 0.0
  %2949 = vmatprep.subr.mxu0 0.0
  %2950 = vmatpush1.msra.mxu0 0.0
  %2951 = vmatprep.subr.mxu0 0.0
  %2952 = vmatpush1.msra.mxu0 0.0
  %2953 = vmatprep.subr.mxu0 0.0
  %2954 = vmatpush1.msra.mxu0 0.0
  %2955 = vmatprep.subr.mxu0 0.0
  %2956 = vmatpush1.msra.mxu0 0.0
  %2957 = vmatprep.subr.mxu0 0.0
  %2958 = vmatpush1.msra.mxu0 0.0
  %2959 = vmatprep.subr.mxu0 0.0
  %2960 = vmatpush1.msra.mxu0 0.0
  %2961 = vmatprep.subr.mxu0 0.0
  %2962 = vmatpush1.msra.mxu0 0.0
  %2963 = vmatprep.subr.mxu0 0.0
  %2964 = vmatpush1.msra.mxu0 0.0
  %2965 = vmatprep.subr.mxu0 0.0
  %2966 = vmatpush1.msra.mxu0 0.0
  %2967 = vmatprep.subr.mxu0 0.0
  %2968 = vmatpush1.msra.mxu0 0.0
  %2969 = vmatprep.subr.mxu0 0.0
  %2970 = vmatpush1.msra.mxu0 0.0
  %2971 = vmatprep.subr.mxu0 0.0
  %2972 = vmatpush1.msra.mxu0 0.0
  %2973 = vmatprep.subr.mxu0 0.0
  %2974 = vmatpush1.msra.mxu0 0.0
  %2975 = vmatprep.subr.mxu0 0.0
  %2976 = vmatpush1.msra.mxu0 0.0
  %2977 = vmatprep.subr.mxu0 0.0
  %2978 = vmatpush1.msra.mxu0 0.0
  %2979 = vmatprep.mubr.f32.mxu0 0.0
  %2980 = vmatmul.mubr.f32.gmra.mrb[0].mxu0 %v2913
  %v2981 = vpop.f32.mrb[0].mxu0
  %v2982 = vadd.f32 0.0, %v2981
  %v2983 = vpop.f32.mrb[0].mxu0
  %2984 = vdwg.mxu0
  %v2985 = vadd.f32 %v2307, %v2982
  %v2986 = vxor.u32 %v2985, 2147483648
  %v2987 = vmul.f32 %v2986, 1.442695
  %v2988 = vpow.pop %v2987
  %v2989 = vadd.f32 %v2988, 1.0
  %v2990 = vrcp.pop %v2989
  %v2991 = vmul.f32 1.0, %v2990
  %v2992 = vtanh.pop %v2985
  %v2993 = vmul.f32 %v2991, %v2903
  %2995 = vrot.lane.b32.xlu0 %v2992, 96
  %v2996 = vpop.permute.xlu0 %2995
  %v2998 = vmul.f32 %v2991, %v2996
  %3000 = vrot.lane.b32.xlu0 %v2998, 16
  %v3001 = vpop.permute.xlu0 %3000
  %v3003 = vadd.f32 %v2993, %v3001
  %v3004 = vtanh.pop %v3003
  %3006 = vrot.lane.b32.xlu0 %v3004, 32
  %v3007 = vpop.permute.xlu0 %3006
  %v3009 = vmul.f32 %v2991, %v3007
  %3011 = vrot.lane.b32.xlu0 %v3009, 80
  %v3012 = vpop.permute.xlu0 %3011
  %v3013 = vsel %vm164, %v3012, 0
  %3015 = vmatprep.subr.mxu0 0.0
  %3016 = vmatpush1.msra.mxu0 %v2194
  %3017 = vmatprep.subr.mxu0 0.0
  %3018 = vmatpush1.msra.mxu0 %v2195
  %3019 = vmatprep.subr.mxu0 0.0
  %3020 = vmatpush1.msra.mxu0 0.0
  %3021 = vmatprep.subr.mxu0 0.0
  %3022 = vmatpush1.msra.mxu0 0.0
  %3023 = vmatprep.subr.mxu0 0.0
  %3024 = vmatpush1.msra.mxu0 0.0
  %3025 = vmatprep.subr.mxu0 0.0
  %3026 = vmatpush1.msra.mxu0 0.0
  %3027 = vmatprep.subr.mxu0 0.0
  %3028 = vmatpush1.msra.mxu0 0.0
  %3029 = vmatprep.subr.mxu0 0.0
  %3030 = vmatpush1.msra.mxu0 0.0
  %3031 = vmatprep.subr.mxu0 0.0
  %3032 = vmatpush1.msra.mxu0 0.0
  %3033 = vmatprep.subr.mxu0 0.0
  %3034 = vmatpush1.msra.mxu0 0.0
  %3035 = vmatprep.subr.mxu0 0.0
  %3036 = vmatpush1.msra.mxu0 0.0
  %3037 = vmatprep.subr.mxu0 0.0
  %3038 = vmatpush1.msra.mxu0 0.0
  %3039 = vmatprep.subr.mxu0 0.0
  %3040 = vmatpush1.msra.mxu0 0.0
  %3041 = vmatprep.subr.mxu0 0.0
  %3042 = vmatpush1.msra.mxu0 0.0
  %3043 = vmatprep.subr.mxu0 0.0
  %3044 = vmatpush1.msra.mxu0 0.0
  %3045 = vmatprep.subr.mxu0 0.0
  %3046 = vmatpush1.msra.mxu0 0.0
  %3047 = vmatprep.subr.mxu0 0.0
  %3048 = vmatpush1.msra.mxu0 0.0
  %3049 = vmatprep.subr.mxu0 0.0
  %3050 = vmatpush1.msra.mxu0 0.0
  %3051 = vmatprep.subr.mxu0 0.0
  %3052 = vmatpush1.msra.mxu0 0.0
  %3053 = vmatprep.subr.mxu0 0.0
  %3054 = vmatpush1.msra.mxu0 0.0
  %3055 = vmatprep.subr.mxu0 0.0
  %3056 = vmatpush1.msra.mxu0 0.0
  %3057 = vmatprep.subr.mxu0 0.0
  %3058 = vmatpush1.msra.mxu0 0.0
  %3059 = vmatprep.subr.mxu0 0.0
  %3060 = vmatpush1.msra.mxu0 0.0
  %3061 = vmatprep.subr.mxu0 0.0
  %3062 = vmatpush1.msra.mxu0 0.0
  %3063 = vmatprep.subr.mxu0 0.0
  %3064 = vmatpush1.msra.mxu0 0.0
  %3065 = vmatprep.subr.mxu0 0.0
  %3066 = vmatpush1.msra.mxu0 0.0
  %3067 = vmatprep.subr.mxu0 0.0
  %3068 = vmatpush1.msra.mxu0 0.0
  %3069 = vmatprep.subr.mxu0 0.0
  %3070 = vmatpush1.msra.mxu0 0.0
  %3071 = vmatprep.subr.mxu0 0.0
  %3072 = vmatpush1.msra.mxu0 0.0
  %3073 = vmatprep.subr.mxu0 0.0
  %3074 = vmatpush1.msra.mxu0 0.0
  %3075 = vmatprep.subr.mxu0 0.0
  %3076 = vmatpush1.msra.mxu0 0.0
  %3077 = vmatprep.subr.mxu0 0.0
  %3078 = vmatpush1.msra.mxu0 0.0
  %3079 = vmatprep.mubr.f32.mxu0 0.0
  %3080 = vmatmul.mubr.f32.gmra.mrb[0].mxu0 %v3013
  %v3081 = vpop.f32.mrb[0].mxu0
  %v3082 = vadd.f32 0.0, %v3081
  %v3083 = vpop.f32.mrb[0].mxu0
  %3084 = vdwg.mxu0
  %v3085 = vadd.f32 %v2312, %v3082
  %v3086 = vxor.u32 %v3085, 2147483648
  %v3087 = vmul.f32 %v3086, 1.442695
  %v3088 = vpow.pop %v3087
  %v3089 = vadd.f32 %v3088, 1.0
  %v3090 = vrcp.pop %v3089
  %v3091 = vmul.f32 1.0, %v3090
  %v3092 = vtanh.pop %v3085
  %v3093 = vmul.f32 %v3091, %v3003
  %3095 = vrot.lane.b32.xlu0 %v3092, 96
  %v3096 = vpop.permute.xlu0 %3095
  %v3098 = vmul.f32 %v3091, %v3096
  %3100 = vrot.lane.b32.xlu0 %v3098, 16
  %v3101 = vpop.permute.xlu0 %3100
  %v3103 = vadd.f32 %v3093, %v3101
  %v3104 = vtanh.pop %v3103
  %3106 = vrot.lane.b32.xlu0 %v3104, 32
  %v3107 = vpop.permute.xlu0 %3106
  %v3109 = vmul.f32 %v3091, %v3107
  %3111 = vrot.lane.b32.xlu0 %v2169, 32
  %v3112 = vpop.permute.xlu0 %3111
  %3121 = vst.msk [vmem:[#allocation2] sm:$0xff] %vm90, 0.0
  %3122 = vst.msk [vmem:[#allocation2 + $0x8] sm:$0xff] %vm90, 0.0
  %3123 = vst.msk [vmem:[#allocation2 + $0x10] sm:$0xff] %vm90, %v796
  %3124 = vst.msk [vmem:[#allocation2 + $0x18] sm:$0xff] %vm90, %v996
  %3125 = vst.msk [vmem:[#allocation2 + $0x20] sm:$0xff] %vm90, %v1196
  %3126 = vst.msk [vmem:[#allocation2 + $0x28] sm:$0xff] %vm90, %v1396
  %3127 = vst.msk [vmem:[#allocation2 + $0x30] sm:$0xff] %vm90, %v1596
  %3128 = vst.msk [vmem:[#allocation2 + $0x38] sm:$0xff] %vm90, %v1796
  %3129 = vst.msk [vmem:[#allocation2 + $0x40] sm:$0xff] %vm90, %v1996
  %3130 = vst.msk [vmem:[#allocation2 + $0x48] sm:$0xff] %vm90, %v3112
  %3131 = vst.msk [vmem:[#allocation2 + $0x50] sm:$0xff] %vm90, 0.0
  %3132 = vst.msk [vmem:[#allocation2 + $0x58] sm:$0xff] %vm90, 0.0
  %3134 = vrot.lane.b32.xlu0 %v3109, 80
  %v3135 = vpop.permute.xlu0 %3134
  %3144 = vst.msk [vmem:[#allocation3] sm:$0xff] %vm164, 0.0
  %3145 = vst.msk [vmem:[#allocation3 + $0x8] sm:$0xff] %vm164, 0.0
  %3146 = vst.msk [vmem:[#allocation3 + $0x10] sm:$0xff] %vm164, %v2412
  %3147 = vst.msk [vmem:[#allocation3 + $0x18] sm:$0xff] %vm164, %v2512
  %3148 = vst.msk [vmem:[#allocation3 + $0x20] sm:$0xff] %vm164, %v2612
  %3149 = vst.msk [vmem:[#allocation3 + $0x28] sm:$0xff] %vm164, %v2712
  %3150 = vst.msk [vmem:[#allocation3 + $0x30] sm:$0xff] %vm164, %v2812
  %3151 = vst.msk [vmem:[#allocation3 + $0x38] sm:$0xff] %vm164, %v2912
  %3152 = vst.msk [vmem:[#allocation3 + $0x40] sm:$0xff] %vm164, %v3012
  %3153 = vst.msk [vmem:[#allocation3 + $0x48] sm:$0xff] %vm164, %v3135
  %3154 = vst.msk [vmem:[#allocation3 + $0x50] sm:$0xff] %vm164, 0.0
  %3155 = vst.msk [vmem:[#allocation3 + $0x58] sm:$0xff] %vm164, 0.0
  %v3156 = vld [vmem:[%s15] sm:$0xff]
  %v3157 = vld [vmem:[%s15 + $0x8] sm:$0xff]
  %v3158 = vld [vmem:[%s15 + $0x10] sm:$0xff]
  %v3159 = vld [vmem:[%s15 + $0x18] sm:$0xff]
  %v3160 = vld [vmem:[%s15 + $0x20] sm:$0xff]
  %v3161 = vld [vmem:[%s15 + $0x28] sm:$0xff]
  %v3162 = vld [vmem:[%s15 + $0x30] sm:$0xff]
  %v3163 = vld [vmem:[%s15 + $0x38] sm:$0xff]
  %v3164 = vld [vmem:[%s15 + $0x40] sm:$0xff]
  %v3165 = vld [vmem:[%s15 + $0x48] sm:$0xff]
  %v3166 = vld [vmem:[%s15 + $0x50] sm:$0xff]
  %v3167 = vld [vmem:[%s15 + $0x58] sm:$0xff]
  %v3168 = vld [vmem:[%s15 + $0x60] sm:$0xff]
  %v3169 = vld [vmem:[%s15 + $0x68] sm:$0xff]
  %v3170 = vld [vmem:[%s15 + $0x70] sm:$0xff]
  %v3171 = vld [vmem:[%s15 + $0x78] sm:$0xff]
  %v3172 = vld [vmem:[%s15 + $0x80] sm:$0xff]
  %v3173 = vld [vmem:[%s15 + $0x88] sm:$0xff]
  %v3174 = vld [vmem:[%s15 + $0x90] sm:$0xff]
  %v3175 = vld [vmem:[%s15 + $0x98] sm:$0xff]
  %v3176 = vld [vmem:[%s15 + $0xa0] sm:$0xff]
  %v3177 = vld [vmem:[%s15 + $0xa8] sm:$0xff]
  %v3178 = vld [vmem:[%s15 + $0xb0] sm:$0xff]
  %v3179 = vld [vmem:[%s15 + $0xb8] sm:$0xff]
  %v3180 = vld [vmem:[%s15 + $0xc0] sm:$0xff]
  %v3181 = vld [vmem:[%s15 + $0xc8] sm:$0xff]
  %v3182 = vld [vmem:[%s15 + $0xd0] sm:$0xff]
  %v3183 = vld [vmem:[%s15 + $0xd8] sm:$0xff]
  %v3184 = vld [vmem:[%s15 + $0xe0] sm:$0xff]
  %v3185 = vld [vmem:[%s15 + $0xe8] sm:$0xff]
  %v3186 = vld [vmem:[%s16] sm:$0x1]
  %v3187 = vld [vmem:[#allocation2] sm:$0xff]
  %v3188 = vld [vmem:[#allocation2 + $0x8] sm:$0xff]
  %v3189 = vld [vmem:[#allocation2 + $0x10] sm:$0xff]
  %v3190 = vld [vmem:[#allocation2 + $0x18] sm:$0xff]
  %v3191 = vld [vmem:[#allocation2 + $0x20] sm:$0xff]
  %v3192 = vld [vmem:[#allocation2 + $0x28] sm:$0xff]
  %v3193 = vld [vmem:[#allocation2 + $0x30] sm:$0xff]
  %v3194 = vld [vmem:[#allocation2 + $0x38] sm:$0xff]
  %v3196 = vsel %vm90, %v3187, 0
  %v3199 = vsel %vm90, %v3188, 0
  %v3202 = vsel %vm90, %v3189, 0
  %v3205 = vsel %vm90, %v3190, 0
  %v3208 = vsel %vm90, %v3191, 0
  %v3211 = vsel %vm90, %v3192, 0
  %v3214 = vsel %vm90, %v3193, 0
  %v3217 = vsel %vm90, %v3194, 0
  %3219 = vmatprep.subr.mxu0 0.0
  %3220 = vmatpush1.msra.mxu0 %v3156
  %3221 = vmatprep.subr.mxu0 0.0
  %3222 = vmatpush1.msra.mxu0 %v3157
  %3223 = vmatprep.subr.mxu0 0.0
  %3224 = vmatpush1.msra.mxu0 %v3158
  %3225 = vmatprep.subr.mxu0 0.0
  %3226 = vmatpush1.msra.mxu0 %v3159
  %3227 = vmatprep.subr.mxu0 0.0
  %3228 = vmatpush1.msra.mxu0 0.0
  %3229 = vmatprep.subr.mxu0 0.0
  %3230 = vmatpush1.msra.mxu0 0.0
  %3231 = vmatprep.subr.mxu0 0.0
  %3232 = vmatpush1.msra.mxu0 0.0
  %3233 = vmatprep.subr.mxu0 0.0
  %3234 = vmatpush1.msra.mxu0 0.0
  %3235 = vmatprep.subr.mxu0 0.0
  %3236 = vmatpush1.msra.mxu0 0.0
  %3237 = vmatprep.subr.mxu0 0.0
  %3238 = vmatpush1.msra.mxu0 0.0
  %3239 = vmatprep.subr.mxu0 0.0
  %3240 = vmatpush1.msra.mxu0 0.0
  %3241 = vmatprep.subr.mxu0 0.0
  %3242 = vmatpush1.msra.mxu0 0.0
  %3243 = vmatprep.subr.mxu0 0.0
  %3244 = vmatpush1.msra.mxu0 0.0
  %3245 = vmatprep.subr.mxu0 0.0
  %3246 = vmatpush1.msra.mxu0 0.0
  %3247 = vmatprep.subr.mxu0 0.0
  %3248 = vmatpush1.msra.mxu0 0.0
  %3249 = vmatprep.subr.mxu0 0.0
  %3250 = vmatpush1.msra.mxu0 0.0
  %3251 = vmatprep.subr.mxu0 0.0
  %3252 = vmatpush1.msra.mxu0 0.0
  %3253 = vmatprep.subr.mxu0 0.0
  %3254 = vmatpush1.msra.mxu0 0.0
  %3255 = vmatprep.subr.mxu0 0.0
  %3256 = vmatpush1.msra.mxu0 0.0
  %3257 = vmatprep.subr.mxu0 0.0
  %3258 = vmatpush1.msra.mxu0 0.0
  %3259 = vmatprep.subr.mxu0 0.0
  %3260 = vmatpush1.msra.mxu0 0.0
  %3261 = vmatprep.subr.mxu0 0.0
  %3262 = vmatpush1.msra.mxu0 0.0
  %3263 = vmatprep.subr.mxu0 0.0
  %3264 = vmatpush1.msra.mxu0 0.0
  %3265 = vmatprep.subr.mxu0 0.0
  %3266 = vmatpush1.msra.mxu0 0.0
  %3267 = vmatprep.subr.mxu0 0.0
  %3268 = vmatpush1.msra.mxu0 0.0
  %3269 = vmatprep.subr.mxu0 0.0
  %3270 = vmatpush1.msra.mxu0 0.0
  %3271 = vmatprep.subr.mxu0 0.0
  %3272 = vmatpush1.msra.mxu0 0.0
  %3273 = vmatprep.subr.mxu0 0.0
  %3274 = vmatpush1.msra.mxu0 0.0
  %3275 = vmatprep.subr.mxu0 0.0
  %3276 = vmatpush1.msra.mxu0 0.0
  %3277 = vmatprep.subr.mxu0 0.0
  %3278 = vmatpush1.msra.mxu0 0.0
  %3279 = vmatprep.subr.mxu0 0.0
  %3280 = vmatpush1.msra.mxu0 0.0
  %3281 = vmatprep.subr.mxu0 0.0
  %3282 = vmatpush1.msra.mxu0 0.0
  %3283 = vmatprep.mubr.f32.mxu0 0.0
  %3284 = vmatmul.mubr.f32.gmra.mrb[0].mxu0 %v3196
  %v3285 = vpop.f32.mrb[0].mxu0
  %v3286 = vadd.f32 0.0, %v3285
  %v3287 = vpop.f32.mrb[0].mxu0
  %3288 = vmatprep.mubr.f32.mxu0 0.0
  %3289 = vmatmul.mubr.f32.gmra.mrb[0].mxu0 %v3199
  %v3290 = vpop.f32.mrb[0].mxu0
  %v3291 = vadd.f32 0.0, %v3290
  %v3292 = vpop.f32.mrb[0].mxu0
  %3293 = vmatprep.mubr.f32.mxu0 0.0
  %3294 = vmatmul.mubr.f32.gmra.mrb[0].mxu0 %v3202
  %v3295 = vpop.f32.mrb[0].mxu0
  %v3296 = vadd.f32 0.0, %v3295
  %v3297 = vpop.f32.mrb[0].mxu0
  %3298 = vmatprep.mubr.f32.mxu0 0.0
  %3299 = vmatmul.mubr.f32.gmra.mrb[0].mxu0 %v3205
  %v3300 = vpop.f32.mrb[0].mxu0
  %v3301 = vadd.f32 0.0, %v3300
  %v3302 = vpop.f32.mrb[0].mxu0
  %3303 = vmatprep.mubr.f32.mxu0 0.0
  %3304 = vmatmul.mubr.f32.gmra.mrb[0].mxu0 %v3208
  %v3305 = vpop.f32.mrb[0].mxu0
  %v3306 = vadd.f32 0.0, %v3305
  %v3307 = vpop.f32.mrb[0].mxu0
  %3308 = vmatprep.mubr.f32.mxu0 0.0
  %3309 = vmatmul.mubr.f32.gmra.mrb[0].mxu0 %v3211
  %v3310 = vpop.f32.mrb[0].mxu0
  %v3311 = vadd.f32 0.0, %v3310
  %v3312 = vpop.f32.mrb[0].mxu0
  %3313 = vmatprep.mubr.f32.mxu0 0.0
  %3314 = vmatmul.mubr.f32.gmra.mrb[0].mxu0 %v3214
  %v3315 = vpop.f32.mrb[0].mxu0
  %v3316 = vadd.f32 0.0, %v3315
  %v3317 = vpop.f32.mrb[0].mxu0
  %3318 = vmatprep.mubr.f32.mxu0 0.0
  %3319 = vmatmul.mubr.f32.gmra.mrb[0].mxu0 %v3217
  %v3320 = vpop.f32.mrb[0].mxu0
  %v3321 = vadd.f32 0.0, %v3320
  %v3322 = vpop.f32.mrb[0].mxu0
  %3323 = vdwg.mxu0
  %v3325 = vlaneseq
  %v3326 = vshrl.u32 %v3325, 7
  %v3327 = vsub.s32 0, %v3326
  %v3328 = vrot.slane %v3186, %v3327
  %v3330 = vadd.f32 %v3328, %v3286
  %v3331 = vadd.f32 %v3328, %v3291
  %v3332 = vadd.f32 %v3328, %v3296
  %v3333 = vadd.f32 %v3328, %v3301
  %v3334 = vadd.f32 %v3328, %v3306
  %v3335 = vadd.f32 %v3328, %v3311
  %v3336 = vadd.f32 %v3328, %v3316
  %v3337 = vadd.f32 %v3328, %v3321
  %v3338 = vld [vmem:[#allocation3] sm:$0xff]
  %v3339 = vld [vmem:[#allocation3 + $0x8] sm:$0xff]
  %v3340 = vld [vmem:[#allocation3 + $0x10] sm:$0xff]
  %v3341 = vld [vmem:[#allocation3 + $0x18] sm:$0xff]
  %v3342 = vld [vmem:[#allocation3 + $0x20] sm:$0xff]
  %v3343 = vld [vmem:[#allocation3 + $0x28] sm:$0xff]
  %v3344 = vld [vmem:[#allocation3 + $0x30] sm:$0xff]
  %v3345 = vld [vmem:[#allocation3 + $0x38] sm:$0xff]
  %v3347 = vsel %vm164, %v3338, 0
  %v3350 = vsel %vm164, %v3339, 0
  %v3353 = vsel %vm164, %v3340, 0
  %v3356 = vsel %vm164, %v3341, 0
  %v3359 = vsel %vm164, %v3342, 0
  %v3362 = vsel %vm164, %v3343, 0
  %v3365 = vsel %vm164, %v3344, 0
  %v3368 = vsel %vm164, %v3345, 0
  %3370 = vmatprep.subr.mxu0 0.0
  %3371 = vmatpush1.msra.mxu0 %v3160
  %3372 = vmatprep.subr.mxu0 0.0
  %3373 = vmatpush1.msra.mxu0 %v3161
  %3374 = vmatprep.subr.mxu0 0.0
  %3375 = vmatpush1.msra.mxu0 0.0
  %3376 = vmatprep.subr.mxu0 0.0
  %3377 = vmatpush1.msra.mxu0 0.0
  %3378 = vmatprep.subr.mxu0 0.0
  %3379 = vmatpush1.msra.mxu0 0.0
  %3380 = vmatprep.subr.mxu0 0.0
  %3381 = vmatpush1.msra.mxu0 0.0
  %3382 = vmatprep.subr.mxu0 0.0
  %3383 = vmatpush1.msra.mxu0 0.0
  %3384 = vmatprep.subr.mxu0 0.0
  %3385 = vmatpush1.msra.mxu0 0.0
  %3386 = vmatprep.subr.mxu0 0.0
  %3387 = vmatpush1.msra.mxu0 0.0
  %3388 = vmatprep.subr.mxu0 0.0
  %3389 = vmatpush1.msra.mxu0 0.0
  %3390 = vmatprep.subr.mxu0 0.0
  %3391 = vmatpush1.msra.mxu0 0.0
  %3392 = vmatprep.subr.mxu0 0.0
  %3393 = vmatpush1.msra.mxu0 0.0
  %3394 = vmatprep.subr.mxu0 0.0
  %3395 = vmatpush1.msra.mxu0 0.0
  %3396 = vmatprep.subr.mxu0 0.0
  %3397 = vmatpush1.msra.mxu0 0.0
  %3398 = vmatprep.subr.mxu0 0.0
  %3399 = vmatpush1.msra.mxu0 0.0
  %3400 = vmatprep.subr.mxu0 0.0
  %3401 = vmatpush1.msra.mxu0 0.0
  %3402 = vmatprep.subr.mxu0 0.0
  %3403 = vmatpush1.msra.mxu0 0.0
  %3404 = vmatprep.subr.mxu0 0.0
  %3405 = vmatpush1.msra.mxu0 0.0
  %3406 = vmatprep.subr.mxu0 0.0
  %3407 = vmatpush1.msra.mxu0 0.0
  %3408 = vmatprep.subr.mxu0 0.0
  %3409 = vmatpush1.msra.mxu0 0.0
  %3410 = vmatprep.subr.mxu0 0.0
  %3411 = vmatpush1.msra.mxu0 0.0
  %3412 = vmatprep.subr.mxu0 0.0
  %3413 = vmatpush1.msra.mxu0 0.0
  %3414 = vmatprep.subr.mxu0 0.0
  %3415 = vmatpush1.msra.mxu0 0.0
  %3416 = vmatprep.subr.mxu0 0.0
  %3417 = vmatpush1.msra.mxu0 0.0
  %3418 = vmatprep.subr.mxu0 0.0
  %3419 = vmatpush1.msra.mxu0 0.0
  %3420 = vmatprep.subr.mxu0 0.0
  %3421 = vmatpush1.msra.mxu0 0.0
  %3422 = vmatprep.subr.mxu0 0.0
  %3423 = vmatpush1.msra.mxu0 0.0
  %3424 = vmatprep.subr.mxu0 0.0
  %3425 = vmatpush1.msra.mxu0 0.0
  %3426 = vmatprep.subr.mxu0 0.0
  %3427 = vmatpush1.msra.mxu0 0.0
  %3428 = vmatprep.subr.mxu0 0.0
  %3429 = vmatpush1.msra.mxu0 0.0
  %3430 = vmatprep.subr.mxu0 0.0
  %3431 = vmatpush1.msra.mxu0 0.0
  %3432 = vmatprep.subr.mxu0 0.0
  %3433 = vmatpush1.msra.mxu0 0.0
  %3434 = vmatprep.mubr.f32.mxu0 0.0
  %3435 = vmatmul.mubr.f32.gmra.mrb[0].mxu0 %v3347
  %v3436 = vpop.f32.mrb[0].mxu0
  %v3437 = vadd.f32 0.0, %v3436
  %v3438 = vpop.f32.mrb[0].mxu0
  %3439 = vmatprep.mubr.f32.mxu0 0.0
  %3440 = vmatmul.mubr.f32.gmra.mrb[0].mxu0 %v3350
  %v3441 = vpop.f32.mrb[0].mxu0
  %v3442 = vadd.f32 0.0, %v3441
  %v3443 = vpop.f32.mrb[0].mxu0
  %3444 = vmatprep.mubr.f32.mxu0 0.0
  %3445 = vmatmul.mubr.f32.gmra.mrb[0].mxu0 %v3353
  %v3446 = vpop.f32.mrb[0].mxu0
  %v3447 = vadd.f32 0.0, %v3446
  %v3448 = vpop.f32.mrb[0].mxu0
  %3449 = vmatprep.mubr.f32.mxu0 0.0
  %3450 = vmatmul.mubr.f32.gmra.mrb[0].mxu0 %v3356
  %v3451 = vpop.f32.mrb[0].mxu0
  %v3452 = vadd.f32 0.0, %v3451
  %v3453 = vpop.f32.mrb[0].mxu0
  %3454 = vmatprep.mubr.f32.mxu0 0.0
  %3455 = vmatmul.mubr.f32.gmra.mrb[0].mxu0 %v3359
  %v3456 = vpop.f32.mrb[0].mxu0
  %v3457 = vadd.f32 0.0, %v3456
  %v3458 = vpop.f32.mrb[0].mxu0
  %3459 = vmatprep.mubr.f32.mxu0 0.0
  %3460 = vmatmul.mubr.f32.gmra.mrb[0].mxu0 %v3362
  %v3461 = vpop.f32.mrb[0].mxu0
  %v3462 = vadd.f32 0.0, %v3461
  %v3463 = vpop.f32.mrb[0].mxu0
  %3464 = vmatprep.mubr.f32.mxu0 0.0
  %3465 = vmatmul.mubr.f32.gmra.mrb[0].mxu0 %v3365
  %v3466 = vpop.f32.mrb[0].mxu0
  %v3467 = vadd.f32 0.0, %v3466
  %v3468 = vpop.f32.mrb[0].mxu0
  %3469 = vmatprep.mubr.f32.mxu0 0.0
  %3470 = vmatmul.mubr.f32.gmra.mrb[0].mxu0 %v3368
  %v3471 = vpop.f32.mrb[0].mxu0
  %v3472 = vadd.f32 0.0, %v3471
  %v3473 = vpop.f32.mrb[0].mxu0
  %3474 = vdwg.mxu0
  %v3475 = vadd.f32 %v3330, %v3437
  %v3476 = vadd.f32 %v3331, %v3442
  %v3477 = vadd.f32 %v3332, %v3447
  %v3478 = vadd.f32 %v3333, %v3452
  %v3479 = vadd.f32 %v3334, %v3457
  %v3480 = vadd.f32 %v3335, %v3462
  %v3481 = vadd.f32 %v3336, %v3467
  %v3482 = vadd.f32 %v3337, %v3472
  %v3483 = vld [vmem:[#allocation2 + $0x8] sm:$0xff]
  %v3484 = vld [vmem:[#allocation2 + $0x10] sm:$0xff]
  %v3485 = vld [vmem:[#allocation2 + $0x18] sm:$0xff]
  %v3486 = vld [vmem:[#allocation2 + $0x20] sm:$0xff]
  %v3487 = vld [vmem:[#allocation2 + $0x28] sm:$0xff]
  %v3488 = vld [vmem:[#allocation2 + $0x30] sm:$0xff]
  %v3489 = vld [vmem:[#allocation2 + $0x38] sm:$0xff]
  %v3490 = vld [vmem:[#allocation2 + $0x40] sm:$0xff]
  %v3492 = vsel %vm90, %v3483, 0
  %v3495 = vsel %vm90, %v3484, 0
  %v3498 = vsel %vm90, %v3485, 0
  %v3501 = vsel %vm90, %v3486, 0
  %v3504 = vsel %vm90, %v3487, 0
  %v3507 = vsel %vm90, %v3488, 0
  %v3510 = vsel %vm90, %v3489, 0
  %v3513 = vsel %vm90, %v3490, 0
  %3515 = vmatprep.subr.mxu0 0.0
  %3516 = vmatpush1.msra.mxu0 %v3162
  %3517 = vmatprep.subr.mxu0 0.0
  %3518 = vmatpush1.msra.mxu0 %v3163
  %3519 = vmatprep.subr.mxu0 0.0
  %3520 = vmatpush1.msra.mxu0 %v3164
  %3521 = vmatprep.subr.mxu0 0.0
  %3522 = vmatpush1.msra.mxu0 %v3165
  %3523 = vmatprep.subr.mxu0 0.0
  %3524 = vmatpush1.msra.mxu0 0.0
  %3525 = vmatprep.subr.mxu0 0.0
  %3526 = vmatpush1.msra.mxu0 0.0
  %3527 = vmatprep.subr.mxu0 0.0
  %3528 = vmatpush1.msra.mxu0 0.0
  %3529 = vmatprep.subr.mxu0 0.0
  %3530 = vmatpush1.msra.mxu0 0.0
  %3531 = vmatprep.subr.mxu0 0.0
  %3532 = vmatpush1.msra.mxu0 0.0
  %3533 = vmatprep.subr.mxu0 0.0
  %3534 = vmatpush1.msra.mxu0 0.0
  %3535 = vmatprep.subr.mxu0 0.0
  %3536 = vmatpush1.msra.mxu0 0.0
  %3537 = vmatprep.subr.mxu0 0.0
  %3538 = vmatpush1.msra.mxu0 0.0
  %3539 = vmatprep.subr.mxu0 0.0
  %3540 = vmatpush1.msra.mxu0 0.0
  %3541 = vmatprep.subr.mxu0 0.0
  %3542 = vmatpush1.msra.mxu0 0.0
  %3543 = vmatprep.subr.mxu0 0.0
  %3544 = vmatpush1.msra.mxu0 0.0
  %3545 = vmatprep.subr.mxu0 0.0
  %3546 = vmatpush1.msra.mxu0 0.0
  %3547 = vmatprep.subr.mxu0 0.0
  %3548 = vmatpush1.msra.mxu0 0.0
  %3549 = vmatprep.subr.mxu0 0.0
  %3550 = vmatpush1.msra.mxu0 0.0
  %3551 = vmatprep.subr.mxu0 0.0
  %3552 = vmatpush1.msra.mxu0 0.0
  %3553 = vmatprep.subr.mxu0 0.0
  %3554 = vmatpush1.msra.mxu0 0.0
  %3555 = vmatprep.subr.mxu0 0.0
  %3556 = vmatpush1.msra.mxu0 0.0
  %3557 = vmatprep.subr.mxu0 0.0
  %3558 = vmatpush1.msra.mxu0 0.0
  %3559 = vmatprep.subr.mxu0 0.0
  %3560 = vmatpush1.msra.mxu0 0.0
  %3561 = vmatprep.subr.mxu0 0.0
  %3562 = vmatpush1.msra.mxu0 0.0
  %3563 = vmatprep.subr.mxu0 0.0
  %3564 = vmatpush1.msra.mxu0 0.0
  %3565 = vmatprep.subr.mxu0 0.0
  %3566 = vmatpush1.msra.mxu0 0.0
  %3567 = vmatprep.subr.mxu0 0.0
  %3568 = vmatpush1.msra.mxu0 0.0
  %3569 = vmatprep.subr.mxu0 0.0
  %3570 = vmatpush1.msra.mxu0 0.0
  %3571 = vmatprep.subr.mxu0 0.0
  %3572 = vmatpush1.msra.mxu0 0.0
  %3573 = vmatprep.subr.mxu0 0.0
  %3574 = vmatpush1.msra.mxu0 0.0
  %3575 = vmatprep.subr.mxu0 0.0
  %3576 = vmatpush1.msra.mxu0 0.0
  %3577 = vmatprep.subr.mxu0 0.0
  %3578 = vmatpush1.msra.mxu0 0.0
  %3579 = vmatprep.mubr.f32.mxu0 0.0
  %3580 = vmatmul.mubr.f32.gmra.mrb[0].mxu0 %v3492
  %v3581 = vpop.f32.mrb[0].mxu0
  %v3582 = vadd.f32 0.0, %v3581
  %v3583 = vpop.f32.mrb[0].mxu0
  %3584 = vmatprep.mubr.f32.mxu0 0.0
  %3585 = vmatmul.mubr.f32.gmra.mrb[0].mxu0 %v3495
  %v3586 = vpop.f32.mrb[0].mxu0
  %v3587 = vadd.f32 0.0, %v3586
  %v3588 = vpop.f32.mrb[0].mxu0
  %3589 = vmatprep.mubr.f32.mxu0 0.0
  %3590 = vmatmul.mubr.f32.gmra.mrb[0].mxu0 %v3498
  %v3591 = vpop.f32.mrb[0].mxu0
  %v3592 = vadd.f32 0.0, %v3591
  %v3593 = vpop.f32.mrb[0].mxu0
  %3594 = vmatprep.mubr.f32.mxu0 0.0
  %3595 = vmatmul.mubr.f32.gmra.mrb[0].mxu0 %v3501
  %v3596 = vpop.f32.mrb[0].mxu0
  %v3597 = vadd.f32 0.0, %v3596
  %v3598 = vpop.f32.mrb[0].mxu0
  %3599 = vmatprep.mubr.f32.mxu0 0.0
  %3600 = vmatmul.mubr.f32.gmra.mrb[0].mxu0 %v3504
  %v3601 = vpop.f32.mrb[0].mxu0
  %v3602 = vadd.f32 0.0, %v3601
  %v3603 = vpop.f32.mrb[0].mxu0
  %3604 = vmatprep.mubr.f32.mxu0 0.0
  %3605 = vmatmul.mubr.f32.gmra.mrb[0].mxu0 %v3507
  %v3606 = vpop.f32.mrb[0].mxu0
  %v3607 = vadd.f32 0.0, %v3606
  %v3608 = vpop.f32.mrb[0].mxu0
  %3609 = vmatprep.mubr.f32.mxu0 0.0
  %3610 = vmatmul.mubr.f32.gmra.mrb[0].mxu0 %v3510
  %v3611 = vpop.f32.mrb[0].mxu0
  %v3612 = vadd.f32 0.0, %v3611
  %v3613 = vpop.f32.mrb[0].mxu0
  %3614 = vmatprep.mubr.f32.mxu0 0.0
  %3615 = vmatmul.mubr.f32.gmra.mrb[0].mxu0 %v3513
  %v3616 = vpop.f32.mrb[0].mxu0
  %v3617 = vadd.f32 0.0, %v3616
  %v3618 = vpop.f32.mrb[0].mxu0
  %3619 = vdwg.mxu0
  %v3620 = vadd.f32 %v3475, %v3582
  %v3621 = vadd.f32 %v3476, %v3587
  %v3622 = vadd.f32 %v3477, %v3592
  %v3623 = vadd.f32 %v3478, %v3597
  %v3624 = vadd.f32 %v3479, %v3602
  %v3625 = vadd.f32 %v3480, %v3607
  %v3626 = vadd.f32 %v3481, %v3612
  %v3627 = vadd.f32 %v3482, %v3617
  %v3628 = vld [vmem:[#allocation3 + $0x8] sm:$0xff]
  %v3629 = vld [vmem:[#allocation3 + $0x10] sm:$0xff]
  %v3630 = vld [vmem:[#allocation3 + $0x18] sm:$0xff]
  %v3631 = vld [vmem:[#allocation3 + $0x20] sm:$0xff]
  %v3632 = vld [vmem:[#allocation3 + $0x28] sm:$0xff]
  %v3633 = vld [vmem:[#allocation3 + $0x30] sm:$0xff]
  %v3634 = vld [vmem:[#allocation3 + $0x38] sm:$0xff]
  %v3635 = vld [vmem:[#allocation3 + $0x40] sm:$0xff]
  %v3637 = vsel %vm164, %v3628, 0
  %v3640 = vsel %vm164, %v3629, 0
  %v3643 = vsel %vm164, %v3630, 0
  %v3646 = vsel %vm164, %v3631, 0
  %v3649 = vsel %vm164, %v3632, 0
  %v3652 = vsel %vm164, %v3633, 0
  %v3655 = vsel %vm164, %v3634, 0
  %v3658 = vsel %vm164, %v3635, 0
  %3660 = vmatprep.subr.mxu0 0.0
  %3661 = vmatpush1.msra.mxu0 %v3166
  %3662 = vmatprep.subr.mxu0 0.0
  %3663 = vmatpush1.msra.mxu0 %v3167
  %3664 = vmatprep.subr.mxu0 0.0
  %3665 = vmatpush1.msra.mxu0 0.0
  %3666 = vmatprep.subr.mxu0 0.0
  %3667 = vmatpush1.msra.mxu0 0.0
  %3668 = vmatprep.subr.mxu0 0.0
  %3669 = vmatpush1.msra.mxu0 0.0
  %3670 = vmatprep.subr.mxu0 0.0
  %3671 = vmatpush1.msra.mxu0 0.0
  %3672 = vmatprep.subr.mxu0 0.0
  %3673 = vmatpush1.msra.mxu0 0.0
  %3674 = vmatprep.subr.mxu0 0.0
  %3675 = vmatpush1.msra.mxu0 0.0
  %3676 = vmatprep.subr.mxu0 0.0
  %3677 = vmatpush1.msra.mxu0 0.0
  %3678 = vmatprep.subr.mxu0 0.0
  %3679 = vmatpush1.msra.mxu0 0.0
  %3680 = vmatprep.subr.mxu0 0.0
  %3681 = vmatpush1.msra.mxu0 0.0
  %3682 = vmatprep.subr.mxu0 0.0
  %3683 = vmatpush1.msra.mxu0 0.0
  %3684 = vmatprep.subr.mxu0 0.0
  %3685 = vmatpush1.msra.mxu0 0.0
  %3686 = vmatprep.subr.mxu0 0.0
  %3687 = vmatpush1.msra.mxu0 0.0
  %3688 = vmatprep.subr.mxu0 0.0
  %3689 = vmatpush1.msra.mxu0 0.0
  %3690 = vmatprep.subr.mxu0 0.0
  %3691 = vmatpush1.msra.mxu0 0.0
  %3692 = vmatprep.subr.mxu0 0.0
  %3693 = vmatpush1.msra.mxu0 0.0
  %3694 = vmatprep.subr.mxu0 0.0
  %3695 = vmatpush1.msra.mxu0 0.0
  %3696 = vmatprep.subr.mxu0 0.0
  %3697 = vmatpush1.msra.mxu0 0.0
  %3698 = vmatprep.subr.mxu0 0.0
  %3699 = vmatpush1.msra.mxu0 0.0
  %3700 = vmatprep.subr.mxu0 0.0
  %3701 = vmatpush1.msra.mxu0 0.0
  %3702 = vmatprep.subr.mxu0 0.0
  %3703 = vmatpush1.msra.mxu0 0.0
  %3704 = vmatprep.subr.mxu0 0.0
  %3705 = vmatpush1.msra.mxu0 0.0
  %3706 = vmatprep.subr.mxu0 0.0
  %3707 = vmatpush1.msra.mxu0 0.0
  %3708 = vmatprep.subr.mxu0 0.0
  %3709 = vmatpush1.msra.mxu0 0.0
  %3710 = vmatprep.subr.mxu0 0.0
  %3711 = vmatpush1.msra.mxu0 0.0
  %3712 = vmatprep.subr.mxu0 0.0
  %3713 = vmatpush1.msra.mxu0 0.0
  %3714 = vmatprep.subr.mxu0 0.0
  %3715 = vmatpush1.msra.mxu0 0.0
  %3716 = vmatprep.subr.mxu0 0.0
  %3717 = vmatpush1.msra.mxu0 0.0
  %3718 = vmatprep.subr.mxu0 0.0
  %3719 = vmatpush1.msra.mxu0 0.0
  %3720 = vmatprep.subr.mxu0 0.0
  %3721 = vmatpush1.msra.mxu0 0.0
  %3722 = vmatprep.subr.mxu0 0.0
  %3723 = vmatpush1.msra.mxu0 0.0
  %3724 = vmatprep.mubr.f32.mxu0 0.0
  %3725 = vmatmul.mubr.f32.gmra.mrb[0].mxu0 %v3637
  %v3726 = vpop.f32.mrb[0].mxu0
  %v3727 = vadd.f32 0.0, %v3726
  %v3728 = vpop.f32.mrb[0].mxu0
  %3729 = vmatprep.mubr.f32.mxu0 0.0
  %3730 = vmatmul.mubr.f32.gmra.mrb[0].mxu0 %v3640
  %v3731 = vpop.f32.mrb[0].mxu0
  %v3732 = vadd.f32 0.0, %v3731
  %v3733 = vpop.f32.mrb[0].mxu0
  %3734 = vmatprep.mubr.f32.mxu0 0.0
  %3735 = vmatmul.mubr.f32.gmra.mrb[0].mxu0 %v3643
  %v3736 = vpop.f32.mrb[0].mxu0
  %v3737 = vadd.f32 0.0, %v3736
  %v3738 = vpop.f32.mrb[0].mxu0
  %3739 = vmatprep.mubr.f32.mxu0 0.0
  %3740 = vmatmul.mubr.f32.gmra.mrb[0].mxu0 %v3646
  %v3741 = vpop.f32.mrb[0].mxu0
  %v3742 = vadd.f32 0.0, %v3741
  %v3743 = vpop.f32.mrb[0].mxu0
  %3744 = vmatprep.mubr.f32.mxu0 0.0
  %3745 = vmatmul.mubr.f32.gmra.mrb[0].mxu0 %v3649
  %v3746 = vpop.f32.mrb[0].mxu0
  %v3747 = vadd.f32 0.0, %v3746
  %v3748 = vpop.f32.mrb[0].mxu0
  %3749 = vmatprep.mubr.f32.mxu0 0.0
  %3750 = vmatmul.mubr.f32.gmra.mrb[0].mxu0 %v3652
  %v3751 = vpop.f32.mrb[0].mxu0
  %v3752 = vadd.f32 0.0, %v3751
  %v3753 = vpop.f32.mrb[0].mxu0
  %3754 = vmatprep.mubr.f32.mxu0 0.0
  %3755 = vmatmul.mubr.f32.gmra.mrb[0].mxu0 %v3655
  %v3756 = vpop.f32.mrb[0].mxu0
  %v3757 = vadd.f32 0.0, %v3756
  %v3758 = vpop.f32.mrb[0].mxu0
  %3759 = vmatprep.mubr.f32.mxu0 0.0
  %3760 = vmatmul.mubr.f32.gmra.mrb[0].mxu0 %v3658
  %v3761 = vpop.f32.mrb[0].mxu0
  %v3762 = vadd.f32 0.0, %v3761
  %v3763 = vpop.f32.mrb[0].mxu0
  %3764 = vdwg.mxu0
  %v3765 = vadd.f32 %v3620, %v3727
  %v3766 = vadd.f32 %v3621, %v3732
  %v3767 = vadd.f32 %v3622, %v3737
  %v3768 = vadd.f32 %v3623, %v3742
  %v3769 = vadd.f32 %v3624, %v3747
  %v3770 = vadd.f32 %v3625, %v3752
  %v3771 = vadd.f32 %v3626, %v3757
  %v3772 = vadd.f32 %v3627, %v3762
  %v3773 = vld [vmem:[#allocation2 + $0x10] sm:$0xff]
  %v3774 = vld [vmem:[#allocation2 + $0x18] sm:$0xff]
  %v3775 = vld [vmem:[#allocation2 + $0x20] sm:$0xff]
  %v3776 = vld [vmem:[#allocation2 + $0x28] sm:$0xff]
  %v3777 = vld [vmem:[#allocation2 + $0x30] sm:$0xff]
  %v3778 = vld [vmem:[#allocation2 + $0x38] sm:$0xff]
  %v3779 = vld [vmem:[#allocation2 + $0x40] sm:$0xff]
  %v3780 = vld [vmem:[#allocation2 + $0x48] sm:$0xff]
  %v3782 = vsel %vm90, %v3773, 0
  %v3785 = vsel %vm90, %v3774, 0
  %v3788 = vsel %vm90, %v3775, 0
  %v3791 = vsel %vm90, %v3776, 0
  %v3794 = vsel %vm90, %v3777, 0
  %v3797 = vsel %vm90, %v3778, 0
  %v3800 = vsel %vm90, %v3779, 0
  %v3803 = vsel %vm90, %v3780, 0
  %3805 = vmatprep.subr.mxu0 0.0
  %3806 = vmatpush1.msra.mxu0 %v3168
  %3807 = vmatprep.subr.mxu0 0.0
  %3808 = vmatpush1.msra.mxu0 %v3169
  %3809 = vmatprep.subr.mxu0 0.0
  %3810 = vmatpush1.msra.mxu0 %v3170
  %3811 = vmatprep.subr.mxu0 0.0
  %3812 = vmatpush1.msra.mxu0 %v3171
  %3813 = vmatprep.subr.mxu0 0.0
  %3814 = vmatpush1.msra.mxu0 0.0
  %3815 = vmatprep.subr.mxu0 0.0
  %3816 = vmatpush1.msra.mxu0 0.0
  %3817 = vmatprep.subr.mxu0 0.0
  %3818 = vmatpush1.msra.mxu0 0.0
  %3819 = vmatprep.subr.mxu0 0.0
  %3820 = vmatpush1.msra.mxu0 0.0
  %3821 = vmatprep.subr.mxu0 0.0
  %3822 = vmatpush1.msra.mxu0 0.0
  %3823 = vmatprep.subr.mxu0 0.0
  %3824 = vmatpush1.msra.mxu0 0.0
  %3825 = vmatprep.subr.mxu0 0.0
  %3826 = vmatpush1.msra.mxu0 0.0
  %3827 = vmatprep.subr.mxu0 0.0
  %3828 = vmatpush1.msra.mxu0 0.0
  %3829 = vmatprep.subr.mxu0 0.0
  %3830 = vmatpush1.msra.mxu0 0.0
  %3831 = vmatprep.subr.mxu0 0.0
  %3832 = vmatpush1.msra.mxu0 0.0
  %3833 = vmatprep.subr.mxu0 0.0
  %3834 = vmatpush1.msra.mxu0 0.0
  %3835 = vmatprep.subr.mxu0 0.0
  %3836 = vmatpush1.msra.mxu0 0.0
  %3837 = vmatprep.subr.mxu0 0.0
  %3838 = vmatpush1.msra.mxu0 0.0
  %3839 = vmatprep.subr.mxu0 0.0
  %3840 = vmatpush1.msra.mxu0 0.0
  %3841 = vmatprep.subr.mxu0 0.0
  %3842 = vmatpush1.msra.mxu0 0.0
  %3843 = vmatprep.subr.mxu0 0.0
  %3844 = vmatpush1.msra.mxu0 0.0
  %3845 = vmatprep.subr.mxu0 0.0
  %3846 = vmatpush1.msra.mxu0 0.0
  %3847 = vmatprep.subr.mxu0 0.0
  %3848 = vmatpush1.msra.mxu0 0.0
  %3849 = vmatprep.subr.mxu0 0.0
  %3850 = vmatpush1.msra.mxu0 0.0
  %3851 = vmatprep.subr.mxu0 0.0
  %3852 = vmatpush1.msra.mxu0 0.0
  %3853 = vmatprep.subr.mxu0 0.0
  %3854 = vmatpush1.msra.mxu0 0.0
  %3855 = vmatprep.subr.mxu0 0.0
  %3856 = vmatpush1.msra.mxu0 0.0
  %3857 = vmatprep.subr.mxu0 0.0
  %3858 = vmatpush1.msra.mxu0 0.0
  %3859 = vmatprep.subr.mxu0 0.0
  %3860 = vmatpush1.msra.mxu0 0.0
  %3861 = vmatprep.subr.mxu0 0.0
  %3862 = vmatpush1.msra.mxu0 0.0
  %3863 = vmatprep.subr.mxu0 0.0
  %3864 = vmatpush1.msra.mxu0 0.0
  %3865 = vmatprep.subr.mxu0 0.0
  %3866 = vmatpush1.msra.mxu0 0.0
  %3867 = vmatprep.subr.mxu0 0.0
  %3868 = vmatpush1.msra.mxu0 0.0
  %3869 = vmatprep.mubr.f32.mxu0 0.0
  %3870 = vmatmul.mubr.f32.gmra.mrb[0].mxu0 %v3782
  %v3871 = vpop.f32.mrb[0].mxu0
  %v3872 = vadd.f32 0.0, %v3871
  %v3873 = vpop.f32.mrb[0].mxu0
  %3874 = vmatprep.mubr.f32.mxu0 0.0
  %3875 = vmatmul.mubr.f32.gmra.mrb[0].mxu0 %v3785
  %v3876 = vpop.f32.mrb[0].mxu0
  %v3877 = vadd.f32 0.0, %v3876
  %v3878 = vpop.f32.mrb[0].mxu0
  %3879 = vmatprep.mubr.f32.mxu0 0.0
  %3880 = vmatmul.mubr.f32.gmra.mrb[0].mxu0 %v3788
  %v3881 = vpop.f32.mrb[0].mxu0
  %v3882 = vadd.f32 0.0, %v3881
  %v3883 = vpop.f32.mrb[0].mxu0
  %3884 = vmatprep.mubr.f32.mxu0 0.0
  %3885 = vmatmul.mubr.f32.gmra.mrb[0].mxu0 %v3791
  %v3886 = vpop.f32.mrb[0].mxu0
  %v3887 = vadd.f32 0.0, %v3886
  %v3888 = vpop.f32.mrb[0].mxu0
  %3889 = vmatprep.mubr.f32.mxu0 0.0
  %3890 = vmatmul.mubr.f32.gmra.mrb[0].mxu0 %v3794
  %v3891 = vpop.f32.mrb[0].mxu0
  %v3892 = vadd.f32 0.0, %v3891
  %v3893 = vpop.f32.mrb[0].mxu0
  %3894 = vmatprep.mubr.f32.mxu0 0.0
  %3895 = vmatmul.mubr.f32.gmra.mrb[0].mxu0 %v3797
  %v3896 = vpop.f32.mrb[0].mxu0
  %v3897 = vadd.f32 0.0, %v3896
  %v3898 = vpop.f32.mrb[0].mxu0
  %3899 = vmatprep.mubr.f32.mxu0 0.0
  %3900 = vmatmul.mubr.f32.gmra.mrb[0].mxu0 %v3800
  %v3901 = vpop.f32.mrb[0].mxu0
  %v3902 = vadd.f32 0.0, %v3901
  %v3903 = vpop.f32.mrb[0].mxu0
  %3904 = vmatprep.mubr.f32.mxu0 0.0
  %3905 = vmatmul.mubr.f32.gmra.mrb[0].mxu0 %v3803
  %v3906 = vpop.f32.mrb[0].mxu0
  %v3907 = vadd.f32 0.0, %v3906
  %v3908 = vpop.f32.mrb[0].mxu0
  %3909 = vdwg.mxu0
  %v3910 = vadd.f32 %v3765, %v3872
  %v3911 = vadd.f32 %v3766, %v3877
  %v3912 = vadd.f32 %v3767, %v3882
  %v3913 = vadd.f32 %v3768, %v3887
  %v3914 = vadd.f32 %v3769, %v3892
  %v3915 = vadd.f32 %v3770, %v3897
  %v3916 = vadd.f32 %v3771, %v3902
  %v3917 = vadd.f32 %v3772, %v3907
  %v3918 = vld [vmem:[#allocation3 + $0x10] sm:$0xff]
  %v3919 = vld [vmem:[#allocation3 + $0x18] sm:$0xff]
  %v3920 = vld [vmem:[#allocation3 + $0x20] sm:$0xff]
  %v3921 = vld [vmem:[#allocation3 + $0x28] sm:$0xff]
  %v3922 = vld [vmem:[#allocation3 + $0x30] sm:$0xff]
  %v3923 = vld [vmem:[#allocation3 + $0x38] sm:$0xff]
  %v3924 = vld [vmem:[#allocation3 + $0x40] sm:$0xff]
  %v3925 = vld [vmem:[#allocation3 + $0x48] sm:$0xff]
  %v3927 = vsel %vm164, %v3918, 0
  %v3930 = vsel %vm164, %v3919, 0
  %v3933 = vsel %vm164, %v3920, 0
  %v3936 = vsel %vm164, %v3921, 0
  %v3939 = vsel %vm164, %v3922, 0
  %v3942 = vsel %vm164, %v3923, 0
  %v3945 = vsel %vm164, %v3924, 0
  %v3948 = vsel %vm164, %v3925, 0
  %3950 = vmatprep.subr.mxu0 0.0
  %3951 = vmatpush1.msra.mxu0 %v3172
  %3952 = vmatprep.subr.mxu0 0.0
  %3953 = vmatpush1.msra.mxu0 %v3173
  %3954 = vmatprep.subr.mxu0 0.0
  %3955 = vmatpush1.msra.mxu0 0.0
  %3956 = vmatprep.subr.mxu0 0.0
  %3957 = vmatpush1.msra.mxu0 0.0
  %3958 = vmatprep.subr.mxu0 0.0
  %3959 = vmatpush1.msra.mxu0 0.0
  %3960 = vmatprep.subr.mxu0 0.0
  %3961 = vmatpush1.msra.mxu0 0.0
  %3962 = vmatprep.subr.mxu0 0.0
  %3963 = vmatpush1.msra.mxu0 0.0
  %3964 = vmatprep.subr.mxu0 0.0
  %3965 = vmatpush1.msra.mxu0 0.0
  %3966 = vmatprep.subr.mxu0 0.0
  %3967 = vmatpush1.msra.mxu0 0.0
  %3968 = vmatprep.subr.mxu0 0.0
  %3969 = vmatpush1.msra.mxu0 0.0
  %3970 = vmatprep.subr.mxu0 0.0
  %3971 = vmatpush1.msra.mxu0 0.0
  %3972 = vmatprep.subr.mxu0 0.0
  %3973 = vmatpush1.msra.mxu0 0.0
  %3974 = vmatprep.subr.mxu0 0.0
  %3975 = vmatpush1.msra.mxu0 0.0
  %3976 = vmatprep.subr.mxu0 0.0
  %3977 = vmatpush1.msra.mxu0 0.0
  %3978 = vmatprep.subr.mxu0 0.0
  %3979 = vmatpush1.msra.mxu0 0.0
  %3980 = vmatprep.subr.mxu0 0.0
  %3981 = vmatpush1.msra.mxu0 0.0
  %3982 = vmatprep.subr.mxu0 0.0
  %3983 = vmatpush1.msra.mxu0 0.0
  %3984 = vmatprep.subr.mxu0 0.0
  %3985 = vmatpush1.msra.mxu0 0.0
  %3986 = vmatprep.subr.mxu0 0.0
  %3987 = vmatpush1.msra.mxu0 0.0
  %3988 = vmatprep.subr.mxu0 0.0
  %3989 = vmatpush1.msra.mxu0 0.0
  %3990 = vmatprep.subr.mxu0 0.0
  %3991 = vmatpush1.msra.mxu0 0.0
  %3992 = vmatprep.subr.mxu0 0.0
  %3993 = vmatpush1.msra.mxu0 0.0
  %3994 = vmatprep.subr.mxu0 0.0
  %3995 = vmatpush1.msra.mxu0 0.0
  %3996 = vmatprep.subr.mxu0 0.0
  %3997 = vmatpush1.msra.mxu0 0.0
  %3998 = vmatprep.subr.mxu0 0.0
  %3999 = vmatpush1.msra.mxu0 0.0
  %4000 = vmatprep.subr.mxu0 0.0
  %4001 = vmatpush1.msra.mxu0 0.0
  %4002 = vmatprep.subr.mxu0 0.0
  %4003 = vmatpush1.msra.mxu0 0.0
  %4004 = vmatprep.subr.mxu0 0.0
  %4005 = vmatpush1.msra.mxu0 0.0
  %4006 = vmatprep.subr.mxu0 0.0
  %4007 = vmatpush1.msra.mxu0 0.0
  %4008 = vmatprep.subr.mxu0 0.0
  %4009 = vmatpush1.msra.mxu0 0.0
  %4010 = vmatprep.subr.mxu0 0.0
  %4011 = vmatpush1.msra.mxu0 0.0
  %4012 = vmatprep.subr.mxu0 0.0
  %4013 = vmatpush1.msra.mxu0 0.0
  %4014 = vmatprep.mubr.f32.mxu0 0.0
  %4015 = vmatmul.mubr.f32.gmra.mrb[0].mxu0 %v3927
  %v4016 = vpop.f32.mrb[0].mxu0
  %v4017 = vadd.f32 0.0, %v4016
  %v4018 = vpop.f32.mrb[0].mxu0
  %4019 = vmatprep.mubr.f32.mxu0 0.0
  %4020 = vmatmul.mubr.f32.gmra.mrb[0].mxu0 %v3930
  %v4021 = vpop.f32.mrb[0].mxu0
  %v4022 = vadd.f32 0.0, %v4021
  %v4023 = vpop.f32.mrb[0].mxu0
  %4024 = vmatprep.mubr.f32.mxu0 0.0
  %4025 = vmatmul.mubr.f32.gmra.mrb[0].mxu0 %v3933
  %v4026 = vpop.f32.mrb[0].mxu0
  %v4027 = vadd.f32 0.0, %v4026
  %v4028 = vpop.f32.mrb[0].mxu0
  %4029 = vmatprep.mubr.f32.mxu0 0.0
  %4030 = vmatmul.mubr.f32.gmra.mrb[0].mxu0 %v3936
  %v4031 = vpop.f32.mrb[0].mxu0
  %v4032 = vadd.f32 0.0, %v4031
  %v4033 = vpop.f32.mrb[0].mxu0
  %4034 = vmatprep.mubr.f32.mxu0 0.0
  %4035 = vmatmul.mubr.f32.gmra.mrb[0].mxu0 %v3939
  %v4036 = vpop.f32.mrb[0].mxu0
  %v4037 = vadd.f32 0.0, %v4036
  %v4038 = vpop.f32.mrb[0].mxu0
  %4039 = vmatprep.mubr.f32.mxu0 0.0
  %4040 = vmatmul.mubr.f32.gmra.mrb[0].mxu0 %v3942
  %v4041 = vpop.f32.mrb[0].mxu0
  %v4042 = vadd.f32 0.0, %v4041
  %v4043 = vpop.f32.mrb[0].mxu0
  %4044 = vmatprep.mubr.f32.mxu0 0.0
  %4045 = vmatmul.mubr.f32.gmra.mrb[0].mxu0 %v3945
  %v4046 = vpop.f32.mrb[0].mxu0
  %v4047 = vadd.f32 0.0, %v4046
  %v4048 = vpop.f32.mrb[0].mxu0
  %4049 = vmatprep.mubr.f32.mxu0 0.0
  %4050 = vmatmul.mubr.f32.gmra.mrb[0].mxu0 %v3948
  %v4051 = vpop.f32.mrb[0].mxu0
  %v4052 = vadd.f32 0.0, %v4051
  %v4053 = vpop.f32.mrb[0].mxu0
  %4054 = vdwg.mxu0
  %v4055 = vadd.f32 %v3910, %v4017
  %v4056 = vadd.f32 %v3911, %v4022
  %v4057 = vadd.f32 %v3912, %v4027
  %v4058 = vadd.f32 %v3913, %v4032
  %v4059 = vadd.f32 %v3914, %v4037
  %v4060 = vadd.f32 %v3915, %v4042
  %v4061 = vadd.f32 %v3916, %v4047
  %v4062 = vadd.f32 %v3917, %v4052
  %v4063 = vld [vmem:[#allocation2 + $0x18] sm:$0xff]
  %v4064 = vld [vmem:[#allocation2 + $0x20] sm:$0xff]
  %v4065 = vld [vmem:[#allocation2 + $0x28] sm:$0xff]
  %v4066 = vld [vmem:[#allocation2 + $0x30] sm:$0xff]
  %v4067 = vld [vmem:[#allocation2 + $0x38] sm:$0xff]
  %v4068 = vld [vmem:[#allocation2 + $0x40] sm:$0xff]
  %v4069 = vld [vmem:[#allocation2 + $0x48] sm:$0xff]
  %v4070 = vld [vmem:[#allocation2 + $0x50] sm:$0xff]
  %v4072 = vsel %vm90, %v4063, 0
  %v4075 = vsel %vm90, %v4064, 0
  %v4078 = vsel %vm90, %v4065, 0
  %v4081 = vsel %vm90, %v4066, 0
  %v4084 = vsel %vm90, %v4067, 0
  %v4087 = vsel %vm90, %v4068, 0
  %v4090 = vsel %vm90, %v4069, 0
  %v4093 = vsel %vm90, %v4070, 0
  %4095 = vmatprep.subr.mxu0 0.0
  %4096 = vmatpush1.msra.mxu0 %v3174
  %4097 = vmatprep.subr.mxu0 0.0
  %4098 = vmatpush1.msra.mxu0 %v3175
  %4099 = vmatprep.subr.mxu0 0.0
  %4100 = vmatpush1.msra.mxu0 %v3176
  %4101 = vmatprep.subr.mxu0 0.0
  %4102 = vmatpush1.msra.mxu0 %v3177
  %4103 = vmatprep.subr.mxu0 0.0
  %4104 = vmatpush1.msra.mxu0 0.0
  %4105 = vmatprep.subr.mxu0 0.0
  %4106 = vmatpush1.msra.mxu0 0.0
  %4107 = vmatprep.subr.mxu0 0.0
  %4108 = vmatpush1.msra.mxu0 0.0
  %4109 = vmatprep.subr.mxu0 0.0
  %4110 = vmatpush1.msra.mxu0 0.0
  %4111 = vmatprep.subr.mxu0 0.0
  %4112 = vmatpush1.msra.mxu0 0.0
  %4113 = vmatprep.subr.mxu0 0.0
  %4114 = vmatpush1.msra.mxu0 0.0
  %4115 = vmatprep.subr.mxu0 0.0
  %4116 = vmatpush1.msra.mxu0 0.0
  %4117 = vmatprep.subr.mxu0 0.0
  %4118 = vmatpush1.msra.mxu0 0.0
  %4119 = vmatprep.subr.mxu0 0.0
  %4120 = vmatpush1.msra.mxu0 0.0
  %4121 = vmatprep.subr.mxu0 0.0
  %4122 = vmatpush1.msra.mxu0 0.0
  %4123 = vmatprep.subr.mxu0 0.0
  %4124 = vmatpush1.msra.mxu0 0.0
  %4125 = vmatprep.subr.mxu0 0.0
  %4126 = vmatpush1.msra.mxu0 0.0
  %4127 = vmatprep.subr.mxu0 0.0
  %4128 = vmatpush1.msra.mxu0 0.0
  %4129 = vmatprep.subr.mxu0 0.0
  %4130 = vmatpush1.msra.mxu0 0.0
  %4131 = vmatprep.subr.mxu0 0.0
  %4132 = vmatpush1.msra.mxu0 0.0
  %4133 = vmatprep.subr.mxu0 0.0
  %4134 = vmatpush1.msra.mxu0 0.0
  %4135 = vmatprep.subr.mxu0 0.0
  %4136 = vmatpush1.msra.mxu0 0.0
  %4137 = vmatprep.subr.mxu0 0.0
  %4138 = vmatpush1.msra.mxu0 0.0
  %4139 = vmatprep.subr.mxu0 0.0
  %4140 = vmatpush1.msra.mxu0 0.0
  %4141 = vmatprep.subr.mxu0 0.0
  %4142 = vmatpush1.msra.mxu0 0.0
  %4143 = vmatprep.subr.mxu0 0.0
  %4144 = vmatpush1.msra.mxu0 0.0
  %4145 = vmatprep.subr.mxu0 0.0
  %4146 = vmatpush1.msra.mxu0 0.0
  %4147 = vmatprep.subr.mxu0 0.0
  %4148 = vmatpush1.msra.mxu0 0.0
  %4149 = vmatprep.subr.mxu0 0.0
  %4150 = vmatpush1.msra.mxu0 0.0
  %4151 = vmatprep.subr.mxu0 0.0
  %4152 = vmatpush1.msra.mxu0 0.0
  %4153 = vmatprep.subr.mxu0 0.0
  %4154 = vmatpush1.msra.mxu0 0.0
  %4155 = vmatprep.subr.mxu0 0.0
  %4156 = vmatpush1.msra.mxu0 0.0
  %4157 = vmatprep.subr.mxu0 0.0
  %4158 = vmatpush1.msra.mxu0 0.0
  %4159 = vmatprep.mubr.f32.mxu0 0.0
  %4160 = vmatmul.mubr.f32.gmra.mrb[0].mxu0 %v4072
  %v4161 = vpop.f32.mrb[0].mxu0
  %v4162 = vadd.f32 0.0, %v4161
  %v4163 = vpop.f32.mrb[0].mxu0
  %4164 = vmatprep.mubr.f32.mxu0 0.0
  %4165 = vmatmul.mubr.f32.gmra.mrb[0].mxu0 %v4075
  %v4166 = vpop.f32.mrb[0].mxu0
  %v4167 = vadd.f32 0.0, %v4166
  %v4168 = vpop.f32.mrb[0].mxu0
  %4169 = vmatprep.mubr.f32.mxu0 0.0
  %4170 = vmatmul.mubr.f32.gmra.mrb[0].mxu0 %v4078
  %v4171 = vpop.f32.mrb[0].mxu0
  %v4172 = vadd.f32 0.0, %v4171
  %v4173 = vpop.f32.mrb[0].mxu0
  %4174 = vmatprep.mubr.f32.mxu0 0.0
  %4175 = vmatmul.mubr.f32.gmra.mrb[0].mxu0 %v4081
  %v4176 = vpop.f32.mrb[0].mxu0
  %v4177 = vadd.f32 0.0, %v4176
  %v4178 = vpop.f32.mrb[0].mxu0
  %4179 = vmatprep.mubr.f32.mxu0 0.0
  %4180 = vmatmul.mubr.f32.gmra.mrb[0].mxu0 %v4084
  %v4181 = vpop.f32.mrb[0].mxu0
  %v4182 = vadd.f32 0.0, %v4181
  %v4183 = vpop.f32.mrb[0].mxu0
  %4184 = vmatprep.mubr.f32.mxu0 0.0
  %4185 = vmatmul.mubr.f32.gmra.mrb[0].mxu0 %v4087
  %v4186 = vpop.f32.mrb[0].mxu0
  %v4187 = vadd.f32 0.0, %v4186
  %v4188 = vpop.f32.mrb[0].mxu0
  %4189 = vmatprep.mubr.f32.mxu0 0.0
  %4190 = vmatmul.mubr.f32.gmra.mrb[0].mxu0 %v4090
  %v4191 = vpop.f32.mrb[0].mxu0
  %v4192 = vadd.f32 0.0, %v4191
  %v4193 = vpop.f32.mrb[0].mxu0
  %4194 = vmatprep.mubr.f32.mxu0 0.0
  %4195 = vmatmul.mubr.f32.gmra.mrb[0].mxu0 %v4093
  %v4196 = vpop.f32.mrb[0].mxu0
  %v4197 = vadd.f32 0.0, %v4196
  %v4198 = vpop.f32.mrb[0].mxu0
  %4199 = vdwg.mxu0
  %v4200 = vadd.f32 %v4055, %v4162
  %v4201 = vadd.f32 %v4056, %v4167
  %v4202 = vadd.f32 %v4057, %v4172
  %v4203 = vadd.f32 %v4058, %v4177
  %v4204 = vadd.f32 %v4059, %v4182
  %v4205 = vadd.f32 %v4060, %v4187
  %v4206 = vadd.f32 %v4061, %v4192
  %v4207 = vadd.f32 %v4062, %v4197
  %v4208 = vld [vmem:[#allocation3 + $0x18] sm:$0xff]
  %v4209 = vld [vmem:[#allocation3 + $0x20] sm:$0xff]
  %v4210 = vld [vmem:[#allocation3 + $0x28] sm:$0xff]
  %v4211 = vld [vmem:[#allocation3 + $0x30] sm:$0xff]
  %v4212 = vld [vmem:[#allocation3 + $0x38] sm:$0xff]
  %v4213 = vld [vmem:[#allocation3 + $0x40] sm:$0xff]
  %v4214 = vld [vmem:[#allocation3 + $0x48] sm:$0xff]
  %v4215 = vld [vmem:[#allocation3 + $0x50] sm:$0xff]
  %v4217 = vsel %vm164, %v4208, 0
  %v4220 = vsel %vm164, %v4209, 0
  %v4223 = vsel %vm164, %v4210, 0
  %v4226 = vsel %vm164, %v4211, 0
  %v4229 = vsel %vm164, %v4212, 0
  %v4232 = vsel %vm164, %v4213, 0
  %v4235 = vsel %vm164, %v4214, 0
  %v4238 = vsel %vm164, %v4215, 0
  %4240 = vmatprep.subr.mxu0 0.0
  %4241 = vmatpush1.msra.mxu0 %v3178
  %4242 = vmatprep.subr.mxu0 0.0
  %4243 = vmatpush1.msra.mxu0 %v3179
  %4244 = vmatprep.subr.mxu0 0.0
  %4245 = vmatpush1.msra.mxu0 0.0
  %4246 = vmatprep.subr.mxu0 0.0
  %4247 = vmatpush1.msra.mxu0 0.0
  %4248 = vmatprep.subr.mxu0 0.0
  %4249 = vmatpush1.msra.mxu0 0.0
  %4250 = vmatprep.subr.mxu0 0.0
  %4251 = vmatpush1.msra.mxu0 0.0
  %4252 = vmatprep.subr.mxu0 0.0
  %4253 = vmatpush1.msra.mxu0 0.0
  %4254 = vmatprep.subr.mxu0 0.0
  %4255 = vmatpush1.msra.mxu0 0.0
  %4256 = vmatprep.subr.mxu0 0.0
  %4257 = vmatpush1.msra.mxu0 0.0
  %4258 = vmatprep.subr.mxu0 0.0
  %4259 = vmatpush1.msra.mxu0 0.0
  %4260 = vmatprep.subr.mxu0 0.0
  %4261 = vmatpush1.msra.mxu0 0.0
  %4262 = vmatprep.subr.mxu0 0.0
  %4263 = vmatpush1.msra.mxu0 0.0
  %4264 = vmatprep.subr.mxu0 0.0
  %4265 = vmatpush1.msra.mxu0 0.0
  %4266 = vmatprep.subr.mxu0 0.0
  %4267 = vmatpush1.msra.mxu0 0.0
  %4268 = vmatprep.subr.mxu0 0.0
  %4269 = vmatpush1.msra.mxu0 0.0
  %4270 = vmatprep.subr.mxu0 0.0
  %4271 = vmatpush1.msra.mxu0 0.0
  %4272 = vmatprep.subr.mxu0 0.0
  %4273 = vmatpush1.msra.mxu0 0.0
  %4274 = vmatprep.subr.mxu0 0.0
  %4275 = vmatpush1.msra.mxu0 0.0
  %4276 = vmatprep.subr.mxu0 0.0
  %4277 = vmatpush1.msra.mxu0 0.0
  %4278 = vmatprep.subr.mxu0 0.0
  %4279 = vmatpush1.msra.mxu0 0.0
  %4280 = vmatprep.subr.mxu0 0.0
  %4281 = vmatpush1.msra.mxu0 0.0
  %4282 = vmatprep.subr.mxu0 0.0
  %4283 = vmatpush1.msra.mxu0 0.0
  %4284 = vmatprep.subr.mxu0 0.0
  %4285 = vmatpush1.msra.mxu0 0.0
  %4286 = vmatprep.subr.mxu0 0.0
  %4287 = vmatpush1.msra.mxu0 0.0
  %4288 = vmatprep.subr.mxu0 0.0
  %4289 = vmatpush1.msra.mxu0 0.0
  %4290 = vmatprep.subr.mxu0 0.0
  %4291 = vmatpush1.msra.mxu0 0.0
  %4292 = vmatprep.subr.mxu0 0.0
  %4293 = vmatpush1.msra.mxu0 0.0
  %4294 = vmatprep.subr.mxu0 0.0
  %4295 = vmatpush1.msra.mxu0 0.0
  %4296 = vmatprep.subr.mxu0 0.0
  %4297 = vmatpush1.msra.mxu0 0.0
  %4298 = vmatprep.subr.mxu0 0.0
  %4299 = vmatpush1.msra.mxu0 0.0
  %4300 = vmatprep.subr.mxu0 0.0
  %4301 = vmatpush1.msra.mxu0 0.0
  %4302 = vmatprep.subr.mxu0 0.0
  %4303 = vmatpush1.msra.mxu0 0.0
  %4304 = vmatprep.mubr.f32.mxu0 0.0
  %4305 = vmatmul.mubr.f32.gmra.mrb[0].mxu0 %v4217
  %v4306 = vpop.f32.mrb[0].mxu0
  %v4307 = vadd.f32 0.0, %v4306
  %v4308 = vpop.f32.mrb[0].mxu0
  %4309 = vmatprep.mubr.f32.mxu0 0.0
  %4310 = vmatmul.mubr.f32.gmra.mrb[0].mxu0 %v4220
  %v4311 = vpop.f32.mrb[0].mxu0
  %v4312 = vadd.f32 0.0, %v4311
  %v4313 = vpop.f32.mrb[0].mxu0
  %4314 = vmatprep.mubr.f32.mxu0 0.0
  %4315 = vmatmul.mubr.f32.gmra.mrb[0].mxu0 %v4223
  %v4316 = vpop.f32.mrb[0].mxu0
  %v4317 = vadd.f32 0.0, %v4316
  %v4318 = vpop.f32.mrb[0].mxu0
  %4319 = vmatprep.mubr.f32.mxu0 0.0
  %4320 = vmatmul.mubr.f32.gmra.mrb[0].mxu0 %v4226
  %v4321 = vpop.f32.mrb[0].mxu0
  %v4322 = vadd.f32 0.0, %v4321
  %v4323 = vpop.f32.mrb[0].mxu0
  %4324 = vmatprep.mubr.f32.mxu0 0.0
  %4325 = vmatmul.mubr.f32.gmra.mrb[0].mxu0 %v4229
  %v4326 = vpop.f32.mrb[0].mxu0
  %v4327 = vadd.f32 0.0, %v4326
  %v4328 = vpop.f32.mrb[0].mxu0
  %4329 = vmatprep.mubr.f32.mxu0 0.0
  %4330 = vmatmul.mubr.f32.gmra.mrb[0].mxu0 %v4232
  %v4331 = vpop.f32.mrb[0].mxu0
  %v4332 = vadd.f32 0.0, %v4331
  %v4333 = vpop.f32.mrb[0].mxu0
  %4334 = vmatprep.mubr.f32.mxu0 0.0
  %4335 = vmatmul.mubr.f32.gmra.mrb[0].mxu0 %v4235
  %v4336 = vpop.f32.mrb[0].mxu0
  %v4337 = vadd.f32 0.0, %v4336
  %v4338 = vpop.f32.mrb[0].mxu0
  %4339 = vmatprep.mubr.f32.mxu0 0.0
  %4340 = vmatmul.mubr.f32.gmra.mrb[0].mxu0 %v4238
  %v4341 = vpop.f32.mrb[0].mxu0
  %v4342 = vadd.f32 0.0, %v4341
  %v4343 = vpop.f32.mrb[0].mxu0
  %4344 = vdwg.mxu0
  %v4345 = vadd.f32 %v4200, %v4307
  %v4346 = vadd.f32 %v4201, %v4312
  %v4347 = vadd.f32 %v4202, %v4317
  %v4348 = vadd.f32 %v4203, %v4322
  %v4349 = vadd.f32 %v4204, %v4327
  %v4350 = vadd.f32 %v4205, %v4332
  %v4351 = vadd.f32 %v4206, %v4337
  %v4352 = vadd.f32 %v4207, %v4342
  %v4353 = vld [vmem:[#allocation2 + $0x20] sm:$0xff]
  %v4354 = vld [vmem:[#allocation2 + $0x28] sm:$0xff]
  %v4355 = vld [vmem:[#allocation2 + $0x30] sm:$0xff]
  %v4356 = vld [vmem:[#allocation2 + $0x38] sm:$0xff]
  %v4357 = vld [vmem:[#allocation2 + $0x40] sm:$0xff]
  %v4358 = vld [vmem:[#allocation2 + $0x48] sm:$0xff]
  %v4359 = vld [vmem:[#allocation2 + $0x50] sm:$0xff]
  %v4360 = vld [vmem:[#allocation2 + $0x58] sm:$0xff]
  %v4362 = vsel %vm90, %v4353, 0
  %v4365 = vsel %vm90, %v4354, 0
  %v4368 = vsel %vm90, %v4355, 0
  %v4371 = vsel %vm90, %v4356, 0
  %v4374 = vsel %vm90, %v4357, 0
  %v4377 = vsel %vm90, %v4358, 0
  %v4380 = vsel %vm90, %v4359, 0
  %v4383 = vsel %vm90, %v4360, 0
  %4385 = vmatprep.subr.mxu0 0.0
  %4386 = vmatpush1.msra.mxu0 %v3180
  %4387 = vmatprep.subr.mxu0 0.0
  %4388 = vmatpush1.msra.mxu0 %v3181
  %4389 = vmatprep.subr.mxu0 0.0
  %4390 = vmatpush1.msra.mxu0 %v3182
  %4391 = vmatprep.subr.mxu0 0.0
  %4392 = vmatpush1.msra.mxu0 %v3183
  %4393 = vmatprep.subr.mxu0 0.0
  %4394 = vmatpush1.msra.mxu0 0.0
  %4395 = vmatprep.subr.mxu0 0.0
  %4396 = vmatpush1.msra.mxu0 0.0
  %4397 = vmatprep.subr.mxu0 0.0
  %4398 = vmatpush1.msra.mxu0 0.0
  %4399 = vmatprep.subr.mxu0 0.0
  %4400 = vmatpush1.msra.mxu0 0.0
  %4401 = vmatprep.subr.mxu0 0.0
  %4402 = vmatpush1.msra.mxu0 0.0
  %4403 = vmatprep.subr.mxu0 0.0
  %4404 = vmatpush1.msra.mxu0 0.0
  %4405 = vmatprep.subr.mxu0 0.0
  %4406 = vmatpush1.msra.mxu0 0.0
  %4407 = vmatprep.subr.mxu0 0.0
  %4408 = vmatpush1.msra.mxu0 0.0
  %4409 = vmatprep.subr.mxu0 0.0
  %4410 = vmatpush1.msra.mxu0 0.0
  %4411 = vmatprep.subr.mxu0 0.0
  %4412 = vmatpush1.msra.mxu0 0.0
  %4413 = vmatprep.subr.mxu0 0.0
  %4414 = vmatpush1.msra.mxu0 0.0
  %4415 = vmatprep.subr.mxu0 0.0
  %4416 = vmatpush1.msra.mxu0 0.0
  %4417 = vmatprep.subr.mxu0 0.0
  %4418 = vmatpush1.msra.mxu0 0.0
  %4419 = vmatprep.subr.mxu0 0.0
  %4420 = vmatpush1.msra.mxu0 0.0
  %4421 = vmatprep.subr.mxu0 0.0
  %4422 = vmatpush1.msra.mxu0 0.0
  %4423 = vmatprep.subr.mxu0 0.0
  %4424 = vmatpush1.msra.mxu0 0.0
  %4425 = vmatprep.subr.mxu0 0.0
  %4426 = vmatpush1.msra.mxu0 0.0
  %4427 = vmatprep.subr.mxu0 0.0
  %4428 = vmatpush1.msra.mxu0 0.0
  %4429 = vmatprep.subr.mxu0 0.0
  %4430 = vmatpush1.msra.mxu0 0.0
  %4431 = vmatprep.subr.mxu0 0.0
  %4432 = vmatpush1.msra.mxu0 0.0
  %4433 = vmatprep.subr.mxu0 0.0
  %4434 = vmatpush1.msra.mxu0 0.0
  %4435 = vmatprep.subr.mxu0 0.0
  %4436 = vmatpush1.msra.mxu0 0.0
  %4437 = vmatprep.subr.mxu0 0.0
  %4438 = vmatpush1.msra.mxu0 0.0
  %4439 = vmatprep.subr.mxu0 0.0
  %4440 = vmatpush1.msra.mxu0 0.0
  %4441 = vmatprep.subr.mxu0 0.0
  %4442 = vmatpush1.msra.mxu0 0.0
  %4443 = vmatprep.subr.mxu0 0.0
  %4444 = vmatpush1.msra.mxu0 0.0
  %4445 = vmatprep.subr.mxu0 0.0
  %4446 = vmatpush1.msra.mxu0 0.0
  %4447 = vmatprep.subr.mxu0 0.0
  %4448 = vmatpush1.msra.mxu0 0.0
  %4449 = vmatprep.mubr.f32.mxu0 0.0
  %4450 = vmatmul.mubr.f32.gmra.mrb[0].mxu0 %v4362
  %v4451 = vpop.f32.mrb[0].mxu0
  %v4452 = vadd.f32 0.0, %v4451
  %v4453 = vpop.f32.mrb[0].mxu0
  %4454 = vmatprep.mubr.f32.mxu0 0.0
  %4455 = vmatmul.mubr.f32.gmra.mrb[0].mxu0 %v4365
  %v4456 = vpop.f32.mrb[0].mxu0
  %v4457 = vadd.f32 0.0, %v4456
  %v4458 = vpop.f32.mrb[0].mxu0
  %4459 = vmatprep.mubr.f32.mxu0 0.0
  %4460 = vmatmul.mubr.f32.gmra.mrb[0].mxu0 %v4368
  %v4461 = vpop.f32.mrb[0].mxu0
  %v4462 = vadd.f32 0.0, %v4461
  %v4463 = vpop.f32.mrb[0].mxu0
  %4464 = vmatprep.mubr.f32.mxu0 0.0
  %4465 = vmatmul.mubr.f32.gmra.mrb[0].mxu0 %v4371
  %v4466 = vpop.f32.mrb[0].mxu0
  %v4467 = vadd.f32 0.0, %v4466
  %v4468 = vpop.f32.mrb[0].mxu0
  %4469 = vmatprep.mubr.f32.mxu0 0.0
  %4470 = vmatmul.mubr.f32.gmra.mrb[0].mxu0 %v4374
  %v4471 = vpop.f32.mrb[0].mxu0
  %v4472 = vadd.f32 0.0, %v4471
  %v4473 = vpop.f32.mrb[0].mxu0
  %4474 = vmatprep.mubr.f32.mxu0 0.0
  %4475 = vmatmul.mubr.f32.gmra.mrb[0].mxu0 %v4377
  %v4476 = vpop.f32.mrb[0].mxu0
  %v4477 = vadd.f32 0.0, %v4476
  %v4478 = vpop.f32.mrb[0].mxu0
  %4479 = vmatprep.mubr.f32.mxu0 0.0
  %4480 = vmatmul.mubr.f32.gmra.mrb[0].mxu0 %v4380
  %v4481 = vpop.f32.mrb[0].mxu0
  %v4482 = vadd.f32 0.0, %v4481
  %v4483 = vpop.f32.mrb[0].mxu0
  %4484 = vmatprep.mubr.f32.mxu0 0.0
  %4485 = vmatmul.mubr.f32.gmra.mrb[0].mxu0 %v4383
  %v4486 = vpop.f32.mrb[0].mxu0
  %v4487 = vadd.f32 0.0, %v4486
  %v4488 = vpop.f32.mrb[0].mxu0
  %4489 = vdwg.mxu0
  %v4490 = vadd.f32 %v4345, %v4452
  %v4491 = vadd.f32 %v4346, %v4457
  %v4492 = vadd.f32 %v4347, %v4462
  %v4493 = vadd.f32 %v4348, %v4467
  %v4494 = vadd.f32 %v4349, %v4472
  %v4495 = vadd.f32 %v4350, %v4477
  %v4496 = vadd.f32 %v4351, %v4482
  %v4497 = vadd.f32 %v4352, %v4487
  %v4498 = vld [vmem:[#allocation3 + $0x20] sm:$0xff]
  %v4499 = vld [vmem:[#allocation3 + $0x28] sm:$0xff]
  %v4500 = vld [vmem:[#allocation3 + $0x30] sm:$0xff]
  %v4501 = vld [vmem:[#allocation3 + $0x38] sm:$0xff]
  %v4502 = vld [vmem:[#allocation3 + $0x40] sm:$0xff]
  %v4503 = vld [vmem:[#allocation3 + $0x48] sm:$0xff]
  %v4504 = vld [vmem:[#allocation3 + $0x50] sm:$0xff]
  %v4505 = vld [vmem:[#allocation3 + $0x58] sm:$0xff]
  %v4507 = vsel %vm164, %v4498, 0
  %v4510 = vsel %vm164, %v4499, 0
  %v4513 = vsel %vm164, %v4500, 0
  %v4516 = vsel %vm164, %v4501, 0
  %v4519 = vsel %vm164, %v4502, 0
  %v4522 = vsel %vm164, %v4503, 0
  %v4525 = vsel %vm164, %v4504, 0
  %v4528 = vsel %vm164, %v4505, 0
  %4530 = vmatprep.subr.mxu0 0.0
  %4531 = vmatpush1.msra.mxu0 %v3184
  %4532 = vmatprep.subr.mxu0 0.0
  %4533 = vmatpush1.msra.mxu0 %v3185
  %4534 = vmatprep.subr.mxu0 0.0
  %4535 = vmatpush1.msra.mxu0 0.0
  %4536 = vmatprep.subr.mxu0 0.0
  %4537 = vmatpush1.msra.mxu0 0.0
  %4538 = vmatprep.subr.mxu0 0.0
  %4539 = vmatpush1.msra.mxu0 0.0
  %4540 = vmatprep.subr.mxu0 0.0
  %4541 = vmatpush1.msra.mxu0 0.0
  %4542 = vmatprep.subr.mxu0 0.0
  %4543 = vmatpush1.msra.mxu0 0.0
  %4544 = vmatprep.subr.mxu0 0.0
  %4545 = vmatpush1.msra.mxu0 0.0
  %4546 = vmatprep.subr.mxu0 0.0
  %4547 = vmatpush1.msra.mxu0 0.0
  %4548 = vmatprep.subr.mxu0 0.0
  %4549 = vmatpush1.msra.mxu0 0.0
  %4550 = vmatprep.subr.mxu0 0.0
  %4551 = vmatpush1.msra.mxu0 0.0
  %4552 = vmatprep.subr.mxu0 0.0
  %4553 = vmatpush1.msra.mxu0 0.0
  %4554 = vmatprep.subr.mxu0 0.0
  %4555 = vmatpush1.msra.mxu0 0.0
  %4556 = vmatprep.subr.mxu0 0.0
  %4557 = vmatpush1.msra.mxu0 0.0
  %4558 = vmatprep.subr.mxu0 0.0
  %4559 = vmatpush1.msra.mxu0 0.0
  %4560 = vmatprep.subr.mxu0 0.0
  %4561 = vmatpush1.msra.mxu0 0.0
  %4562 = vmatprep.subr.mxu0 0.0
  %4563 = vmatpush1.msra.mxu0 0.0
  %4564 = vmatprep.subr.mxu0 0.0
  %4565 = vmatpush1.msra.mxu0 0.0
  %4566 = vmatprep.subr.mxu0 0.0
  %4567 = vmatpush1.msra.mxu0 0.0
  %4568 = vmatprep.subr.mxu0 0.0
  %4569 = vmatpush1.msra.mxu0 0.0
  %4570 = vmatprep.subr.mxu0 0.0
  %4571 = vmatpush1.msra.mxu0 0.0
  %4572 = vmatprep.subr.mxu0 0.0
  %4573 = vmatpush1.msra.mxu0 0.0
  %4574 = vmatprep.subr.mxu0 0.0
  %4575 = vmatpush1.msra.mxu0 0.0
  %4576 = vmatprep.subr.mxu0 0.0
  %4577 = vmatpush1.msra.mxu0 0.0
  %4578 = vmatprep.subr.mxu0 0.0
  %4579 = vmatpush1.msra.mxu0 0.0
  %4580 = vmatprep.subr.mxu0 0.0
  %4581 = vmatpush1.msra.mxu0 0.0
  %4582 = vmatprep.subr.mxu0 0.0
  %4583 = vmatpush1.msra.mxu0 0.0
  %4584 = vmatprep.subr.mxu0 0.0
  %4585 = vmatpush1.msra.mxu0 0.0
  %4586 = vmatprep.subr.mxu0 0.0
  %4587 = vmatpush1.msra.mxu0 0.0
  %4588 = vmatprep.subr.mxu0 0.0
  %4589 = vmatpush1.msra.mxu0 0.0
  %4590 = vmatprep.subr.mxu0 0.0
  %4591 = vmatpush1.msra.mxu0 0.0
  %4592 = vmatprep.subr.mxu0 0.0
  %4593 = vmatpush1.msra.mxu0 0.0
  %4594 = vmatprep.mubr.f32.mxu0 0.0
  %4595 = vmatmul.mubr.f32.gmra.mrb[0].mxu0 %v4507
  %v4596 = vpop.f32.mrb[0].mxu0
  %v4597 = vadd.f32 0.0, %v4596
  %v4598 = vpop.f32.mrb[0].mxu0
  %4599 = vmatprep.mubr.f32.mxu0 0.0
  %4600 = vmatmul.mubr.f32.gmra.mrb[0].mxu0 %v4510
  %v4601 = vpop.f32.mrb[0].mxu0
  %v4602 = vadd.f32 0.0, %v4601
  %v4603 = vpop.f32.mrb[0].mxu0
  %4604 = vmatprep.mubr.f32.mxu0 0.0
  %4605 = vmatmul.mubr.f32.gmra.mrb[0].mxu0 %v4513
  %v4606 = vpop.f32.mrb[0].mxu0
  %v4607 = vadd.f32 0.0, %v4606
  %v4608 = vpop.f32.mrb[0].mxu0
  %4609 = vmatprep.mubr.f32.mxu0 0.0
  %4610 = vmatmul.mubr.f32.gmra.mrb[0].mxu0 %v4516
  %v4611 = vpop.f32.mrb[0].mxu0
  %v4612 = vadd.f32 0.0, %v4611
  %v4613 = vpop.f32.mrb[0].mxu0
  %4614 = vmatprep.mubr.f32.mxu0 0.0
  %4615 = vmatmul.mubr.f32.gmra.mrb[0].mxu0 %v4519
  %v4616 = vpop.f32.mrb[0].mxu0
  %v4617 = vadd.f32 0.0, %v4616
  %v4618 = vpop.f32.mrb[0].mxu0
  %4619 = vmatprep.mubr.f32.mxu0 0.0
  %4620 = vmatmul.mubr.f32.gmra.mrb[0].mxu0 %v4522
  %v4621 = vpop.f32.mrb[0].mxu0
  %v4622 = vadd.f32 0.0, %v4621
  %v4623 = vpop.f32.mrb[0].mxu0
  %4624 = vmatprep.mubr.f32.mxu0 0.0
  %4625 = vmatmul.mubr.f32.gmra.mrb[0].mxu0 %v4525
  %v4626 = vpop.f32.mrb[0].mxu0
  %v4627 = vadd.f32 0.0, %v4626
  %v4628 = vpop.f32.mrb[0].mxu0
  %4629 = vmatprep.mubr.f32.mxu0 0.0
  %4630 = vmatmul.mubr.f32.gmra.mrb[0].mxu0 %v4528
  %v4631 = vpop.f32.mrb[0].mxu0
  %v4632 = vadd.f32 0.0, %v4631
  %v4633 = vpop.f32.mrb[0].mxu0
  %4634 = vdwg.mxu0
  %v4635 = vadd.f32 %v4490, %v4597
  %v4636 = vadd.f32 %v4491, %v4602
  %v4637 = vadd.f32 %v4492, %v4607
  %v4638 = vadd.f32 %v4493, %v4612
  %v4639 = vadd.f32 %v4494, %v4617
  %v4640 = vadd.f32 %v4495, %v4622
  %v4641 = vadd.f32 %v4496, %v4627
  %v4642 = vadd.f32 %v4497, %v4632
  %v4643 = vld [vmem:[%s17] sm:$0x1]
  %v4645 = vlaneseq
  %v4646 = vshrl.u32 %v4645, 7
  %v4647 = vsub.s32 0, %v4646
  %v4648 = vrot.slane %v4643, %v4647
  %v4650 = vmul.f32 %v4635, %v4648
  %v4651 = vmul.f32 %v4636, %v4648
  %v4652 = vmul.f32 %v4637, %v4648
  %v4653 = vmul.f32 %v4638, %v4648
  %v4654 = vmul.f32 %v4639, %v4648
  %v4655 = vmul.f32 %v4640, %v4648
  %v4656 = vmul.f32 %v4641, %v4648
  %v4657 = vmul.f32 %v4642, %v4648
  %v4658 = vld [vmem:[%s18] sm:$0x1]
  %v4660 = vlaneseq
  %v4661 = vshrl.u32 %v4660, 7
  %v4662 = vsub.s32 0, %v4661
  %v4663 = vrot.slane %v4658, %v4662
  %v4665 = vadd.f32 %v4650, %v4663
  %v4666 = vadd.f32 %v4651, %v4663
  %v4667 = vadd.f32 %v4652, %v4663
  %v4668 = vadd.f32 %v4653, %v4663
  %v4669 = vadd.f32 %v4654, %v4663
  %v4670 = vadd.f32 %v4655, %v4663
  %v4671 = vadd.f32 %v4656, %v4663
  %v4672 = vadd.f32 %v4657, %v4663
  %v4673 = vmul.f32 %v4665, 0.2
  %v4674 = vmul.f32 %v4666, 0.2
  %v4675 = vmul.f32 %v4667, 0.2
  %v4676 = vmul.f32 %v4668, 0.2
  %v4677 = vmul.f32 %v4669, 0.2
  %v4678 = vmul.f32 %v4670, 0.2
  %v4679 = vmul.f32 %v4671, 0.2
  %v4680 = vmul.f32 %v4672, 0.2
  %v4681 = vmax.f32 %v4665, %v4673
  %v4682 = vmax.f32 %v4666, %v4674
  %v4683 = vmax.f32 %v4667, %v4675
  %v4684 = vmax.f32 %v4668, %v4676
  %v4685 = vmax.f32 %v4669, %v4677
  %v4686 = vmax.f32 %v4670, %v4678
  %v4687 = vmax.f32 %v4671, %v4679
  %v4688 = vmax.f32 %v4672, %v4680
  %4689 = vst.msk [vmem:[#allocation4] sm:$0xff] %vm90, 0.0
  %4690 = vst.msk [vmem:[#allocation4 + $0x8] sm:$0xff] %vm90, %v4681
  %4691 = vst.msk [vmem:[#allocation4 + $0x10] sm:$0xff] %vm90, %v4682
  %4692 = vst.msk [vmem:[#allocation4 + $0x18] sm:$0xff] %vm90, %v4683
  %4693 = vst.msk [vmem:[#allocation4 + $0x20] sm:$0xff] %vm90, %v4684
  %4694 = vst.msk [vmem:[#allocation4 + $0x28] sm:$0xff] %vm90, %v4685
  %4695 = vst.msk [vmem:[#allocation4 + $0x30] sm:$0xff] %vm90, %v4686
  %4696 = vst.msk [vmem:[#allocation4 + $0x38] sm:$0xff] %vm90, %v4687
  %4697 = vst.msk [vmem:[#allocation4 + $0x40] sm:$0xff] %vm90, %v4688
  %4698 = vst.msk [vmem:[#allocation4 + $0x48] sm:$0xff] %vm90, 0.0
  %v4699 = vld [vmem:[%s19] sm:$0xff]
  %v4700 = vld [vmem:[%s19 + $0x8] sm:$0xff]
  %v4701 = vld [vmem:[%s19 + $0x10] sm:$0xff]
  %v4702 = vld [vmem:[%s19 + $0x18] sm:$0xff]
  %v4703 = vld [vmem:[%s19 + $0x20] sm:$0xff]
  %v4704 = vld [vmem:[%s19 + $0x28] sm:$0xff]
  %v4705 = vld [vmem:[%s19 + $0x30] sm:$0xff]
  %v4706 = vld [vmem:[%s19 + $0x38] sm:$0xff]
  %v4707 = vld [vmem:[%s19 + $0x40] sm:$0xff]
  %v4708 = vld [vmem:[%s19 + $0x48] sm:$0xff]
  %v4709 = vld [vmem:[%s19 + $0x50] sm:$0xff]
  %v4710 = vld [vmem:[%s19 + $0x58] sm:$0xff]
  %v4711 = vld [vmem:[%s20] sm:$0x1]
  %v4712 = vld [vmem:[#allocation4] sm:$0xff]
  %v4713 = vld [vmem:[#allocation4 + $0x8] sm:$0xff]
  %v4714 = vld [vmem:[#allocation4 + $0x10] sm:$0xff]
  %v4715 = vld [vmem:[#allocation4 + $0x18] sm:$0xff]
  %v4716 = vld [vmem:[#allocation4 + $0x20] sm:$0xff]
  %v4717 = vld [vmem:[#allocation4 + $0x28] sm:$0xff]
  %v4718 = vld [vmem:[#allocation4 + $0x30] sm:$0xff]
  %v4719 = vld [vmem:[#allocation4 + $0x38] sm:$0xff]
  %v4721 = vsel %vm90, %v4712, 0
  %v4724 = vsel %vm90, %v4713, 0
  %v4727 = vsel %vm90, %v4714, 0
  %v4730 = vsel %vm90, %v4715, 0
  %v4733 = vsel %vm90, %v4716, 0
  %v4736 = vsel %vm90, %v4717, 0
  %v4739 = vsel %vm90, %v4718, 0
  %v4742 = vsel %vm90, %v4719, 0
  %4744 = vmatprep.subr.mxu0 0.0
  %4745 = vmatpush1.msra.mxu0 %v4699
  %4746 = vmatprep.subr.mxu0 0.0
  %4747 = vmatpush1.msra.mxu0 %v4700
  %4748 = vmatprep.subr.mxu0 0.0
  %4749 = vmatpush1.msra.mxu0 %v4701
  %4750 = vmatprep.subr.mxu0 0.0
  %4751 = vmatpush1.msra.mxu0 %v4702
  %4752 = vmatprep.subr.mxu0 0.0
  %4753 = vmatpush1.msra.mxu0 0.0
  %4754 = vmatprep.subr.mxu0 0.0
  %4755 = vmatpush1.msra.mxu0 0.0
  %4756 = vmatprep.subr.mxu0 0.0
  %4757 = vmatpush1.msra.mxu0 0.0
  %4758 = vmatprep.subr.mxu0 0.0
  %4759 = vmatpush1.msra.mxu0 0.0
  %4760 = vmatprep.subr.mxu0 0.0
  %4761 = vmatpush1.msra.mxu0 0.0
  %4762 = vmatprep.subr.mxu0 0.0
  %4763 = vmatpush1.msra.mxu0 0.0
  %4764 = vmatprep.subr.mxu0 0.0
  %4765 = vmatpush1.msra.mxu0 0.0
  %4766 = vmatprep.subr.mxu0 0.0
  %4767 = vmatpush1.msra.mxu0 0.0
  %4768 = vmatprep.subr.mxu0 0.0
  %4769 = vmatpush1.msra.mxu0 0.0
  %4770 = vmatprep.subr.mxu0 0.0
  %4771 = vmatpush1.msra.mxu0 0.0
  %4772 = vmatprep.subr.mxu0 0.0
  %4773 = vmatpush1.msra.mxu0 0.0
  %4774 = vmatprep.subr.mxu0 0.0
  %4775 = vmatpush1.msra.mxu0 0.0
  %4776 = vmatprep.subr.mxu0 0.0
  %4777 = vmatpush1.msra.mxu0 0.0
  %4778 = vmatprep.subr.mxu0 0.0
  %4779 = vmatpush1.msra.mxu0 0.0
  %4780 = vmatprep.subr.mxu0 0.0
  %4781 = vmatpush1.msra.mxu0 0.0
  %4782 = vmatprep.subr.mxu0 0.0
  %4783 = vmatpush1.msra.mxu0 0.0
  %4784 = vmatprep.subr.mxu0 0.0
  %4785 = vmatpush1.msra.mxu0 0.0
  %4786 = vmatprep.subr.mxu0 0.0
  %4787 = vmatpush1.msra.mxu0 0.0
  %4788 = vmatprep.subr.mxu0 0.0
  %4789 = vmatpush1.msra.mxu0 0.0
  %4790 = vmatprep.subr.mxu0 0.0
  %4791 = vmatpush1.msra.mxu0 0.0
  %4792 = vmatprep.subr.mxu0 0.0
  %4793 = vmatpush1.msra.mxu0 0.0
  %4794 = vmatprep.subr.mxu0 0.0
  %4795 = vmatpush1.msra.mxu0 0.0
  %4796 = vmatprep.subr.mxu0 0.0
  %4797 = vmatpush1.msra.mxu0 0.0
  %4798 = vmatprep.subr.mxu0 0.0
  %4799 = vmatpush1.msra.mxu0 0.0
  %4800 = vmatprep.subr.mxu0 0.0
  %4801 = vmatpush1.msra.mxu0 0.0
  %4802 = vmatprep.subr.mxu0 0.0
  %4803 = vmatpush1.msra.mxu0 0.0
  %4804 = vmatprep.subr.mxu0 0.0
  %4805 = vmatpush1.msra.mxu0 0.0
  %4806 = vmatprep.subr.mxu0 0.0
  %4807 = vmatpush1.msra.mxu0 0.0
  %4808 = vmatprep.mubr.f32.mxu0 0.0
  %4809 = vmatmul.mubr.f32.gmra.mrb[0].mxu0 %v4721
  %v4810 = vpop.f32.mrb[0].mxu0
  %v4811 = vadd.f32 0.0, %v4810
  %v4812 = vpop.f32.mrb[0].mxu0
  %4813 = vmatprep.mubr.f32.mxu0 0.0
  %4814 = vmatmul.mubr.f32.gmra.mrb[0].mxu0 %v4724
  %v4815 = vpop.f32.mrb[0].mxu0
  %v4816 = vadd.f32 0.0, %v4815
  %v4817 = vpop.f32.mrb[0].mxu0
  %4818 = vmatprep.mubr.f32.mxu0 0.0
  %4819 = vmatmul.mubr.f32.gmra.mrb[0].mxu0 %v4727
  %v4820 = vpop.f32.mrb[0].mxu0
  %v4821 = vadd.f32 0.0, %v4820
  %v4822 = vpop.f32.mrb[0].mxu0
  %4823 = vmatprep.mubr.f32.mxu0 0.0
  %4824 = vmatmul.mubr.f32.gmra.mrb[0].mxu0 %v4730
  %v4825 = vpop.f32.mrb[0].mxu0
  %v4826 = vadd.f32 0.0, %v4825
  %v4827 = vpop.f32.mrb[0].mxu0
  %4828 = vmatprep.mubr.f32.mxu0 0.0
  %4829 = vmatmul.mubr.f32.gmra.mrb[0].mxu0 %v4733
  %v4830 = vpop.f32.mrb[0].mxu0
  %v4831 = vadd.f32 0.0, %v4830
  %v4832 = vpop.f32.mrb[0].mxu0
  %4833 = vmatprep.mubr.f32.mxu0 0.0
  %4834 = vmatmul.mubr.f32.gmra.mrb[0].mxu0 %v4736
  %v4835 = vpop.f32.mrb[0].mxu0
  %v4836 = vadd.f32 0.0, %v4835
  %v4837 = vpop.f32.mrb[0].mxu0
  %4838 = vmatprep.mubr.f32.mxu0 0.0
  %4839 = vmatmul.mubr.f32.gmra.mrb[0].mxu0 %v4739
  %v4840 = vpop.f32.mrb[0].mxu0
  %v4841 = vadd.f32 0.0, %v4840
  %v4842 = vpop.f32.mrb[0].mxu0
  %4843 = vmatprep.mubr.f32.mxu0 0.0
  %4844 = vmatmul.mubr.f32.gmra.mrb[0].mxu0 %v4742
  %v4845 = vpop.f32.mrb[0].mxu0
  %v4846 = vadd.f32 0.0, %v4845
  %v4847 = vpop.f32.mrb[0].mxu0
  %4848 = vdwg.mxu0
  %v4850 = vlaneseq
  %v4851 = vshrl.u32 %v4850, 7
  %v4852 = vsub.s32 0, %v4851
  %v4853 = vrot.slane %v4711, %v4852
  %v4855 = vadd.f32 %v4853, %v4811
  %v4856 = vadd.f32 %v4853, %v4816
  %v4857 = vadd.f32 %v4853, %v4821
  %v4858 = vadd.f32 %v4853, %v4826
  %v4859 = vadd.f32 %v4853, %v4831
  %v4860 = vadd.f32 %v4853, %v4836
  %v4861 = vadd.f32 %v4853, %v4841
  %v4862 = vadd.f32 %v4853, %v4846
  %v4863 = vld [vmem:[#allocation4 + $0x8] sm:$0xff]
  %v4864 = vld [vmem:[#allocation4 + $0x10] sm:$0xff]
  %v4865 = vld [vmem:[#allocation4 + $0x18] sm:$0xff]
  %v4866 = vld [vmem:[#allocation4 + $0x20] sm:$0xff]
  %v4867 = vld [vmem:[#allocation4 + $0x28] sm:$0xff]
  %v4868 = vld [vmem:[#allocation4 + $0x30] sm:$0xff]
  %v4869 = vld [vmem:[#allocation4 + $0x38] sm:$0xff]
  %v4870 = vld [vmem:[#allocation4 + $0x40] sm:$0xff]
  %v4872 = vsel %vm90, %v4863, 0
  %v4875 = vsel %vm90, %v4864, 0
  %v4878 = vsel %vm90, %v4865, 0
  %v4881 = vsel %vm90, %v4866, 0
  %v4884 = vsel %vm90, %v4867, 0
  %v4887 = vsel %vm90, %v4868, 0
  %v4890 = vsel %vm90, %v4869, 0
  %v4893 = vsel %vm90, %v4870, 0
  %4895 = vmatprep.subr.mxu0 0.0
  %4896 = vmatpush1.msra.mxu0 %v4703
  %4897 = vmatprep.subr.mxu0 0.0
  %4898 = vmatpush1.msra.mxu0 %v4704
  %4899 = vmatprep.subr.mxu0 0.0
  %4900 = vmatpush1.msra.mxu0 %v4705
  %4901 = vmatprep.subr.mxu0 0.0
  %4902 = vmatpush1.msra.mxu0 %v4706
  %4903 = vmatprep.subr.mxu0 0.0
  %4904 = vmatpush1.msra.mxu0 0.0
  %4905 = vmatprep.subr.mxu0 0.0
  %4906 = vmatpush1.msra.mxu0 0.0
  %4907 = vmatprep.subr.mxu0 0.0
  %4908 = vmatpush1.msra.mxu0 0.0
  %4909 = vmatprep.subr.mxu0 0.0
  %4910 = vmatpush1.msra.mxu0 0.0
  %4911 = vmatprep.subr.mxu0 0.0
  %4912 = vmatpush1.msra.mxu0 0.0
  %4913 = vmatprep.subr.mxu0 0.0
  %4914 = vmatpush1.msra.mxu0 0.0
  %4915 = vmatprep.subr.mxu0 0.0
  %4916 = vmatpush1.msra.mxu0 0.0
  %4917 = vmatprep.subr.mxu0 0.0
  %4918 = vmatpush1.msra.mxu0 0.0
  %4919 = vmatprep.subr.mxu0 0.0
  %4920 = vmatpush1.msra.mxu0 0.0
  %4921 = vmatprep.subr.mxu0 0.0
  %4922 = vmatpush1.msra.mxu0 0.0
  %4923 = vmatprep.subr.mxu0 0.0
  %4924 = vmatpush1.msra.mxu0 0.0
  %4925 = vmatprep.subr.mxu0 0.0
  %4926 = vmatpush1.msra.mxu0 0.0
  %4927 = vmatprep.subr.mxu0 0.0
  %4928 = vmatpush1.msra.mxu0 0.0
  %4929 = vmatprep.subr.mxu0 0.0
  %4930 = vmatpush1.msra.mxu0 0.0
  %4931 = vmatprep.subr.mxu0 0.0
  %4932 = vmatpush1.msra.mxu0 0.0
  %4933 = vmatprep.subr.mxu0 0.0
  %4934 = vmatpush1.msra.mxu0 0.0
  %4935 = vmatprep.subr.mxu0 0.0
  %4936 = vmatpush1.msra.mxu0 0.0
  %4937 = vmatprep.subr.mxu0 0.0
  %4938 = vmatpush1.msra.mxu0 0.0
  %4939 = vmatprep.subr.mxu0 0.0
  %4940 = vmatpush1.msra.mxu0 0.0
  %4941 = vmatprep.subr.mxu0 0.0
  %4942 = vmatpush1.msra.mxu0 0.0
  %4943 = vmatprep.subr.mxu0 0.0
  %4944 = vmatpush1.msra.mxu0 0.0
  %4945 = vmatprep.subr.mxu0 0.0
  %4946 = vmatpush1.msra.mxu0 0.0
  %4947 = vmatprep.subr.mxu0 0.0
  %4948 = vmatpush1.msra.mxu0 0.0
  %4949 = vmatprep.subr.mxu0 0.0
  %4950 = vmatpush1.msra.mxu0 0.0
  %4951 = vmatprep.subr.mxu0 0.0
  %4952 = vmatpush1.msra.mxu0 0.0
  %4953 = vmatprep.subr.mxu0 0.0
  %4954 = vmatpush1.msra.mxu0 0.0
  %4955 = vmatprep.subr.mxu0 0.0
  %4956 = vmatpush1.msra.mxu0 0.0
  %4957 = vmatprep.subr.mxu0 0.0
  %4958 = vmatpush1.msra.mxu0 0.0
  %4959 = vmatprep.mubr.f32.mxu0 0.0
  %4960 = vmatmul.mubr.f32.gmra.mrb[0].mxu0 %v4872
  %v4961 = vpop.f32.mrb[0].mxu0
  %v4962 = vadd.f32 0.0, %v4961
  %v4963 = vpop.f32.mrb[0].mxu0
  %4964 = vmatprep.mubr.f32.mxu0 0.0
  %4965 = vmatmul.mubr.f32.gmra.mrb[0].mxu0 %v4875
  %v4966 = vpop.f32.mrb[0].mxu0
  %v4967 = vadd.f32 0.0, %v4966
  %v4968 = vpop.f32.mrb[0].mxu0
  %4969 = vmatprep.mubr.f32.mxu0 0.0
  %4970 = vmatmul.mubr.f32.gmra.mrb[0].mxu0 %v4878
  %v4971 = vpop.f32.mrb[0].mxu0
  %v4972 = vadd.f32 0.0, %v4971
  %v4973 = vpop.f32.mrb[0].mxu0
  %4974 = vmatprep.mubr.f32.mxu0 0.0
  %4975 = vmatmul.mubr.f32.gmra.mrb[0].mxu0 %v4881
  %v4976 = vpop.f32.mrb[0].mxu0
  %v4977 = vadd.f32 0.0, %v4976
  %v4978 = vpop.f32.mrb[0].mxu0
  %4979 = vmatprep.mubr.f32.mxu0 0.0
  %4980 = vmatmul.mubr.f32.gmra.mrb[0].mxu0 %v4884
  %v4981 = vpop.f32.mrb[0].mxu0
  %v4982 = vadd.f32 0.0, %v4981
  %v4983 = vpop.f32.mrb[0].mxu0
  %4984 = vmatprep.mubr.f32.mxu0 0.0
  %4985 = vmatmul.mubr.f32.gmra.mrb[0].mxu0 %v4887
  %v4986 = vpop.f32.mrb[0].mxu0
  %v4987 = vadd.f32 0.0, %v4986
  %v4988 = vpop.f32.mrb[0].mxu0
  %4989 = vmatprep.mubr.f32.mxu0 0.0
  %4990 = vmatmul.mubr.f32.gmra.mrb[0].mxu0 %v4890
  %v4991 = vpop.f32.mrb[0].mxu0
  %v4992 = vadd.f32 0.0, %v4991
  %v4993 = vpop.f32.mrb[0].mxu0
  %4994 = vmatprep.mubr.f32.mxu0 0.0
  %4995 = vmatmul.mubr.f32.gmra.mrb[0].mxu0 %v4893
  %v4996 = vpop.f32.mrb[0].mxu0
  %v4997 = vadd.f32 0.0, %v4996
  %v4998 = vpop.f32.mrb[0].mxu0
  %4999 = vdwg.mxu0
  %v5000 = vadd.f32 %v4855, %v4962
  %v5001 = vadd.f32 %v4856, %v4967
  %v5002 = vadd.f32 %v4857, %v4972
  %v5003 = vadd.f32 %v4858, %v4977
  %v5004 = vadd.f32 %v4859, %v4982
  %v5005 = vadd.f32 %v4860, %v4987
  %v5006 = vadd.f32 %v4861, %v4992
  %v5007 = vadd.f32 %v4862, %v4997
  %v5008 = vld [vmem:[#allocation4 + $0x10] sm:$0xff]
  %v5009 = vld [vmem:[#allocation4 + $0x18] sm:$0xff]
  %v5010 = vld [vmem:[#allocation4 + $0x20] sm:$0xff]
  %v5011 = vld [vmem:[#allocation4 + $0x28] sm:$0xff]
  %v5012 = vld [vmem:[#allocation4 + $0x30] sm:$0xff]
  %v5013 = vld [vmem:[#allocation4 + $0x38] sm:$0xff]
  %v5014 = vld [vmem:[#allocation4 + $0x40] sm:$0xff]
  %v5015 = vld [vmem:[#allocation4 + $0x48] sm:$0xff]
  %v5017 = vsel %vm90, %v5008, 0
  %v5020 = vsel %vm90, %v5009, 0
  %v5023 = vsel %vm90, %v5010, 0
  %v5026 = vsel %vm90, %v5011, 0
  %v5029 = vsel %vm90, %v5012, 0
  %v5032 = vsel %vm90, %v5013, 0
  %v5035 = vsel %vm90, %v5014, 0
  %v5038 = vsel %vm90, %v5015, 0
  %5040 = vmatprep.subr.mxu0 0.0
  %5041 = vmatpush1.msra.mxu0 %v4707
  %5042 = vmatprep.subr.mxu0 0.0
  %5043 = vmatpush1.msra.mxu0 %v4708
  %5044 = vmatprep.subr.mxu0 0.0
  %5045 = vmatpush1.msra.mxu0 %v4709
  %5046 = vmatprep.subr.mxu0 0.0
  %5047 = vmatpush1.msra.mxu0 %v4710
  %5048 = vmatprep.subr.mxu0 0.0
  %5049 = vmatpush1.msra.mxu0 0.0
  %5050 = vmatprep.subr.mxu0 0.0
  %5051 = vmatpush1.msra.mxu0 0.0
  %5052 = vmatprep.subr.mxu0 0.0
  %5053 = vmatpush1.msra.mxu0 0.0
  %5054 = vmatprep.subr.mxu0 0.0
  %5055 = vmatpush1.msra.mxu0 0.0
  %5056 = vmatprep.subr.mxu0 0.0
  %5057 = vmatpush1.msra.mxu0 0.0
  %5058 = vmatprep.subr.mxu0 0.0
  %5059 = vmatpush1.msra.mxu0 0.0
  %5060 = vmatprep.subr.mxu0 0.0
  %5061 = vmatpush1.msra.mxu0 0.0
  %5062 = vmatprep.subr.mxu0 0.0
  %5063 = vmatpush1.msra.mxu0 0.0
  %5064 = vmatprep.subr.mxu0 0.0
  %5065 = vmatpush1.msra.mxu0 0.0
  %5066 = vmatprep.subr.mxu0 0.0
  %5067 = vmatpush1.msra.mxu0 0.0
  %5068 = vmatprep.subr.mxu0 0.0
  %5069 = vmatpush1.msra.mxu0 0.0
  %5070 = vmatprep.subr.mxu0 0.0
  %5071 = vmatpush1.msra.mxu0 0.0
  %5072 = vmatprep.subr.mxu0 0.0
  %5073 = vmatpush1.msra.mxu0 0.0
  %5074 = vmatprep.subr.mxu0 0.0
  %5075 = vmatpush1.msra.mxu0 0.0
  %5076 = vmatprep.subr.mxu0 0.0
  %5077 = vmatpush1.msra.mxu0 0.0
  %5078 = vmatprep.subr.mxu0 0.0
  %5079 = vmatpush1.msra.mxu0 0.0
  %5080 = vmatprep.subr.mxu0 0.0
  %5081 = vmatpush1.msra.mxu0 0.0
  %5082 = vmatprep.subr.mxu0 0.0
  %5083 = vmatpush1.msra.mxu0 0.0
  %5084 = vmatprep.subr.mxu0 0.0
  %5085 = vmatpush1.msra.mxu0 0.0
  %5086 = vmatprep.subr.mxu0 0.0
  %5087 = vmatpush1.msra.mxu0 0.0
  %5088 = vmatprep.subr.mxu0 0.0
  %5089 = vmatpush1.msra.mxu0 0.0
  %5090 = vmatprep.subr.mxu0 0.0
  %5091 = vmatpush1.msra.mxu0 0.0
  %5092 = vmatprep.subr.mxu0 0.0
  %5093 = vmatpush1.msra.mxu0 0.0
  %5094 = vmatprep.subr.mxu0 0.0
  %5095 = vmatpush1.msra.mxu0 0.0
  %5096 = vmatprep.subr.mxu0 0.0
  %5097 = vmatpush1.msra.mxu0 0.0
  %5098 = vmatprep.subr.mxu0 0.0
  %5099 = vmatpush1.msra.mxu0 0.0
  %5100 = vmatprep.subr.mxu0 0.0
  %5101 = vmatpush1.msra.mxu0 0.0
  %5102 = vmatprep.subr.mxu0 0.0
  %5103 = vmatpush1.msra.mxu0 0.0
  %5104 = vmatprep.mubr.f32.mxu0 0.0
  %5105 = vmatmul.mubr.f32.gmra.mrb[0].mxu0 %v5017
  %v5106 = vpop.f32.mrb[0].mxu0
  %v5107 = vadd.f32 0.0, %v5106
  %v5108 = vpop.f32.mrb[0].mxu0
  %5109 = vmatprep.mubr.f32.mxu0 0.0
  %5110 = vmatmul.mubr.f32.gmra.mrb[0].mxu0 %v5020
  %v5111 = vpop.f32.mrb[0].mxu0
  %v5112 = vadd.f32 0.0, %v5111
  %v5113 = vpop.f32.mrb[0].mxu0
  %5114 = vmatprep.mubr.f32.mxu0 0.0
  %5115 = vmatmul.mubr.f32.gmra.mrb[0].mxu0 %v5023
  %v5116 = vpop.f32.mrb[0].mxu0
  %v5117 = vadd.f32 0.0, %v5116
  %v5118 = vpop.f32.mrb[0].mxu0
  %5119 = vmatprep.mubr.f32.mxu0 0.0
  %5120 = vmatmul.mubr.f32.gmra.mrb[0].mxu0 %v5026
  %v5121 = vpop.f32.mrb[0].mxu0
  %v5122 = vadd.f32 0.0, %v5121
  %v5123 = vpop.f32.mrb[0].mxu0
  %5124 = vmatprep.mubr.f32.mxu0 0.0
  %5125 = vmatmul.mubr.f32.gmra.mrb[0].mxu0 %v5029
  %v5126 = vpop.f32.mrb[0].mxu0
  %v5127 = vadd.f32 0.0, %v5126
  %v5128 = vpop.f32.mrb[0].mxu0
  %5129 = vmatprep.mubr.f32.mxu0 0.0
  %5130 = vmatmul.mubr.f32.gmra.mrb[0].mxu0 %v5032
  %v5131 = vpop.f32.mrb[0].mxu0
  %v5132 = vadd.f32 0.0, %v5131
  %v5133 = vpop.f32.mrb[0].mxu0
  %5134 = vmatprep.mubr.f32.mxu0 0.0
  %5135 = vmatmul.mubr.f32.gmra.mrb[0].mxu0 %v5035
  %v5136 = vpop.f32.mrb[0].mxu0
  %v5137 = vadd.f32 0.0, %v5136
  %v5138 = vpop.f32.mrb[0].mxu0
  %5139 = vmatprep.mubr.f32.mxu0 0.0
  %5140 = vmatmul.mubr.f32.gmra.mrb[0].mxu0 %v5038
  %v5141 = vpop.f32.mrb[0].mxu0
  %v5142 = vadd.f32 0.0, %v5141
  %v5143 = vpop.f32.mrb[0].mxu0
  %5144 = vdwg.mxu0
  %v5145 = vadd.f32 %v5000, %v5107
  %v5146 = vadd.f32 %v5001, %v5112
  %v5147 = vadd.f32 %v5002, %v5117
  %v5148 = vadd.f32 %v5003, %v5122
  %v5149 = vadd.f32 %v5004, %v5127
  %v5150 = vadd.f32 %v5005, %v5132
  %v5151 = vadd.f32 %v5006, %v5137
  %v5152 = vadd.f32 %v5007, %v5142
  %v5153 = vld [vmem:[%s21] sm:$0x1]
  %v5155 = vlaneseq
  %v5156 = vshrl.u32 %v5155, 7
  %v5157 = vsub.s32 0, %v5156
  %v5158 = vrot.slane %v5153, %v5157
  %v5160 = vmul.f32 %v5145, %v5158
  %v5161 = vmul.f32 %v5146, %v5158
  %v5162 = vmul.f32 %v5147, %v5158
  %v5163 = vmul.f32 %v5148, %v5158
  %v5164 = vmul.f32 %v5149, %v5158
  %v5165 = vmul.f32 %v5150, %v5158
  %v5166 = vmul.f32 %v5151, %v5158
  %v5167 = vmul.f32 %v5152, %v5158
  %v5168 = vld [vmem:[%s22] sm:$0x1]
  %v5170 = vlaneseq
  %v5171 = vshrl.u32 %v5170, 7
  %v5172 = vsub.s32 0, %v5171
  %v5173 = vrot.slane %v5168, %v5172
  %v5175 = vadd.f32 %v5160, %v5173
  %v5176 = vadd.f32 %v5161, %v5173
  %v5177 = vadd.f32 %v5162, %v5173
  %v5178 = vadd.f32 %v5163, %v5173
  %v5179 = vadd.f32 %v5164, %v5173
  %v5180 = vadd.f32 %v5165, %v5173
  %v5181 = vadd.f32 %v5166, %v5173
  %v5182 = vadd.f32 %v5167, %v5173
  %v5183 = vmul.f32 %v5175, 0.2
  %v5184 = vmul.f32 %v5176, 0.2
  %v5185 = vmul.f32 %v5177, 0.2
  %v5186 = vmul.f32 %v5178, 0.2
  %v5187 = vmul.f32 %v5179, 0.2
  %v5188 = vmul.f32 %v5180, 0.2
  %v5189 = vmul.f32 %v5181, 0.2
  %v5190 = vmul.f32 %v5182, 0.2
  %v5191 = vmax.f32 %v5175, %v5183
  %v5192 = vmax.f32 %v5176, %v5184
  %v5193 = vmax.f32 %v5177, %v5185
  %v5194 = vmax.f32 %v5178, %v5186
  %v5195 = vmax.f32 %v5179, %v5187
  %v5196 = vmax.f32 %v5180, %v5188
  %v5197 = vmax.f32 %v5181, %v5189
  %v5198 = vmax.f32 %v5182, %v5190
  %5199 = vst.msk [vmem:[#allocation5] sm:$0xff] %vm164, 0.0
  %5200 = vst.msk [vmem:[#allocation5 + $0x8] sm:$0xff] %vm164, %v5191
  %5201 = vst.msk [vmem:[#allocation5 + $0x10] sm:$0xff] %vm164, %v5192
  %5202 = vst.msk [vmem:[#allocation5 + $0x18] sm:$0xff] %vm164, %v5193
  %5203 = vst.msk [vmem:[#allocation5 + $0x20] sm:$0xff] %vm164, %v5194
  %5204 = vst.msk [vmem:[#allocation5 + $0x28] sm:$0xff] %vm164, %v5195
  %5205 = vst.msk [vmem:[#allocation5 + $0x30] sm:$0xff] %vm164, %v5196
  %5206 = vst.msk [vmem:[#allocation5 + $0x38] sm:$0xff] %vm164, %v5197
  %5207 = vst.msk [vmem:[#allocation5 + $0x40] sm:$0xff] %vm164, %v5198
  %5208 = vst.msk [vmem:[#allocation5 + $0x48] sm:$0xff] %vm164, 0.0
  %v5209 = vld [vmem:[%s23] sm:$0x7]
  %v5210 = vld [vmem:[#allocation5] sm:$0xff]
  %v5211 = vld [vmem:[#allocation5 + $0x8] sm:$0xff]
  %v5212 = vld [vmem:[#allocation5 + $0x10] sm:$0xff]
  %v5213 = vld [vmem:[#allocation5 + $0x18] sm:$0xff]
  %v5214 = vld [vmem:[#allocation5 + $0x20] sm:$0xff]
  %v5215 = vld [vmem:[#allocation5 + $0x28] sm:$0xff]
  %v5216 = vld [vmem:[#allocation5 + $0x30] sm:$0xff]
  %v5217 = vld [vmem:[#allocation5 + $0x38] sm:$0xff]
  %v5218 = vlaneseq
  %v5219 = vshrl.u32 %v5218, 7
  %v5220 = vsub.s32 0, %v5219
  %v5221 = vrot.slane %v5209, %v5220
  %v5222 = vmul.f32 %v5210, %v5221
  %v5223 = vmul.f32 %v5211, %v5221
  %v5224 = vmul.f32 %v5212, %v5221
  %v5225 = vmul.f32 %v5213, %v5221
  %v5226 = vmul.f32 %v5214, %v5221
  %v5227 = vmul.f32 %v5215, %v5221
  %v5228 = vmul.f32 %v5216, %v5221
  %v5229 = vmul.f32 %v5217, %v5221
  %v5230 = vld [vmem:[#allocation5 + $0x40] sm:$0xff]
  %v5231 = vlaneseq
  %v5232 = vshrl.u32 %v5231, 7
  %v5233 = vsub.s32 1, %v5232
  %v5234 = vrot.slane %v5209, %v5233
  %v5235 = vmul.f32 %v5211, %v5234
  %v5236 = vmul.f32 %v5212, %v5234
  %v5237 = vmul.f32 %v5213, %v5234
  %v5238 = vmul.f32 %v5214, %v5234
  %v5239 = vmul.f32 %v5215, %v5234
  %v5240 = vmul.f32 %v5216, %v5234
  %v5241 = vmul.f32 %v5217, %v5234
  %v5242 = vmul.f32 %v5230, %v5234
  %v5243 = vadd.f32 %v5222, %v5235
  %v5244 = vadd.f32 %v5223, %v5236
  %v5245 = vadd.f32 %v5224, %v5237
  %v5246 = vadd.f32 %v5225, %v5238
  %v5247 = vadd.f32 %v5226, %v5239
  %v5248 = vadd.f32 %v5227, %v5240
  %v5249 = vadd.f32 %v5228, %v5241
  %v5250 = vadd.f32 %v5229, %v5242
  %v5251 = vld [vmem:[#allocation5 + $0x48] sm:$0xff]
  %v5252 = vlaneseq
  %v5253 = vshrl.u32 %v5252, 7
  %v5254 = vsub.s32 2, %v5253
  %v5255 = vrot.slane %v5209, %v5254
  %v5256 = vmul.f32 %v5212, %v5255
  %v5257 = vmul.f32 %v5213, %v5255
  %v5258 = vmul.f32 %v5214, %v5255
  %v5259 = vmul.f32 %v5215, %v5255
  %v5260 = vmul.f32 %v5216, %v5255
  %v5261 = vmul.f32 %v5217, %v5255
  %v5262 = vmul.f32 %v5230, %v5255
  %v5263 = vmul.f32 %v5251, %v5255
  %v5264 = vadd.f32 %v5243, %v5256
  %v5265 = vadd.f32 %v5244, %v5257
  %v5266 = vadd.f32 %v5245, %v5258
  %v5267 = vadd.f32 %v5246, %v5259
  %v5268 = vadd.f32 %v5247, %v5260
  %v5269 = vadd.f32 %v5248, %v5261
  %v5270 = vadd.f32 %v5249, %v5262
  %v5271 = vadd.f32 %v5250, %v5263
  %v5272 = vsel %vm164, %v5264, 0.0
  %5273 = vadd.xlane.f32.xlu0 %v5272
  %v5274 = vpop.xlane.xlu0 %5273
  %v5275 = vsel %vm164, %v5265, 0.0
  %5276 = vadd.xlane.f32.xlu0 %v5275
  %v5277 = vpop.xlane.xlu0 %5276
  %v5278 = vsel %vm164, %v5266, 0.0
  %5279 = vadd.xlane.f32.xlu0 %v5278
  %v5280 = vpop.xlane.xlu0 %5279
  %v5281 = vsel %vm164, %v5267, 0.0
  %5282 = vadd.xlane.f32.xlu0 %v5281
  %v5283 = vpop.xlane.xlu0 %5282
  %v5284 = vsel %vm164, %v5268, 0.0
  %5285 = vadd.xlane.f32.xlu0 %v5284
  %v5286 = vpop.xlane.xlu0 %5285
  %v5287 = vsel %vm164, %v5269, 0.0
  %5288 = vadd.xlane.f32.xlu0 %v5287
  %v5289 = vpop.xlane.xlu0 %5288
  %v5290 = vsel %vm164, %v5270, 0.0
  %5291 = vadd.xlane.f32.xlu0 %v5290
  %v5292 = vpop.xlane.xlu0 %5291
  %v5293 = vsel %vm164, %v5271, 0.0
  %5294 = vadd.xlane.f32.xlu0 %v5293
  %v5295 = vpop.xlane.xlu0 %5294
  %v5296 = vld [vmem:[#allocation6] sm:$0x1]
  %v5298 = vlaneseq
  %v5299 = vshrl.u32 %v5298, 7
  %v5300 = vsub.s32 0, %v5299
  %v5301 = vrot.slane %v5296, %v5300
  %v5303 = vadd.f32 %v5274, %v5301
  %v5304 = vadd.f32 %v5277, %v5301
  %v5305 = vadd.f32 %v5280, %v5301
  %v5306 = vadd.f32 %v5283, %v5301
  %v5307 = vadd.f32 %v5286, %v5301
  %v5308 = vadd.f32 %v5289, %v5301
  %v5309 = vadd.f32 %v5292, %v5301
  %v5310 = vadd.f32 %v5295, %v5301
  %v5311 = vmul.f32 %v5303, 0.2
  %v5312 = vmul.f32 %v5304, 0.2
  %v5313 = vmul.f32 %v5305, 0.2
  %v5314 = vmul.f32 %v5306, 0.2
  %v5315 = vmul.f32 %v5307, 0.2
  %v5316 = vmul.f32 %v5308, 0.2
  %v5317 = vmul.f32 %v5309, 0.2
  %v5318 = vmul.f32 %v5310, 0.2
  %v5319 = vmax.f32 %v5303, %v5311
  %v5320 = vmax.f32 %v5304, %v5312
  %v5321 = vmax.f32 %v5305, %v5313
  %v5322 = vmax.f32 %v5306, %v5314
  %v5323 = vmax.f32 %v5307, %v5315
  %v5324 = vmax.f32 %v5308, %v5316
  %v5325 = vmax.f32 %v5309, %v5317
  %v5326 = vmax.f32 %v5310, %v5318
  %vm5327 = vcmask 7168
  %5328 = vst.msk [vmem:[%s25] sm:$0xff] %vm5327, %v5319
  %5329 = vst.msk [vmem:[%s25 + $0x8] sm:$0xff] %vm5327, %v5320
  %5330 = vst.msk [vmem:[%s25 + $0x10] sm:$0xff] %vm5327, %v5321
  %5331 = vst.msk [vmem:[%s25 + $0x18] sm:$0xff] %vm5327, %v5322
  %5332 = vst.msk [vmem:[%s25 + $0x20] sm:$0xff] %vm5327, %v5323
  %5333 = vst.msk [vmem:[%s25 + $0x28] sm:$0xff] %vm5327, %v5324
  %5334 = vst.msk [vmem:[%s25 + $0x30] sm:$0xff] %vm5327, %v5325
  %5335 = vst.msk [vmem:[%s25 + $0x38] sm:$0xff] %vm5327, %v5326
  // Predicated region
  $region102: #{forward.1} parent=0 // pred_check
    _
  $region103: #{forward.1} parent=0 // pred_check_branch
    %5337 = sbr.rel (0) target = $region105
  $region104: #{forward.1} parent=0 // pred_region
    _
  $region105: #{forward.1} parent=0 // pred_fallthru
    _
  // Predicated region
  $region106: #{forward.1} parent=0 // pred_check
    _
  $region107: #{forward.1} parent=0 // pred_check_branch
    %5339 = sbr.rel (0) target = $region109
  $region108: #{forward.1} parent=0 // pred_region
    _
  $region109: #{forward.1} parent=0 // pred_fallthru
    _

</llo_original>
